<compile_context>
chip_gen: v7x
topology: tpu7x:2x2x1
jax: 0.10.0
libtpu: 0.0.40
codegen_flags: <defaults>
</compile_context>

<pallas_src>
import jax
import jax.numpy as jnp
from jax import lax
from jax.experimental import pallas as pl
from jax.experimental.pallas import tpu as pltpu  # noqa: F401  (TPU backend)

# ----- small, shape-consistent config -----
BATCH = 2
NINP = 32          # ninp == linear_mapping_dim == LSTM input size
NHID = 32          # LSTM hidden size
TARGET = 32        # target_emb_sz
NLAYERS = 2
N_BASIS = 8

# The fused weight-slab layout relies on the LSTM input width equaling NHID
# (true for positional_option='linear' with linear_mapping_dim == ninp == nhid).
assert NINP == NHID, "fused weight slabs assume NINP == NHID"
assert NLAYERS == 2, "kernel is specialized (unrolled) for 2 LSTM layers"

_G = 4 * NHID                       # gate width per layer            (128)
_NW_INIT = 2 * NLAYERS * NHID       # h0/c0 init lanes                (128)
_NW_GIN = N_BASIS * _G              # folded layer-0 input-gate lanes (1024)
_NW_PRO = _NW_INIT + _NW_GIN        # prologue matmul output lanes    (1152)


def emb2seq_kernel(x_ref, w_ref, b_ref, out_ref):
    H, G = NHID, _G
    x = x_ref[...]                                               # (B, NINP)

    # ---- prologue: ONE matmul -> h0/c0 init + all layer-0 gate preacts ----
    pro = (jnp.dot(x, w_ref[:, :_NW_PRO], preferred_element_type=jnp.float32)
           + b_ref[:, :_NW_PRO])                                 # (B, 1152)
    h0 = pro[:, 0 * H:1 * H]          # layer-0 h init
    h1 = pro[:, 1 * H:2 * H]          # layer-1 h init
    c0 = pro[:, 2 * H:3 * H]          # layer-0 c init
    c1 = pro[:, 3 * H:4 * H]          # layer-1 c init

    # ---- hoist in-loop weights once (pinned in vregs, opt 7) --------------
    o = _NW_PRO
    whh0T = w_ref[:, o + 0 * G:o + 1 * G]                        # (H, 4H)
    wih1T = w_ref[:, o + 1 * G:o + 2 * G]                        # (H, 4H)
    whh1T = w_ref[:, o + 2 * G:o + 3 * G]                        # (H, 4H)
    woutT = w_ref[:, o + 3 * G:o + 3 * G + TARGET]               # (H, TARGET)
    b1g = b_ref[:, _NW_PRO:_NW_PRO + G]                          # (1, 4H)
    bout = b_ref[:, _NW_PRO + G:_NW_PRO + G + TARGET]            # (1, TARGET)

    def lstm_cell(gates, c_prev):
        # opt 6: 2 full-vreg EUP pushes for the gates + 1 for tanh(c_new).
        sg = jax.nn.sigmoid(gates)                               # (B, 4H)
        th = jnp.tanh(gates)                                     # (B, 4H)
        i_g = sg[:, 0 * H:1 * H]
        f_g = sg[:, 1 * H:2 * H]
        g_g = th[:, 2 * H:3 * H]
        o_g = sg[:, 3 * H:4 * H]
        c_new = f_g * c_prev + i_g * g_g
        h_new = o_g * jnp.tanh(c_new)
        return h_new, c_new

    outs = []
    for t in range(N_BASIS):                                     # unrolled
        # layer 0: input-gate part precomputed in the prologue (opt 4)
        gin0_t = pro[:, _NW_INIT + t * G:_NW_INIT + (t + 1) * G]
        g0 = gin0_t + jnp.dot(h0, whh0T, preferred_element_type=jnp.float32)
        h0, c0 = lstm_cell(g0, c0)
        # layer 1: two pipelined MXU pushes, no lane concat (opt 3/5)
        g1 = (jnp.dot(h0, wih1T, preferred_element_type=jnp.float32)
              + jnp.dot(h1, whh1T, preferred_element_type=jnp.float32)
              + b1g)
        h1, c1 = lstm_cell(g1, c1)
        # out_linear per step: tiny push, off the recurrence chain (opt 8)
        outs.append(jnp.dot(h1, woutT, preferred_element_type=jnp.float32)
                    + bout)                                      # (B, TARGET)

    # lane-dense (B, N_BASIS*TARGET) slab -> one unmasked store
    out_ref[...] = jnp.concatenate(outs, axis=1)


def fuse_params(wp, bp, w1, b1, w2, b2, wih, whh, bih, bhh, wout, bout):
    """One-time (model-load) weight fusion.  NOT on the per-call path."""
    H = NHID
    # h0/c0 init: columns = [h0_l0 | h0_l1 | c0_l0 | c0_l1]
    w_init = jnp.transpose(jnp.concatenate([w1, w2], axis=0),
                           (2, 0, 1)).reshape(NINP, 2 * NLAYERS * H)
    b_init = jnp.concatenate([b1, b2], axis=0).reshape(1, 2 * NLAYERS * H)

    # layer-0 input gates folded through the positional linear:
    #   gin0[t] = x @ (Wih0 @ Wp[t])^T + (bp[t] @ Wih0^T + bih0 + bhh0)
    wg0 = jnp.einsum('toi,go->tig', wp, wih[0])                  # (T, NINP, 4H)
    wg0_all = jnp.transpose(wg0, (1, 0, 2)).reshape(NINP, N_BASIS * _G)
    bg0 = jnp.einsum('tri,gi->trg', bp, wih[0])                  # (T, 1, 4H)
    bg0_all = (bg0 + bih[0] + bhh[0]).reshape(1, N_BASIS * _G)

    # recurrent / layer-1 / output weights (pre-transposed)
    whh0T = whh[0].T                                             # (H, 4H)
    wih1T = wih[1].T                                             # (H, 4H)
    whh1T = whh[1].T                                             # (H, 4H)
    b1g = bih[1] + bhh[1]                                        # (1, 4H)
    woutT = wout.T                                               # (H, TARGET)

    w_all = jnp.concatenate([w_init, wg0_all, whh0T, wih1T, whh1T, woutT],
                            axis=1)                              # (32, 1568)
    b_all = jnp.concatenate([b_init, bg0_all, b1g, bout], axis=1)  # (1, 1312)
    return w_all, b_all


@jax.jit
def emb2seq_forward(x, w_all, b_all):
    out_slab = pl.pallas_call(
        emb2seq_kernel,
        out_shape=jax.ShapeDtypeStruct((BATCH, N_BASIS * TARGET), jnp.float32),
    )(x, w_all, b_all)
    # (batch, n_basis*target) -> (batch, n_basis, target): free contiguous view
    out_bf = out_slab.reshape(BATCH, N_BASIS, TARGET)
    return out_bf, out_bf, out_bf


# ---------------- pure-JAX reference (for correctness check) ----------------
def reference_forward(x, wp, bp, w1, b1, w2, b2, wih, whh, bih, bhh, wout, bout):
    emb = jnp.einsum('bi,tdi->tbd', x, wp) + bp                  # (n_basis,B,ninp)
    h0 = jnp.einsum('bi,lhi->lbh', x, w1) + b1                   # (nlayers,B,nhid)
    c0 = jnp.einsum('bi,lhi->lbh', x, w2) + b2

    def lstm_layer(seq, h, c, Wih, Whh, Bih, Bhh):
        def step(carry, x_t):
            hh, cc = carry
            g = x_t @ Wih.T + Bih + hh @ Whh.T + Bhh
            i, f, gg, o = jnp.split(g, 4, axis=-1)
            i, f, o = jax.nn.sigmoid(i), jax.nn.sigmoid(f), jax.nn.sigmoid(o)
            gg = jnp.tanh(gg)
            cc = f * cc + i * gg
            hh = o * jnp.tanh(cc)
            return (hh, cc), hh
        _, ys = lax.scan(step, (h, c), seq)
        return ys

    seq = emb
    for l in range(NLAYERS):
        seq = lstm_layer(seq, h0[l], c0[l], wih[l], whh[l],
                         bih[l, 0], bhh[l, 0])
    out = seq @ wout.T + bout[0]                                 # (n_basis,B,T)
    return jnp.transpose(out, (1, 0, 2))                         # batch-first


def _uniform(key, shape, lo, hi):
    return jax.random.uniform(key, shape, jnp.float32, lo, hi)


if __name__ == "__main__":
    key = jax.random.PRNGKey(0)
    ks = jax.random.split(key, 16)

    # input_init: (batch, ninp)
    x = jax.random.normal(ks[0], (BATCH, NINP), jnp.float32)

    # positional 'linear' array: n_basis Linear(ninp -> ninp)
    wp = _uniform(ks[1], (N_BASIS, NINP, NINP), -0.1, 0.1)
    bp = _uniform(ks[2], (N_BASIS, 1, NINP), -0.5, 0.5)

    # RNN_decoder init_hid_linear_{1,2}: nlayers x Linear(ninp -> nhid)
    w1 = _uniform(ks[3], (NLAYERS, NHID, NINP), -0.1, 0.1)
    b1 = _uniform(ks[4], (NLAYERS, 1, NHID), -0.5, 0.5)
    w2 = _uniform(ks[5], (NLAYERS, NHID, NINP), -0.1, 0.1)
    b2 = _uniform(ks[6], (NLAYERS, 1, NHID), -0.5, 0.5)

    # LSTM parameters (PyTorch default init: U(-1/sqrt(nhid), 1/sqrt(nhid)))
    stdv = 1.0 / (NHID ** 0.5)
    wih = _uniform(ks[7], (NLAYERS, 4 * NHID, NHID), -stdv, stdv)
    whh = _uniform(ks[8], (NLAYERS, 4 * NHID, NHID), -stdv, stdv)
    bih = _uniform(ks[9], (NLAYERS, 1, 4 * NHID), -stdv, stdv)
    bhh = _uniform(ks[10], (NLAYERS, 1, 4 * NHID), -stdv, stdv)

    # out_linear: Linear(nhid -> target_emb_sz), weight U(-0.1,0.1), bias 0
    wout = _uniform(ks[11], (TARGET, NHID), -0.1, 0.1)
    bout = jnp.zeros((1, TARGET), jnp.float32)

    raw = (wp, bp, w1, b1, w2, b2, wih, whh, bih, bhh, wout, bout)

    # ---- one-time weight fusion (model-load time, NOT per forward call) ----
    w_all, b_all = fuse_params(*raw)
    w_all, b_all = jax.block_until_ready((w_all, b_all))

    out_bf, _, _ = emb2seq_forward(x, w_all, b_all)
    out_bf = jax.block_until_ready(out_bf)

    ref = reference_forward(x, *raw)
    assert out_bf.shape == (BATCH, N_BASIS, TARGET)
    assert jnp.allclose(out_bf, ref, atol=1e-4, rtol=1e-4), "mismatch vs reference"

    print("KERNEL_OK")
</pallas_src>

<mosaic_0001>
module attributes {stable_mosaic.version = 11 : i64} {
  func.func @emb2seq_kernel(%arg0: memref<2x32xf32, #tpu.memory_space<vmem>>, %arg1: memref<32x1568xf32, #tpu.memory_space<vmem>>, %arg2: memref<1x1312xf32, #tpu.memory_space<vmem>>, %arg3: memref<2x256xf32, #tpu.memory_space<vmem>>) attributes {dimension_semantics = [], scalar_prefetch = 0 : i64, scratch_operands = 0 : i64, tpu.core_type = #tpu.core_type<tc>} {
    %c0 = arith.constant 0 : index
    %c0_0 = arith.constant 0 : index
    %0 = vector.load %arg0[%c0, %c0_0] : memref<2x32xf32, #tpu.memory_space<vmem>>, vector<2x32xf32>
    %c0_1 = arith.constant 0 : index
    %c0_2 = arith.constant 0 : index
    %1 = vector.load %arg1[%c0_1, %c0_2] : memref<32x1568xf32, #tpu.memory_space<vmem>>, vector<32x1152xf32>
    %cst = arith.constant dense<0.000000e+00> : vector<2x1152xf32>
    %2 = tpu.matmul %0, %1, %cst {dimension_numbers = #tpu.dot_dimension_numbers<[1], [0], [0], [1], [0, 0, 1, 1], [], []>} : vector<2x32xf32>, vector<32x1152xf32>, vector<2x1152xf32> -> vector<2x1152xf32>
    %c0_3 = arith.constant 0 : index
    %c0_4 = arith.constant 0 : index
    %3 = vector.load %arg2[%c0_3, %c0_4] : memref<1x1312xf32, #tpu.memory_space<vmem>>, vector<1x1152xf32>
    %4 = vector.broadcast %3 : vector<1x1152xf32> to vector<2x1152xf32>
    %5 = arith.addf %2, %4 : vector<2x1152xf32>
    %6 = vector.extract_strided_slice %5 {offsets = [0, 0], sizes = [2, 32], strides = [1, 1]} : vector<2x1152xf32> to vector<2x32xf32>
    %7 = vector.extract_strided_slice %5 {offsets = [0, 32], sizes = [2, 32], strides = [1, 1]} : vector<2x1152xf32> to vector<2x32xf32>
    %8 = vector.extract_strided_slice %5 {offsets = [0, 64], sizes = [2, 32], strides = [1, 1]} : vector<2x1152xf32> to vector<2x32xf32>
    %9 = vector.extract_strided_slice %5 {offsets = [0, 96], sizes = [2, 32], strides = [1, 1]} : vector<2x1152xf32> to vector<2x32xf32>
    %c0_5 = arith.constant 0 : index
    %c1152 = arith.constant 1152 : index
    %10 = vector.load %arg1[%c0_5, %c1152] : memref<32x1568xf32, #tpu.memory_space<vmem>>, vector<32x128xf32>
    %c0_6 = arith.constant 0 : index
    %c1280 = arith.constant 1280 : index
    %11 = vector.load %arg1[%c0_6, %c1280] : memref<32x1568xf32, #tpu.memory_space<vmem>>, vector<32x128xf32>
    %c0_7 = arith.constant 0 : index
    %c1408 = arith.constant 1408 : index
    %12 = vector.load %arg1[%c0_7, %c1408] : memref<32x1568xf32, #tpu.memory_space<vmem>>, vector<32x128xf32>
    %c0_8 = arith.constant 0 : index
    %c1536 = arith.constant 1536 : index
    %13 = vector.load %arg1[%c0_8, %c1536] : memref<32x1568xf32, #tpu.memory_space<vmem>>, vector<32x32xf32>
    %c0_9 = arith.constant 0 : index
    %c1152_10 = arith.constant 1152 : index
    %14 = vector.load %arg2[%c0_9, %c1152_10] : memref<1x1312xf32, #tpu.memory_space<vmem>>, vector<1x128xf32>
    %c0_11 = arith.constant 0 : index
    %c1280_12 = arith.constant 1280 : index
    %15 = vector.load %arg2[%c0_11, %c1280_12] : memref<1x1312xf32, #tpu.memory_space<vmem>>, vector<1x32xf32>
    %16 = vector.extract_strided_slice %5 {offsets = [0, 128], sizes = [2, 128], strides = [1, 1]} : vector<2x1152xf32> to vector<2x128xf32>
    %cst_13 = arith.constant dense<0.000000e+00> : vector<2x128xf32>
    %17 = tpu.matmul %6, %10, %cst_13 {dimension_numbers = #tpu.dot_dimension_numbers<[1], [0], [0], [1], [0, 0, 1, 1], [], []>} : vector<2x32xf32>, vector<32x128xf32>, vector<2x128xf32> -> vector<2x128xf32>
    %18 = arith.addf %16, %17 : vector<2x128xf32>
    %19 = arith.negf %18 : vector<2x128xf32>
    %20 = math.exp %19 : vector<2x128xf32>
    %cst_14 = arith.constant 1.000000e+00 : f32
    %21 = vector.broadcast %cst_14 : f32 to vector<2x128xf32>
    %22 = arith.addf %21, %20 : vector<2x128xf32>
    %23 = arith.divf %21, %22 : vector<2x128xf32>
    %24 = math.tanh %18 : vector<2x128xf32>
    %25 = vector.extract_strided_slice %23 {offsets = [0, 0], sizes = [2, 32], strides = [1, 1]} : vector<2x128xf32> to vector<2x32xf32>
    %26 = vector.extract_strided_slice %23 {offsets = [0, 32], sizes = [2, 32], strides = [1, 1]} : vector<2x128xf32> to vector<2x32xf32>
    %27 = vector.extract_strided_slice %24 {offsets = [0, 64], sizes = [2, 32], strides = [1, 1]} : vector<2x128xf32> to vector<2x32xf32>
    %28 = vector.extract_strided_slice %23 {offsets = [0, 96], sizes = [2, 32], strides = [1, 1]} : vector<2x128xf32> to vector<2x32xf32>
    %29 = arith.mulf %26, %8 : vector<2x32xf32>
    %30 = arith.mulf %25, %27 : vector<2x32xf32>
    %31 = arith.addf %29, %30 : vector<2x32xf32>
    %32 = math.tanh %31 : vector<2x32xf32>
    %33 = arith.mulf %28, %32 : vector<2x32xf32>
    %cst_15 = arith.constant dense<0.000000e+00> : vector<2x128xf32>
    %34 = tpu.matmul %33, %11, %cst_15 {dimension_numbers = #tpu.dot_dimension_numbers<[1], [0], [0], [1], [0, 0, 1, 1], [], []>} : vector<2x32xf32>, vector<32x128xf32>, vector<2x128xf32> -> vector<2x128xf32>
    %cst_16 = arith.constant dense<0.000000e+00> : vector<2x128xf32>
    %35 = tpu.matmul %7, %12, %cst_16 {dimension_numbers = #tpu.dot_dimension_numbers<[1], [0], [0], [1], [0, 0, 1, 1], [], []>} : vector<2x32xf32>, vector<32x128xf32>, vector<2x128xf32> -> vector<2x128xf32>
    %36 = arith.addf %34, %35 : vector<2x128xf32>
    %37 = vector.broadcast %14 : vector<1x128xf32> to vector<2x128xf32>
    %38 = arith.addf %36, %37 : vector<2x128xf32>
    %39 = arith.negf %38 : vector<2x128xf32>
    %40 = math.exp %39 : vector<2x128xf32>
    %cst_17 = arith.constant 1.000000e+00 : f32
    %41 = vector.broadcast %cst_17 : f32 to vector<2x128xf32>
    %42 = arith.addf %41, %40 : vector<2x128xf32>
    %43 = arith.divf %41, %42 : vector<2x128xf32>
    %44 = math.tanh %38 : vector<2x128xf32>
    %45 = vector.extract_strided_slice %43 {offsets = [0, 0], sizes = [2, 32], strides = [1, 1]} : vector<2x128xf32> to vector<2x32xf32>
    %46 = vector.extract_strided_slice %43 {offsets = [0, 32], sizes = [2, 32], strides = [1, 1]} : vector<2x128xf32> to vector<2x32xf32>
    %47 = vector.extract_strided_slice %44 {offsets = [0, 64], sizes = [2, 32], strides = [1, 1]} : vector<2x128xf32> to vector<2x32xf32>
    %48 = vector.extract_strided_slice %43 {offsets = [0, 96], sizes = [2, 32], strides = [1, 1]} : vector<2x128xf32> to vector<2x32xf32>
    %49 = arith.mulf %46, %9 : vector<2x32xf32>
    %50 = arith.mulf %45, %47 : vector<2x32xf32>
    %51 = arith.addf %49, %50 : vector<2x32xf32>
    %52 = math.tanh %51 : vector<2x32xf32>
    %53 = arith.mulf %48, %52 : vector<2x32xf32>
    %cst_18 = arith.constant dense<0.000000e+00> : vector<2x32xf32>
    %54 = tpu.matmul %53, %13, %cst_18 {dimension_numbers = #tpu.dot_dimension_numbers<[1], [0], [0], [1], [0, 0, 1, 1], [], []>} : vector<2x32xf32>, vector<32x32xf32>, vector<2x32xf32> -> vector<2x32xf32>
    %55 = vector.broadcast %15 : vector<1x32xf32> to vector<2x32xf32>
    %56 = arith.addf %54, %55 : vector<2x32xf32>
    %57 = vector.extract_strided_slice %5 {offsets = [0, 256], sizes = [2, 128], strides = [1, 1]} : vector<2x1152xf32> to vector<2x128xf32>
    %cst_19 = arith.constant dense<0.000000e+00> : vector<2x128xf32>
    %58 = tpu.matmul %33, %10, %cst_19 {dimension_numbers = #tpu.dot_dimension_numbers<[1], [0], [0], [1], [0, 0, 1, 1], [], []>} : vector<2x32xf32>, vector<32x128xf32>, vector<2x128xf32> -> vector<2x128xf32>
    %59 = arith.addf %57, %58 : vector<2x128xf32>
    %60 = arith.negf %59 : vector<2x128xf32>
    %61 = math.exp %60 : vector<2x128xf32>
    %cst_20 = arith.constant 1.000000e+00 : f32
    %62 = vector.broadcast %cst_20 : f32 to vector<2x128xf32>
    %63 = arith.addf %62, %61 : vector<2x128xf32>
    %64 = arith.divf %62, %63 : vector<2x128xf32>
    %65 = math.tanh %59 : vector<2x128xf32>
    %66 = vector.extract_strided_slice %64 {offsets = [0, 0], sizes = [2, 32], strides = [1, 1]} : vector<2x128xf32> to vector<2x32xf32>
    %67 = vector.extract_strided_slice %64 {offsets = [0, 32], sizes = [2, 32], strides = [1, 1]} : vector<2x128xf32> to vector<2x32xf32>
    %68 = vector.extract_strided_slice %65 {offsets = [0, 64], sizes = [2, 32], strides = [1, 1]} : vector<2x128xf32> to vector<2x32xf32>
    %69 = vector.extract_strided_slice %64 {offsets = [0, 96], sizes = [2, 32], strides = [1, 1]} : vector<2x128xf32> to vector<2x32xf32>
    %70 = arith.mulf %67, %31 : vector<2x32xf32>
    %71 = arith.mulf %66, %68 : vector<2x32xf32>
    %72 = arith.addf %70, %71 : vector<2x32xf32>
    %73 = math.tanh %72 : vector<2x32xf32>
    %74 = arith.mulf %69, %73 : vector<2x32xf32>
    %cst_21 = arith.constant dense<0.000000e+00> : vector<2x128xf32>
    %75 = tpu.matmul %74, %11, %cst_21 {dimension_numbers = #tpu.dot_dimension_numbers<[1], [0], [0], [1], [0, 0, 1, 1], [], []>} : vector<2x32xf32>, vector<32x128xf32>, vector<2x128xf32> -> vector<2x128xf32>
    %cst_22 = arith.constant dense<0.000000e+00> : vector<2x128xf32>
    %76 = tpu.matmul %53, %12, %cst_22 {dimension_numbers = #tpu.dot_dimension_numbers<[1], [0], [0], [1], [0, 0, 1, 1], [], []>} : vector<2x32xf32>, vector<32x128xf32>, vector<2x128xf32> -> vector<2x128xf32>
    %77 = arith.addf %75, %76 : vector<2x128xf32>
    %78 = vector.broadcast %14 : vector<1x128xf32> to vector<2x128xf32>
    %79 = arith.addf %77, %78 : vector<2x128xf32>
    %80 = arith.negf %79 : vector<2x128xf32>
    %81 = math.exp %80 : vector<2x128xf32>
    %cst_23 = arith.constant 1.000000e+00 : f32
    %82 = vector.broadcast %cst_23 : f32 to vector<2x128xf32>
    %83 = arith.addf %82, %81 : vector<2x128xf32>
    %84 = arith.divf %82, %83 : vector<2x128xf32>
    %85 = math.tanh %79 : vector<2x128xf32>
    %86 = vector.extract_strided_slice %84 {offsets = [0, 0], sizes = [2, 32], strides = [1, 1]} : vector<2x128xf32> to vector<2x32xf32>
    %87 = vector.extract_strided_slice %84 {offsets = [0, 32], sizes = [2, 32], strides = [1, 1]} : vector<2x128xf32> to vector<2x32xf32>
    %88 = vector.extract_strided_slice %85 {offsets = [0, 64], sizes = [2, 32], strides = [1, 1]} : vector<2x128xf32> to vector<2x32xf32>
    %89 = vector.extract_strided_slice %84 {offsets = [0, 96], sizes = [2, 32], strides = [1, 1]} : vector<2x128xf32> to vector<2x32xf32>
    %90 = arith.mulf %87, %51 : vector<2x32xf32>
    %91 = arith.mulf %86, %88 : vector<2x32xf32>
    %92 = arith.addf %90, %91 : vector<2x32xf32>
    %93 = math.tanh %92 : vector<2x32xf32>
    %94 = arith.mulf %89, %93 : vector<2x32xf32>
    %cst_24 = arith.constant dense<0.000000e+00> : vector<2x32xf32>
    %95 = tpu.matmul %94, %13, %cst_24 {dimension_numbers = #tpu.dot_dimension_numbers<[1], [0], [0], [1], [0, 0, 1, 1], [], []>} : vector<2x32xf32>, vector<32x32xf32>, vector<2x32xf32> -> vector<2x32xf32>
    %96 = vector.broadcast %15 : vector<1x32xf32> to vector<2x32xf32>
    %97 = arith.addf %95, %96 : vector<2x32xf32>
    %98 = vector.extract_strided_slice %5 {offsets = [0, 384], sizes = [2, 128], strides = [1, 1]} : vector<2x1152xf32> to vector<2x128xf32>
    %cst_25 = arith.constant dense<0.000000e+00> : vector<2x128xf32>
    %99 = tpu.matmul %74, %10, %cst_25 {dimension_numbers = #tpu.dot_dimension_numbers<[1], [0], [0], [1], [0, 0, 1, 1], [], []>} : vector<2x32xf32>, vector<32x128xf32>, vector<2x128xf32> -> vector<2x128xf32>
    %100 = arith.addf %98, %99 : vector<2x128xf32>
    %101 = arith.negf %100 : vector<2x128xf32>
    %102 = math.exp %101 : vector<2x128xf32>
    %cst_26 = arith.constant 1.000000e+00 : f32
    %103 = vector.broadcast %cst_26 : f32 to vector<2x128xf32>
    %104 = arith.addf %103, %102 : vector<2x128xf32>
    %105 = arith.divf %103, %104 : vector<2x128xf32>
    %106 = math.tanh %100 : vector<2x128xf32>
    %107 = vector.extract_strided_slice %105 {offsets = [0, 0], sizes = [2, 32], strides = [1, 1]} : vector<2x128xf32> to vector<2x32xf32>
    %108 = vector.extract_strided_slice %105 {offsets = [0, 32], sizes = [2, 32], strides = [1, 1]} : vector<2x128xf32> to vector<2x32xf32>
    %109 = vector.extract_strided_slice %106 {offsets = [0, 64], sizes = [2, 32], strides = [1, 1]} : vector<2x128xf32> to vector<2x32xf32>
    %110 = vector.extract_strided_slice %105 {offsets = [0, 96], sizes = [2, 32], strides = [1, 1]} : vector<2x128xf32> to vector<2x32xf32>
    %111 = arith.mulf %108, %72 : vector<2x32xf32>
    %112 = arith.mulf %107, %109 : vector<2x32xf32>
    %113 = arith.addf %111, %112 : vector<2x32xf32>
    %114 = math.tanh %113 : vector<2x32xf32>
    %115 = arith.mulf %110, %114 : vector<2x32xf32>
    %cst_27 = arith.constant dense<0.000000e+00> : vector<2x128xf32>
    %116 = tpu.matmul %115, %11, %cst_27 {dimension_numbers = #tpu.dot_dimension_numbers<[1], [0], [0], [1], [0, 0, 1, 1], [], []>} : vector<2x32xf32>, vector<32x128xf32>, vector<2x128xf32> -> vector<2x128xf32>
    %cst_28 = arith.constant dense<0.000000e+00> : vector<2x128xf32>
    %117 = tpu.matmul %94, %12, %cst_28 {dimension_numbers = #tpu.dot_dimension_numbers<[1], [0], [0], [1], [0, 0, 1, 1], [], []>} : vector<2x32xf32>, vector<32x128xf32>, vector<2x128xf32> -> vector<2x128xf32>
    %118 = arith.addf %116, %117 : vector<2x128xf32>
    %119 = vector.broadcast %14 : vector<1x128xf32> to vector<2x128xf32>
    %120 = arith.addf %118, %119 : vector<2x128xf32>
    %121 = arith.negf %120 : vector<2x128xf32>
    %122 = math.exp %121 : vector<2x128xf32>
    %cst_29 = arith.constant 1.000000e+00 : f32
    %123 = vector.broadcast %cst_29 : f32 to vector<2x128xf32>
    %124 = arith.addf %123, %122 : vector<2x128xf32>
    %125 = arith.divf %123, %124 : vector<2x128xf32>
    %126 = math.tanh %120 : vector<2x128xf32>
    %127 = vector.extract_strided_slice %125 {offsets = [0, 0], sizes = [2, 32], strides = [1, 1]} : vector<2x128xf32> to vector<2x32xf32>
    %128 = vector.extract_strided_slice %125 {offsets = [0, 32], sizes = [2, 32], strides = [1, 1]} : vector<2x128xf32> to vector<2x32xf32>
    %129 = vector.extract_strided_slice %126 {offsets = [0, 64], sizes = [2, 32], strides = [1, 1]} : vector<2x128xf32> to vector<2x32xf32>
    %130 = vector.extract_strided_slice %125 {offsets = [0, 96], sizes = [2, 32], strides = [1, 1]} : vector<2x128xf32> to vector<2x32xf32>
    %131 = arith.mulf %128, %92 : vector<2x32xf32>
    %132 = arith.mulf %127, %129 : vector<2x32xf32>
    %133 = arith.addf %131, %132 : vector<2x32xf32>
    %134 = math.tanh %133 : vector<2x32xf32>
    %135 = arith.mulf %130, %134 : vector<2x32xf32>
    %cst_30 = arith.constant dense<0.000000e+00> : vector<2x32xf32>
    %136 = tpu.matmul %135, %13, %cst_30 {dimension_numbers = #tpu.dot_dimension_numbers<[1], [0], [0], [1], [0, 0, 1, 1], [], []>} : vector<2x32xf32>, vector<32x32xf32>, vector<2x32xf32> -> vector<2x32xf32>
    %137 = vector.broadcast %15 : vector<1x32xf32> to vector<2x32xf32>
    %138 = arith.addf %136, %137 : vector<2x32xf32>
    %139 = vector.extract_strided_slice %5 {offsets = [0, 512], sizes = [2, 128], strides = [1, 1]} : vector<2x1152xf32> to vector<2x128xf32>
    %cst_31 = arith.constant dense<0.000000e+00> : vector<2x128xf32>
    %140 = tpu.matmul %115, %10, %cst_31 {dimension_numbers = #tpu.dot_dimension_numbers<[1], [0], [0], [1], [0, 0, 1, 1], [], []>} : vector<2x32xf32>, vector<32x128xf32>, vector<2x128xf32> -> vector<2x128xf32>
    %141 = arith.addf %139, %140 : vector<2x128xf32>
    %142 = arith.negf %141 : vector<2x128xf32>
    %143 = math.exp %142 : vector<2x128xf32>
    %cst_32 = arith.constant 1.000000e+00 : f32
    %144 = vector.broadcast %cst_32 : f32 to vector<2x128xf32>
    %145 = arith.addf %144, %143 : vector<2x128xf32>
    %146 = arith.divf %144, %145 : vector<2x128xf32>
    %147 = math.tanh %141 : vector<2x128xf32>
    %148 = vector.extract_strided_slice %146 {offsets = [0, 0], sizes = [2, 32], strides = [1, 1]} : vector<2x128xf32> to vector<2x32xf32>
    %149 = vector.extract_strided_slice %146 {offsets = [0, 32], sizes = [2, 32], strides = [1, 1]} : vector<2x128xf32> to vector<2x32xf32>
    %150 = vector.extract_strided_slice %147 {offsets = [0, 64], sizes = [2, 32], strides = [1, 1]} : vector<2x128xf32> to vector<2x32xf32>
    %151 = vector.extract_strided_slice %146 {offsets = [0, 96], sizes = [2, 32], strides = [1, 1]} : vector<2x128xf32> to vector<2x32xf32>
    %152 = arith.mulf %149, %113 : vector<2x32xf32>
    %153 = arith.mulf %148, %150 : vector<2x32xf32>
    %154 = arith.addf %152, %153 : vector<2x32xf32>
    %155 = math.tanh %154 : vector<2x32xf32>
    %156 = arith.mulf %151, %155 : vector<2x32xf32>
    %cst_33 = arith.constant dense<0.000000e+00> : vector<2x128xf32>
    %157 = tpu.matmul %156, %11, %cst_33 {dimension_numbers = #tpu.dot_dimension_numbers<[1], [0], [0], [1], [0, 0, 1, 1], [], []>} : vector<2x32xf32>, vector<32x128xf32>, vector<2x128xf32> -> vector<2x128xf32>
    %cst_34 = arith.constant dense<0.000000e+00> : vector<2x128xf32>
    %158 = tpu.matmul %135, %12, %cst_34 {dimension_numbers = #tpu.dot_dimension_numbers<[1], [0], [0], [1], [0, 0, 1, 1], [], []>} : vector<2x32xf32>, vector<32x128xf32>, vector<2x128xf32> -> vector<2x128xf32>
    %159 = arith.addf %157, %158 : vector<2x128xf32>
    %160 = vector.broadcast %14 : vector<1x128xf32> to vector<2x128xf32>
    %161 = arith.addf %159, %160 : vector<2x128xf32>
    %162 = arith.negf %161 : vector<2x128xf32>
    %163 = math.exp %162 : vector<2x128xf32>
    %cst_35 = arith.constant 1.000000e+00 : f32
    %164 = vector.broadcast %cst_35 : f32 to vector<2x128xf32>
    %165 = arith.addf %164, %163 : vector<2x128xf32>
    %166 = arith.divf %164, %165 : vector<2x128xf32>
    %167 = math.tanh %161 : vector<2x128xf32>
    %168 = vector.extract_strided_slice %166 {offsets = [0, 0], sizes = [2, 32], strides = [1, 1]} : vector<2x128xf32> to vector<2x32xf32>
    %169 = vector.extract_strided_slice %166 {offsets = [0, 32], sizes = [2, 32], strides = [1, 1]} : vector<2x128xf32> to vector<2x32xf32>
    %170 = vector.extract_strided_slice %167 {offsets = [0, 64], sizes = [2, 32], strides = [1, 1]} : vector<2x128xf32> to vector<2x32xf32>
    %171 = vector.extract_strided_slice %166 {offsets = [0, 96], sizes = [2, 32], strides = [1, 1]} : vector<2x128xf32> to vector<2x32xf32>
    %172 = arith.mulf %169, %133 : vector<2x32xf32>
    %173 = arith.mulf %168, %170 : vector<2x32xf32>
    %174 = arith.addf %172, %173 : vector<2x32xf32>
    %175 = math.tanh %174 : vector<2x32xf32>
    %176 = arith.mulf %171, %175 : vector<2x32xf32>
    %cst_36 = arith.constant dense<0.000000e+00> : vector<2x32xf32>
    %177 = tpu.matmul %176, %13, %cst_36 {dimension_numbers = #tpu.dot_dimension_numbers<[1], [0], [0], [1], [0, 0, 1, 1], [], []>} : vector<2x32xf32>, vector<32x32xf32>, vector<2x32xf32> -> vector<2x32xf32>
    %178 = vector.broadcast %15 : vector<1x32xf32> to vector<2x32xf32>
    %179 = arith.addf %177, %178 : vector<2x32xf32>
    %180 = vector.extract_strided_slice %5 {offsets = [0, 640], sizes = [2, 128], strides = [1, 1]} : vector<2x1152xf32> to vector<2x128xf32>
    %cst_37 = arith.constant dense<0.000000e+00> : vector<2x128xf32>
    %181 = tpu.matmul %156, %10, %cst_37 {dimension_numbers = #tpu.dot_dimension_numbers<[1], [0], [0], [1], [0, 0, 1, 1], [], []>} : vector<2x32xf32>, vector<32x128xf32>, vector<2x128xf32> -> vector<2x128xf32>
    %182 = arith.addf %180, %181 : vector<2x128xf32>
    %183 = arith.negf %182 : vector<2x128xf32>
    %184 = math.exp %183 : vector<2x128xf32>
    %cst_38 = arith.constant 1.000000e+00 : f32
    %185 = vector.broadcast %cst_38 : f32 to vector<2x128xf32>
    %186 = arith.addf %185, %184 : vector<2x128xf32>
    %187 = arith.divf %185, %186 : vector<2x128xf32>
    %188 = math.tanh %182 : vector<2x128xf32>
    %189 = vector.extract_strided_slice %187 {offsets = [0, 0], sizes = [2, 32], strides = [1, 1]} : vector<2x128xf32> to vector<2x32xf32>
    %190 = vector.extract_strided_slice %187 {offsets = [0, 32], sizes = [2, 32], strides = [1, 1]} : vector<2x128xf32> to vector<2x32xf32>
    %191 = vector.extract_strided_slice %188 {offsets = [0, 64], sizes = [2, 32], strides = [1, 1]} : vector<2x128xf32> to vector<2x32xf32>
    %192 = vector.extract_strided_slice %187 {offsets = [0, 96], sizes = [2, 32], strides = [1, 1]} : vector<2x128xf32> to vector<2x32xf32>
    %193 = arith.mulf %190, %154 : vector<2x32xf32>
    %194 = arith.mulf %189, %191 : vector<2x32xf32>
    %195 = arith.addf %193, %194 : vector<2x32xf32>
    %196 = math.tanh %195 : vector<2x32xf32>
    %197 = arith.mulf %192, %196 : vector<2x32xf32>
    %cst_39 = arith.constant dense<0.000000e+00> : vector<2x128xf32>
    %198 = tpu.matmul %197, %11, %cst_39 {dimension_numbers = #tpu.dot_dimension_numbers<[1], [0], [0], [1], [0, 0, 1, 1], [], []>} : vector<2x32xf32>, vector<32x128xf32>, vector<2x128xf32> -> vector<2x128xf32>
    %cst_40 = arith.constant dense<0.000000e+00> : vector<2x128xf32>
    %199 = tpu.matmul %176, %12, %cst_40 {dimension_numbers = #tpu.dot_dimension_numbers<[1], [0], [0], [1], [0, 0, 1, 1], [], []>} : vector<2x32xf32>, vector<32x128xf32>, vector<2x128xf32> -> vector<2x128xf32>
    %200 = arith.addf %198, %199 : vector<2x128xf32>
    %201 = vector.broadcast %14 : vector<1x128xf32> to vector<2x128xf32>
    %202 = arith.addf %200, %201 : vector<2x128xf32>
    %203 = arith.negf %202 : vector<2x128xf32>
    %204 = math.exp %203 : vector<2x128xf32>
    %cst_41 = arith.constant 1.000000e+00 : f32
    %205 = vector.broadcast %cst_41 : f32 to vector<2x128xf32>
    %206 = arith.addf %205, %204 : vector<2x128xf32>
    %207 = arith.divf %205, %206 : vector<2x128xf32>
    %208 = math.tanh %202 : vector<2x128xf32>
    %209 = vector.extract_strided_slice %207 {offsets = [0, 0], sizes = [2, 32], strides = [1, 1]} : vector<2x128xf32> to vector<2x32xf32>
    %210 = vector.extract_strided_slice %207 {offsets = [0, 32], sizes = [2, 32], strides = [1, 1]} : vector<2x128xf32> to vector<2x32xf32>
    %211 = vector.extract_strided_slice %208 {offsets = [0, 64], sizes = [2, 32], strides = [1, 1]} : vector<2x128xf32> to vector<2x32xf32>
    %212 = vector.extract_strided_slice %207 {offsets = [0, 96], sizes = [2, 32], strides = [1, 1]} : vector<2x128xf32> to vector<2x32xf32>
    %213 = arith.mulf %210, %174 : vector<2x32xf32>
    %214 = arith.mulf %209, %211 : vector<2x32xf32>
    %215 = arith.addf %213, %214 : vector<2x32xf32>
    %216 = math.tanh %215 : vector<2x32xf32>
    %217 = arith.mulf %212, %216 : vector<2x32xf32>
    %cst_42 = arith.constant dense<0.000000e+00> : vector<2x32xf32>
    %218 = tpu.matmul %217, %13, %cst_42 {dimension_numbers = #tpu.dot_dimension_numbers<[1], [0], [0], [1], [0, 0, 1, 1], [], []>} : vector<2x32xf32>, vector<32x32xf32>, vector<2x32xf32> -> vector<2x32xf32>
    %219 = vector.broadcast %15 : vector<1x32xf32> to vector<2x32xf32>
    %220 = arith.addf %218, %219 : vector<2x32xf32>
    %221 = vector.extract_strided_slice %5 {offsets = [0, 768], sizes = [2, 128], strides = [1, 1]} : vector<2x1152xf32> to vector<2x128xf32>
    %cst_43 = arith.constant dense<0.000000e+00> : vector<2x128xf32>
    %222 = tpu.matmul %197, %10, %cst_43 {dimension_numbers = #tpu.dot_dimension_numbers<[1], [0], [0], [1], [0, 0, 1, 1], [], []>} : vector<2x32xf32>, vector<32x128xf32>, vector<2x128xf32> -> vector<2x128xf32>
    %223 = arith.addf %221, %222 : vector<2x128xf32>
    %224 = arith.negf %223 : vector<2x128xf32>
    %225 = math.exp %224 : vector<2x128xf32>
    %cst_44 = arith.constant 1.000000e+00 : f32
    %226 = vector.broadcast %cst_44 : f32 to vector<2x128xf32>
    %227 = arith.addf %226, %225 : vector<2x128xf32>
    %228 = arith.divf %226, %227 : vector<2x128xf32>
    %229 = math.tanh %223 : vector<2x128xf32>
    %230 = vector.extract_strided_slice %228 {offsets = [0, 0], sizes = [2, 32], strides = [1, 1]} : vector<2x128xf32> to vector<2x32xf32>
    %231 = vector.extract_strided_slice %228 {offsets = [0, 32], sizes = [2, 32], strides = [1, 1]} : vector<2x128xf32> to vector<2x32xf32>
    %232 = vector.extract_strided_slice %229 {offsets = [0, 64], sizes = [2, 32], strides = [1, 1]} : vector<2x128xf32> to vector<2x32xf32>
    %233 = vector.extract_strided_slice %228 {offsets = [0, 96], sizes = [2, 32], strides = [1, 1]} : vector<2x128xf32> to vector<2x32xf32>
    %234 = arith.mulf %231, %195 : vector<2x32xf32>
    %235 = arith.mulf %230, %232 : vector<2x32xf32>
    %236 = arith.addf %234, %235 : vector<2x32xf32>
    %237 = math.tanh %236 : vector<2x32xf32>
    %238 = arith.mulf %233, %237 : vector<2x32xf32>
    %cst_45 = arith.constant dense<0.000000e+00> : vector<2x128xf32>
    %239 = tpu.matmul %238, %11, %cst_45 {dimension_numbers = #tpu.dot_dimension_numbers<[1], [0], [0], [1], [0, 0, 1, 1], [], []>} : vector<2x32xf32>, vector<32x128xf32>, vector<2x128xf32> -> vector<2x128xf32>
    %cst_46 = arith.constant dense<0.000000e+00> : vector<2x128xf32>
    %240 = tpu.matmul %217, %12, %cst_46 {dimension_numbers = #tpu.dot_dimension_numbers<[1], [0], [0], [1], [0, 0, 1, 1], [], []>} : vector<2x32xf32>, vector<32x128xf32>, vector<2x128xf32> -> vector<2x128xf32>
    %241 = arith.addf %239, %240 : vector<2x128xf32>
    %242 = vector.broadcast %14 : vector<1x128xf32> to vector<2x128xf32>
    %243 = arith.addf %241, %242 : vector<2x128xf32>
    %244 = arith.negf %243 : vector<2x128xf32>
    %245 = math.exp %244 : vector<2x128xf32>
    %cst_47 = arith.constant 1.000000e+00 : f32
    %246 = vector.broadcast %cst_47 : f32 to vector<2x128xf32>
    %247 = arith.addf %246, %245 : vector<2x128xf32>
    %248 = arith.divf %246, %247 : vector<2x128xf32>
    %249 = math.tanh %243 : vector<2x128xf32>
    %250 = vector.extract_strided_slice %248 {offsets = [0, 0], sizes = [2, 32], strides = [1, 1]} : vector<2x128xf32> to vector<2x32xf32>
    %251 = vector.extract_strided_slice %248 {offsets = [0, 32], sizes = [2, 32], strides = [1, 1]} : vector<2x128xf32> to vector<2x32xf32>
    %252 = vector.extract_strided_slice %249 {offsets = [0, 64], sizes = [2, 32], strides = [1, 1]} : vector<2x128xf32> to vector<2x32xf32>
    %253 = vector.extract_strided_slice %248 {offsets = [0, 96], sizes = [2, 32], strides = [1, 1]} : vector<2x128xf32> to vector<2x32xf32>
    %254 = arith.mulf %251, %215 : vector<2x32xf32>
    %255 = arith.mulf %250, %252 : vector<2x32xf32>
    %256 = arith.addf %254, %255 : vector<2x32xf32>
    %257 = math.tanh %256 : vector<2x32xf32>
    %258 = arith.mulf %253, %257 : vector<2x32xf32>
    %cst_48 = arith.constant dense<0.000000e+00> : vector<2x32xf32>
    %259 = tpu.matmul %258, %13, %cst_48 {dimension_numbers = #tpu.dot_dimension_numbers<[1], [0], [0], [1], [0, 0, 1, 1], [], []>} : vector<2x32xf32>, vector<32x32xf32>, vector<2x32xf32> -> vector<2x32xf32>
    %260 = vector.broadcast %15 : vector<1x32xf32> to vector<2x32xf32>
    %261 = arith.addf %259, %260 : vector<2x32xf32>
    %262 = vector.extract_strided_slice %5 {offsets = [0, 896], sizes = [2, 128], strides = [1, 1]} : vector<2x1152xf32> to vector<2x128xf32>
    %cst_49 = arith.constant dense<0.000000e+00> : vector<2x128xf32>
    %263 = tpu.matmul %238, %10, %cst_49 {dimension_numbers = #tpu.dot_dimension_numbers<[1], [0], [0], [1], [0, 0, 1, 1], [], []>} : vector<2x32xf32>, vector<32x128xf32>, vector<2x128xf32> -> vector<2x128xf32>
    %264 = arith.addf %262, %263 : vector<2x128xf32>
    %265 = arith.negf %264 : vector<2x128xf32>
    %266 = math.exp %265 : vector<2x128xf32>
    %cst_50 = arith.constant 1.000000e+00 : f32
    %267 = vector.broadcast %cst_50 : f32 to vector<2x128xf32>
    %268 = arith.addf %267, %266 : vector<2x128xf32>
    %269 = arith.divf %267, %268 : vector<2x128xf32>
    %270 = math.tanh %264 : vector<2x128xf32>
    %271 = vector.extract_strided_slice %269 {offsets = [0, 0], sizes = [2, 32], strides = [1, 1]} : vector<2x128xf32> to vector<2x32xf32>
    %272 = vector.extract_strided_slice %269 {offsets = [0, 32], sizes = [2, 32], strides = [1, 1]} : vector<2x128xf32> to vector<2x32xf32>
    %273 = vector.extract_strided_slice %270 {offsets = [0, 64], sizes = [2, 32], strides = [1, 1]} : vector<2x128xf32> to vector<2x32xf32>
    %274 = vector.extract_strided_slice %269 {offsets = [0, 96], sizes = [2, 32], strides = [1, 1]} : vector<2x128xf32> to vector<2x32xf32>
    %275 = arith.mulf %272, %236 : vector<2x32xf32>
    %276 = arith.mulf %271, %273 : vector<2x32xf32>
    %277 = arith.addf %275, %276 : vector<2x32xf32>
    %278 = math.tanh %277 : vector<2x32xf32>
    %279 = arith.mulf %274, %278 : vector<2x32xf32>
    %cst_51 = arith.constant dense<0.000000e+00> : vector<2x128xf32>
    %280 = tpu.matmul %279, %11, %cst_51 {dimension_numbers = #tpu.dot_dimension_numbers<[1], [0], [0], [1], [0, 0, 1, 1], [], []>} : vector<2x32xf32>, vector<32x128xf32>, vector<2x128xf32> -> vector<2x128xf32>
    %cst_52 = arith.constant dense<0.000000e+00> : vector<2x128xf32>
    %281 = tpu.matmul %258, %12, %cst_52 {dimension_numbers = #tpu.dot_dimension_numbers<[1], [0], [0], [1], [0, 0, 1, 1], [], []>} : vector<2x32xf32>, vector<32x128xf32>, vector<2x128xf32> -> vector<2x128xf32>
    %282 = arith.addf %280, %281 : vector<2x128xf32>
    %283 = vector.broadcast %14 : vector<1x128xf32> to vector<2x128xf32>
    %284 = arith.addf %282, %283 : vector<2x128xf32>
    %285 = arith.negf %284 : vector<2x128xf32>
    %286 = math.exp %285 : vector<2x128xf32>
    %cst_53 = arith.constant 1.000000e+00 : f32
    %287 = vector.broadcast %cst_53 : f32 to vector<2x128xf32>
    %288 = arith.addf %287, %286 : vector<2x128xf32>
    %289 = arith.divf %287, %288 : vector<2x128xf32>
    %290 = math.tanh %284 : vector<2x128xf32>
    %291 = vector.extract_strided_slice %289 {offsets = [0, 0], sizes = [2, 32], strides = [1, 1]} : vector<2x128xf32> to vector<2x32xf32>
    %292 = vector.extract_strided_slice %289 {offsets = [0, 32], sizes = [2, 32], strides = [1, 1]} : vector<2x128xf32> to vector<2x32xf32>
    %293 = vector.extract_strided_slice %290 {offsets = [0, 64], sizes = [2, 32], strides = [1, 1]} : vector<2x128xf32> to vector<2x32xf32>
    %294 = vector.extract_strided_slice %289 {offsets = [0, 96], sizes = [2, 32], strides = [1, 1]} : vector<2x128xf32> to vector<2x32xf32>
    %295 = arith.mulf %292, %256 : vector<2x32xf32>
    %296 = arith.mulf %291, %293 : vector<2x32xf32>
    %297 = arith.addf %295, %296 : vector<2x32xf32>
    %298 = math.tanh %297 : vector<2x32xf32>
    %299 = arith.mulf %294, %298 : vector<2x32xf32>
    %cst_54 = arith.constant dense<0.000000e+00> : vector<2x32xf32>
    %300 = tpu.matmul %299, %13, %cst_54 {dimension_numbers = #tpu.dot_dimension_numbers<[1], [0], [0], [1], [0, 0, 1, 1], [], []>} : vector<2x32xf32>, vector<32x32xf32>, vector<2x32xf32> -> vector<2x32xf32>
    %301 = vector.broadcast %15 : vector<1x32xf32> to vector<2x32xf32>
    %302 = arith.addf %300, %301 : vector<2x32xf32>
    %303 = vector.extract_strided_slice %5 {offsets = [0, 1024], sizes = [2, 128], strides = [1, 1]} : vector<2x1152xf32> to vector<2x128xf32>
    %cst_55 = arith.constant dense<0.000000e+00> : vector<2x128xf32>
    %304 = tpu.matmul %279, %10, %cst_55 {dimension_numbers = #tpu.dot_dimension_numbers<[1], [0], [0], [1], [0, 0, 1, 1], [], []>} : vector<2x32xf32>, vector<32x128xf32>, vector<2x128xf32> -> vector<2x128xf32>
    %305 = arith.addf %303, %304 : vector<2x128xf32>
    %306 = arith.negf %305 : vector<2x128xf32>
    %307 = math.exp %306 : vector<2x128xf32>
    %cst_56 = arith.constant 1.000000e+00 : f32
    %308 = vector.broadcast %cst_56 : f32 to vector<2x128xf32>
    %309 = arith.addf %308, %307 : vector<2x128xf32>
    %310 = arith.divf %308, %309 : vector<2x128xf32>
    %311 = math.tanh %305 : vector<2x128xf32>
    %312 = vector.extract_strided_slice %310 {offsets = [0, 0], sizes = [2, 32], strides = [1, 1]} : vector<2x128xf32> to vector<2x32xf32>
    %313 = vector.extract_strided_slice %310 {offsets = [0, 32], sizes = [2, 32], strides = [1, 1]} : vector<2x128xf32> to vector<2x32xf32>
    %314 = vector.extract_strided_slice %311 {offsets = [0, 64], sizes = [2, 32], strides = [1, 1]} : vector<2x128xf32> to vector<2x32xf32>
    %315 = vector.extract_strided_slice %310 {offsets = [0, 96], sizes = [2, 32], strides = [1, 1]} : vector<2x128xf32> to vector<2x32xf32>
    %316 = arith.mulf %313, %277 : vector<2x32xf32>
    %317 = arith.mulf %312, %314 : vector<2x32xf32>
    %318 = arith.addf %316, %317 : vector<2x32xf32>
    %319 = math.tanh %318 : vector<2x32xf32>
    %320 = arith.mulf %315, %319 : vector<2x32xf32>
    %cst_57 = arith.constant dense<0.000000e+00> : vector<2x128xf32>
    %321 = tpu.matmul %320, %11, %cst_57 {dimension_numbers = #tpu.dot_dimension_numbers<[1], [0], [0], [1], [0, 0, 1, 1], [], []>} : vector<2x32xf32>, vector<32x128xf32>, vector<2x128xf32> -> vector<2x128xf32>
    %cst_58 = arith.constant dense<0.000000e+00> : vector<2x128xf32>
    %322 = tpu.matmul %299, %12, %cst_58 {dimension_numbers = #tpu.dot_dimension_numbers<[1], [0], [0], [1], [0, 0, 1, 1], [], []>} : vector<2x32xf32>, vector<32x128xf32>, vector<2x128xf32> -> vector<2x128xf32>
    %323 = arith.addf %321, %322 : vector<2x128xf32>
    %324 = vector.broadcast %14 : vector<1x128xf32> to vector<2x128xf32>
    %325 = arith.addf %323, %324 : vector<2x128xf32>
    %326 = arith.negf %325 : vector<2x128xf32>
    %327 = math.exp %326 : vector<2x128xf32>
    %cst_59 = arith.constant 1.000000e+00 : f32
    %328 = vector.broadcast %cst_59 : f32 to vector<2x128xf32>
    %329 = arith.addf %328, %327 : vector<2x128xf32>
    %330 = arith.divf %328, %329 : vector<2x128xf32>
    %331 = math.tanh %325 : vector<2x128xf32>
    %332 = vector.extract_strided_slice %330 {offsets = [0, 0], sizes = [2, 32], strides = [1, 1]} : vector<2x128xf32> to vector<2x32xf32>
    %333 = vector.extract_strided_slice %330 {offsets = [0, 32], sizes = [2, 32], strides = [1, 1]} : vector<2x128xf32> to vector<2x32xf32>
    %334 = vector.extract_strided_slice %331 {offsets = [0, 64], sizes = [2, 32], strides = [1, 1]} : vector<2x128xf32> to vector<2x32xf32>
    %335 = vector.extract_strided_slice %330 {offsets = [0, 96], sizes = [2, 32], strides = [1, 1]} : vector<2x128xf32> to vector<2x32xf32>
    %336 = arith.mulf %333, %297 : vector<2x32xf32>
    %337 = arith.mulf %332, %334 : vector<2x32xf32>
    %338 = arith.addf %336, %337 : vector<2x32xf32>
    %339 = math.tanh %338 : vector<2x32xf32>
    %340 = arith.mulf %335, %339 : vector<2x32xf32>
    %cst_60 = arith.constant dense<0.000000e+00> : vector<2x32xf32>
    %341 = tpu.matmul %340, %13, %cst_60 {dimension_numbers = #tpu.dot_dimension_numbers<[1], [0], [0], [1], [0, 0, 1, 1], [], []>} : vector<2x32xf32>, vector<32x32xf32>, vector<2x32xf32> -> vector<2x32xf32>
    %342 = vector.broadcast %15 : vector<1x32xf32> to vector<2x32xf32>
    %343 = arith.addf %341, %342 : vector<2x32xf32>
    %344 = tpu.concatenate %56, %97, %138, %179, %220, %261, %302, %343 in 1 : vector<2x32xf32>, vector<2x32xf32>, vector<2x32xf32>, vector<2x32xf32>, vector<2x32xf32>, vector<2x32xf32>, vector<2x32xf32>, vector<2x32xf32> -> vector<2x256xf32>
    %c0_61 = arith.constant 0 : index
    %c0_62 = arith.constant 0 : index
    %345 = vector.load %arg3[%c0_61, %c0_62] : memref<2x256xf32, #tpu.memory_space<vmem>>, vector<2x256xf32>
    tpu.vector_store %arg3[%c0_61, %c0_62], %344 {strides = array<i32>} : memref<2x256xf32, #tpu.memory_space<vmem>>, vector<2x256xf32>,
    return
  }
}

</mosaic_0001>

<llo_original>
// kernel: emb2seq_forward.1
$region0: #{emb2seq_forward.1}
  #allocation0 [shape = 'u32[]', space=smem, size = 0x4, offset = 0x4, fixed_abs, tag = 'smem constant byte address 0x4 - core index']
  #allocation1 [shape = 'u32[144,128]{1,0:T(1,128)}', space=vmem, size = 0x12000, scoped, tag = 'internal scratch']
  %s0 = inlined_call_operand.hbm [shape: f32[2,32], index: 0, kind: input, shape index: {}]
  %s1 = inlined_call_operand.hbm [shape: f32[32,1568], index: 1, kind: input, shape index: {}]
  %s2 = inlined_call_operand.hbm [shape: f32[1,1312], index: 2, kind: input, shape index: {}]
  %s3 = inlined_call_operand.vmem [shape: f32[2,256], index: 3, kind: output, shape index: {}]
  %s4 = sld [smem:[#allocation0]]
  $region34: #{emb2seq_forward.1} parent=0
    _
  %s6 = ssub.s32 1, %s4
  %s7 = scalar_select 0, %s6, %s4
  $region1: #{emb2seq_forward.1} parent=0
    #allocation2 [shape = 'u8[1024]{0}', space=vmem, size = 0x400, scoped, tag = 'input window, operand 0, single buffered']
    #allocation3 [shape = 's32[1]{0}', space=sflag, size = 0x4, scoped, tag = 'scoped memory for emb2seq_forward.1']
    #allocation4 [shape = 'u8[212992]{0}', space=vmem, size = 0x34000, scoped, tag = 'input window, operand 1, single buffered']
    #allocation5 [shape = 's32[1]{0}', space=sflag, size = 0x4, scoped, tag = 'scoped memory for emb2seq_forward.1']
    #allocation6 [shape = 'u8[5632]{0}', space=vmem, size = 0x1800, scoped, tag = 'input window, operand 2, single buffered']
    %8 = vsyncpa [#allocation3], 0
    %9 = vsyncpa [#allocation5], 0
    // Predicated region
    $region2: #{emb2seq_forward.1} parent=1 // pred_check
      _
    $region3: #{emb2seq_forward.1} parent=1 // pred_check_branch
      %11 = sbr.rel (0) target = $region5
    $region4: #{emb2seq_forward.1} parent=1 // pred_region
      %s13 = ssub.s32 32, 32
      %14 = vsyncadd [#allocation3], %s13
      %s16 = sshll.u32 [#allocation2], 4
      %s17 = int_to_ptr.vmem [resolvable:$true] %s16
      %19 = dma.hbm_to_vmem [thread:$0]  %s0, 32, %s17, [#allocation3]
    $region5: #{emb2seq_forward.1} parent=1 // pred_fallthru
      _
    // Predicated region
    $region6: #{emb2seq_forward.1} parent=1 // pred_check
      _
    $region7: #{emb2seq_forward.1} parent=1 // pred_check_branch
      %21 = sbr.rel (0) target = $region9
    $region8: #{emb2seq_forward.1} parent=1 // pred_region
      %s23 = ssub.s32 6656, 6656
      %24 = vsyncadd [#allocation5], %s23
      %s25 = sshll.u32 [#allocation4], 4
      %s26 = int_to_ptr.vmem [resolvable:$true] %s25
      %31 = dma.hbm_to_vmem [thread:$0]  %s1, 6656, %s26, [#allocation5], 1664, 1664, 104
    $region9: #{emb2seq_forward.1} parent=1 // pred_fallthru
      _
    // Predicated region
    $region10: #{emb2seq_forward.1} parent=1 // pred_check
      _
    $region11: #{emb2seq_forward.1} parent=1 // pred_check_branch
      %33 = sbr.rel (0) target = $region13
    $region12: #{emb2seq_forward.1} parent=1 // pred_region
      %s35 = ssub.s32 176, 176
      %36 = vsyncadd [#allocation5], %s35
      %s38 = sshll.u32 [#allocation6], 4
      %s39 = int_to_ptr.vmem [resolvable:$true] %s38
      %41 = dma.hbm_to_vmem [thread:$0]  %s2, 176, %s39, [#allocation5]
    $region13: #{emb2seq_forward.1} parent=1 // pred_fallthru
      _
    // Predicated region
    $region14: #{emb2seq_forward.1} parent=1 // pred_check
      _
    $region15: #{emb2seq_forward.1} parent=1 // pred_check_branch
      %43 = sbr.rel (0) target = $region17
    $region16: #{emb2seq_forward.1} parent=1 // pred_region
      %44 = dma.done [#allocation3], 32
    $region17: #{emb2seq_forward.1} parent=1 // pred_fallthru
      _
    // Predicated region
    $region18: #{emb2seq_forward.1} parent=1 // pred_check
      _
    $region19: #{emb2seq_forward.1} parent=1 // pred_check_branch
      %46 = sbr.rel (0) target = $region21
    $region20: #{emb2seq_forward.1} parent=1 // pred_region
      %47 = dma.done [#allocation5], 6656
    $region21: #{emb2seq_forward.1} parent=1 // pred_fallthru
      _
    // Predicated region
    $region22: #{emb2seq_forward.1} parent=1 // pred_check
      _
    $region23: #{emb2seq_forward.1} parent=1 // pred_check_branch
      %49 = sbr.rel (0) target = $region25
    $region24: #{emb2seq_forward.1} parent=1 // pred_region
      %50 = dma.done [#allocation5], 176
    $region25: #{emb2seq_forward.1} parent=1 // pred_fallthru
      _
    %v51 = vld [vmem:[#allocation2] sm:$0x3]
    %v52 = vld [vmem:[#allocation4] sm:$0xff]
    %v53 = vld [vmem:[#allocation4 + $0x8] sm:$0xff]
    %v54 = vld [vmem:[#allocation4 + $0x10] sm:$0xff]
    %v55 = vld [vmem:[#allocation4 + $0x18] sm:$0xff]
    %v56 = vld [vmem:[#allocation4 + $0x20] sm:$0xff]
    %v57 = vld [vmem:[#allocation4 + $0x28] sm:$0xff]
    %v58 = vld [vmem:[#allocation4 + $0x30] sm:$0xff]
    %v59 = vld [vmem:[#allocation4 + $0x38] sm:$0xff]
    %v60 = vld [vmem:[#allocation4 + $0x40] sm:$0xff]
    %v61 = vld [vmem:[#allocation4 + $0x68] sm:$0xff]
    %v62 = vld [vmem:[#allocation4 + $0x70] sm:$0xff]
    %v63 = vld [vmem:[#allocation4 + $0x78] sm:$0xff]
    %v64 = vld [vmem:[#allocation4 + $0x80] sm:$0xff]
    %v65 = vld [vmem:[#allocation4 + $0x88] sm:$0xff]
    %v66 = vld [vmem:[#allocation4 + $0x90] sm:$0xff]
    %v67 = vld [vmem:[#allocation4 + $0x98] sm:$0xff]
    %v68 = vld [vmem:[#allocation4 + $0xa0] sm:$0xff]
    %v69 = vld [vmem:[#allocation4 + $0xa8] sm:$0xff]
    %v70 = vld [vmem:[#allocation4 + $0xd0] sm:$0xff]
    %v71 = vld [vmem:[#allocation4 + $0xd8] sm:$0xff]
    %v72 = vld [vmem:[#allocation4 + $0xe0] sm:$0xff]
    %v73 = vld [vmem:[#allocation4 + $0xe8] sm:$0xff]
    %v74 = vld [vmem:[#allocation4 + $0xf0] sm:$0xff]
    %v75 = vld [vmem:[#allocation4 + $0xf8] sm:$0xff]
    %v76 = vld [vmem:[#allocation4 + $0x100] sm:$0xff]
    %v77 = vld [vmem:[#allocation4 + $0x108] sm:$0xff]
    %v78 = vld [vmem:[#allocation4 + $0x110] sm:$0xff]
    %v79 = vld [vmem:[#allocation4 + $0x138] sm:$0xff]
    %v80 = vld [vmem:[#allocation4 + $0x140] sm:$0xff]
    %v81 = vld [vmem:[#allocation4 + $0x148] sm:$0xff]
    %v82 = vld [vmem:[#allocation4 + $0x150] sm:$0xff]
    %v83 = vld [vmem:[#allocation4 + $0x158] sm:$0xff]
    %v84 = vld [vmem:[#allocation4 + $0x160] sm:$0xff]
    %v85 = vld [vmem:[#allocation4 + $0x168] sm:$0xff]
    %v86 = vld [vmem:[#allocation4 + $0x170] sm:$0xff]
    %v87 = vld [vmem:[#allocation4 + $0x178] sm:$0xff]
    %v88 = vld [vmem:[#allocation6] sm:$0xff]
    %v89 = vld [vmem:[#allocation6 + $0x8] sm:$0x1]
    %v92 = vlaneseq
    %v93 = vshrl.u32 %v92, 7
    %v94 = vsub.s32 0, %v93
    %v95 = vrot.slane %v88, %v94
    %v96 = vlaneseq
    %v97 = vshrl.u32 %v96, 7
    %v98 = vsub.s32 1, %v97
    %v99 = vrot.slane %v88, %v98
    %v100 = vlaneseq
    %v101 = vshrl.u32 %v100, 7
    %v102 = vsub.s32 2, %v101
    %v103 = vrot.slane %v88, %v102
    %v104 = vlaneseq
    %v105 = vshrl.u32 %v104, 7
    %v106 = vsub.s32 3, %v105
    %v107 = vrot.slane %v88, %v106
    %v108 = vlaneseq
    %v109 = vshrl.u32 %v108, 7
    %v110 = vsub.s32 4, %v109
    %v111 = vrot.slane %v88, %v110
    %v112 = vlaneseq
    %v113 = vshrl.u32 %v112, 7
    %v114 = vsub.s32 5, %v113
    %v115 = vrot.slane %v88, %v114
    %v116 = vlaneseq
    %v117 = vshrl.u32 %v116, 7
    %v118 = vsub.s32 6, %v117
    %v119 = vrot.slane %v88, %v118
    %v120 = vlaneseq
    %v121 = vshrl.u32 %v120, 7
    %v122 = vsub.s32 7, %v121
    %v123 = vrot.slane %v88, %v122
    %v124 = vlaneseq
    %v125 = vshrl.u32 %v124, 7
    %v126 = vsub.s32 0, %v125
    %v127 = vrot.slane %v89, %v126
    %vm137 = vcmask 261120
    %v139 = vsel %vm137, %v51, 0
    %141 = vmatprep.subr.mxu0 %v53
    %142 = vmatpush1.msra.mxu0 %v52
    %143 = vmatprep.subr.mxu0 %v62
    %144 = vmatpush1.msra.mxu0 %v61
    %145 = vmatprep.subr.mxu0 %v71
    %146 = vmatpush1.msra.mxu0 %v70
    %147 = vmatprep.subr.mxu0 %v80
    %148 = vmatpush1.msra.mxu0 %v79
    %149 = vmatprep.subr.mxu0 0.0
    %150 = vmatpush1.msra.mxu0 0.0
    %151 = vmatprep.subr.mxu0 0.0
    %152 = vmatpush1.msra.mxu0 0.0
    %153 = vmatprep.subr.mxu0 0.0
    %154 = vmatpush1.msra.mxu0 0.0
    %155 = vmatprep.subr.mxu0 0.0
    %156 = vmatpush1.msra.mxu0 0.0
    %157 = vmatprep.subr.mxu0 0.0
    %158 = vmatpush1.msra.mxu0 0.0
    %159 = vmatprep.subr.mxu0 0.0
    %160 = vmatpush1.msra.mxu0 0.0
    %161 = vmatprep.subr.mxu0 0.0
    %162 = vmatpush1.msra.mxu0 0.0
    %163 = vmatprep.subr.mxu0 0.0
    %164 = vmatpush1.msra.mxu0 0.0
    %165 = vmatprep.subr.mxu0 0.0
    %166 = vmatpush1.msra.mxu0 0.0
    %167 = vmatprep.subr.mxu0 0.0
    %168 = vmatpush1.msra.mxu0 0.0
    %169 = vmatprep.subr.mxu0 0.0
    %170 = vmatpush1.msra.mxu0 0.0
    %171 = vmatprep.subr.mxu0 0.0
    %172 = vmatpush1.msra.mxu0 0.0
    %173 = vmatprep.subr.mxu0 0.0
    %174 = vmatpush1.msra.mxu0 0.0
    %175 = vmatprep.subr.mxu0 0.0
    %176 = vmatpush1.msra.mxu0 0.0
    %177 = vmatprep.subr.mxu0 0.0
    %178 = vmatpush1.msra.mxu0 0.0
    %179 = vmatprep.subr.mxu0 0.0
    %180 = vmatpush1.msra.mxu0 0.0
    %181 = vmatprep.subr.mxu0 0.0
    %182 = vmatpush1.msra.mxu0 0.0
    %183 = vmatprep.subr.mxu0 0.0
    %184 = vmatpush1.msra.mxu0 0.0
    %185 = vmatprep.subr.mxu0 0.0
    %186 = vmatpush1.msra.mxu0 0.0
    %187 = vmatprep.subr.mxu0 0.0
    %188 = vmatpush1.msra.mxu0 0.0
    %189 = vmatprep.subr.mxu0 0.0
    %190 = vmatpush1.msra.mxu0 0.0
    %191 = vmatprep.subr.mxu0 0.0
    %192 = vmatpush1.msra.mxu0 0.0
    %193 = vmatprep.subr.mxu0 0.0
    %194 = vmatpush1.msra.mxu0 0.0
    %195 = vmatprep.subr.mxu0 0.0
    %196 = vmatpush1.msra.mxu0 0.0
    %197 = vmatprep.subr.mxu0 0.0
    %198 = vmatpush1.msra.mxu0 0.0
    %199 = vmatprep.subr.mxu0 0.0
    %200 = vmatpush1.msra.mxu0 0.0
    %201 = vmatprep.subr.mxu0 0.0
    %202 = vmatpush1.msra.mxu0 0.0
    %203 = vmatprep.subr.mxu0 0.0
    %204 = vmatpush1.msra.mxu0 0.0
    %205 = vmatprep.mubr.f32.mxu0 0.0
    %206 = vmatmul.mubr.f32.gmra.mrb[0].mxu0 %v139
    %v207 = vpop.f32.mrb[0].mxu0
    %v208 = vadd.f32 %v95, %v207
    %v209 = vpop.f32.mrb[0].mxu0
    %v210 = vadd.f32 %v99, %v209
    %211 = vdwg.mxu0
    %212 = vmatprep.subr.mxu0 %v55
    %213 = vmatpush1.msra.mxu0 %v54
    %214 = vmatprep.subr.mxu0 %v64
    %215 = vmatpush1.msra.mxu0 %v63
    %216 = vmatprep.subr.mxu0 %v73
    %217 = vmatpush1.msra.mxu0 %v72
    %218 = vmatprep.subr.mxu0 %v82
    %219 = vmatpush1.msra.mxu0 %v81
    %220 = vmatprep.subr.mxu0 0.0
    %221 = vmatpush1.msra.mxu0 0.0
    %222 = vmatprep.subr.mxu0 0.0
    %223 = vmatpush1.msra.mxu0 0.0
    %224 = vmatprep.subr.mxu0 0.0
    %225 = vmatpush1.msra.mxu0 0.0
    %226 = vmatprep.subr.mxu0 0.0
    %227 = vmatpush1.msra.mxu0 0.0
    %228 = vmatprep.subr.mxu0 0.0
    %229 = vmatpush1.msra.mxu0 0.0
    %230 = vmatprep.subr.mxu0 0.0
    %231 = vmatpush1.msra.mxu0 0.0
    %232 = vmatprep.subr.mxu0 0.0
    %233 = vmatpush1.msra.mxu0 0.0
    %234 = vmatprep.subr.mxu0 0.0
    %235 = vmatpush1.msra.mxu0 0.0
    %236 = vmatprep.subr.mxu0 0.0
    %237 = vmatpush1.msra.mxu0 0.0
    %238 = vmatprep.subr.mxu0 0.0
    %239 = vmatpush1.msra.mxu0 0.0
    %240 = vmatprep.subr.mxu0 0.0
    %241 = vmatpush1.msra.mxu0 0.0
    %242 = vmatprep.subr.mxu0 0.0
    %243 = vmatpush1.msra.mxu0 0.0
    %244 = vmatprep.subr.mxu0 0.0
    %245 = vmatpush1.msra.mxu0 0.0
    %246 = vmatprep.subr.mxu0 0.0
    %247 = vmatpush1.msra.mxu0 0.0
    %248 = vmatprep.subr.mxu0 0.0
    %249 = vmatpush1.msra.mxu0 0.0
    %250 = vmatprep.subr.mxu0 0.0
    %251 = vmatpush1.msra.mxu0 0.0
    %252 = vmatprep.subr.mxu0 0.0
    %253 = vmatpush1.msra.mxu0 0.0
    %254 = vmatprep.subr.mxu0 0.0
    %255 = vmatpush1.msra.mxu0 0.0
    %256 = vmatprep.subr.mxu0 0.0
    %257 = vmatpush1.msra.mxu0 0.0
    %258 = vmatprep.subr.mxu0 0.0
    %259 = vmatpush1.msra.mxu0 0.0
    %260 = vmatprep.subr.mxu0 0.0
    %261 = vmatpush1.msra.mxu0 0.0
    %262 = vmatprep.subr.mxu0 0.0
    %263 = vmatpush1.msra.mxu0 0.0
    %264 = vmatprep.subr.mxu0 0.0
    %265 = vmatpush1.msra.mxu0 0.0
    %266 = vmatprep.subr.mxu0 0.0
    %267 = vmatpush1.msra.mxu0 0.0
    %268 = vmatprep.subr.mxu0 0.0
    %269 = vmatpush1.msra.mxu0 0.0
    %270 = vmatprep.subr.mxu0 0.0
    %271 = vmatpush1.msra.mxu0 0.0
    %272 = vmatprep.subr.mxu0 0.0
    %273 = vmatpush1.msra.mxu0 0.0
    %274 = vmatprep.subr.mxu0 0.0
    %275 = vmatpush1.msra.mxu0 0.0
    %276 = vmatprep.mubr.f32.mxu0 0.0
    %277 = vmatmul.mubr.f32.gmra.mrb[0].mxu0 %v139
    %v278 = vpop.f32.mrb[0].mxu0
    %v279 = vadd.f32 %v103, %v278
    %v280 = vpop.f32.mrb[0].mxu0
    %v281 = vadd.f32 %v107, %v280
    %282 = vdwg.mxu0
    %283 = vmatprep.subr.mxu0 %v57
    %284 = vmatpush1.msra.mxu0 %v56
    %285 = vmatprep.subr.mxu0 %v66
    %286 = vmatpush1.msra.mxu0 %v65
    %287 = vmatprep.subr.mxu0 %v75
    %288 = vmatpush1.msra.mxu0 %v74
    %289 = vmatprep.subr.mxu0 %v84
    %290 = vmatpush1.msra.mxu0 %v83
    %291 = vmatprep.subr.mxu0 0.0
    %292 = vmatpush1.msra.mxu0 0.0
    %293 = vmatprep.subr.mxu0 0.0
    %294 = vmatpush1.msra.mxu0 0.0
    %295 = vmatprep.subr.mxu0 0.0
    %296 = vmatpush1.msra.mxu0 0.0
    %297 = vmatprep.subr.mxu0 0.0
    %298 = vmatpush1.msra.mxu0 0.0
    %299 = vmatprep.subr.mxu0 0.0
    %300 = vmatpush1.msra.mxu0 0.0
    %301 = vmatprep.subr.mxu0 0.0
    %302 = vmatpush1.msra.mxu0 0.0
    %303 = vmatprep.subr.mxu0 0.0
    %304 = vmatpush1.msra.mxu0 0.0
    %305 = vmatprep.subr.mxu0 0.0
    %306 = vmatpush1.msra.mxu0 0.0
    %307 = vmatprep.subr.mxu0 0.0
    %308 = vmatpush1.msra.mxu0 0.0
    %309 = vmatprep.subr.mxu0 0.0
    %310 = vmatpush1.msra.mxu0 0.0
    %311 = vmatprep.subr.mxu0 0.0
    %312 = vmatpush1.msra.mxu0 0.0
    %313 = vmatprep.subr.mxu0 0.0
    %314 = vmatpush1.msra.mxu0 0.0
    %315 = vmatprep.subr.mxu0 0.0
    %316 = vmatpush1.msra.mxu0 0.0
    %317 = vmatprep.subr.mxu0 0.0
    %318 = vmatpush1.msra.mxu0 0.0
    %319 = vmatprep.subr.mxu0 0.0
    %320 = vmatpush1.msra.mxu0 0.0
    %321 = vmatprep.subr.mxu0 0.0
    %322 = vmatpush1.msra.mxu0 0.0
    %323 = vmatprep.subr.mxu0 0.0
    %324 = vmatpush1.msra.mxu0 0.0
    %325 = vmatprep.subr.mxu0 0.0
    %326 = vmatpush1.msra.mxu0 0.0
    %327 = vmatprep.subr.mxu0 0.0
    %328 = vmatpush1.msra.mxu0 0.0
    %329 = vmatprep.subr.mxu0 0.0
    %330 = vmatpush1.msra.mxu0 0.0
    %331 = vmatprep.subr.mxu0 0.0
    %332 = vmatpush1.msra.mxu0 0.0
    %333 = vmatprep.subr.mxu0 0.0
    %334 = vmatpush1.msra.mxu0 0.0
    %335 = vmatprep.subr.mxu0 0.0
    %336 = vmatpush1.msra.mxu0 0.0
    %337 = vmatprep.subr.mxu0 0.0
    %338 = vmatpush1.msra.mxu0 0.0
    %339 = vmatprep.subr.mxu0 0.0
    %340 = vmatpush1.msra.mxu0 0.0
    %341 = vmatprep.subr.mxu0 0.0
    %342 = vmatpush1.msra.mxu0 0.0
    %343 = vmatprep.subr.mxu0 0.0
    %344 = vmatpush1.msra.mxu0 0.0
    %345 = vmatprep.subr.mxu0 0.0
    %346 = vmatpush1.msra.mxu0 0.0
    %347 = vmatprep.mubr.f32.mxu0 0.0
    %348 = vmatmul.mubr.f32.gmra.mrb[0].mxu0 %v139
    %v349 = vpop.f32.mrb[0].mxu0
    %v350 = vadd.f32 %v111, %v349
    %v351 = vpop.f32.mrb[0].mxu0
    %v352 = vadd.f32 %v115, %v351
    %353 = vdwg.mxu0
    %354 = vmatprep.subr.mxu0 %v59
    %355 = vmatpush1.msra.mxu0 %v58
    %356 = vmatprep.subr.mxu0 %v68
    %357 = vmatpush1.msra.mxu0 %v67
    %358 = vmatprep.subr.mxu0 %v77
    %359 = vmatpush1.msra.mxu0 %v76
    %360 = vmatprep.subr.mxu0 %v86
    %361 = vmatpush1.msra.mxu0 %v85
    %362 = vmatprep.subr.mxu0 0.0
    %363 = vmatpush1.msra.mxu0 0.0
    %364 = vmatprep.subr.mxu0 0.0
    %365 = vmatpush1.msra.mxu0 0.0
    %366 = vmatprep.subr.mxu0 0.0
    %367 = vmatpush1.msra.mxu0 0.0
    %368 = vmatprep.subr.mxu0 0.0
    %369 = vmatpush1.msra.mxu0 0.0
    %370 = vmatprep.subr.mxu0 0.0
    %371 = vmatpush1.msra.mxu0 0.0
    %372 = vmatprep.subr.mxu0 0.0
    %373 = vmatpush1.msra.mxu0 0.0
    %374 = vmatprep.subr.mxu0 0.0
    %375 = vmatpush1.msra.mxu0 0.0
    %376 = vmatprep.subr.mxu0 0.0
    %377 = vmatpush1.msra.mxu0 0.0
    %378 = vmatprep.subr.mxu0 0.0
    %379 = vmatpush1.msra.mxu0 0.0
    %380 = vmatprep.subr.mxu0 0.0
    %381 = vmatpush1.msra.mxu0 0.0
    %382 = vmatprep.subr.mxu0 0.0
    %383 = vmatpush1.msra.mxu0 0.0
    %384 = vmatprep.subr.mxu0 0.0
    %385 = vmatpush1.msra.mxu0 0.0
    %386 = vmatprep.subr.mxu0 0.0
    %387 = vmatpush1.msra.mxu0 0.0
    %388 = vmatprep.subr.mxu0 0.0
    %389 = vmatpush1.msra.mxu0 0.0
    %390 = vmatprep.subr.mxu0 0.0
    %391 = vmatpush1.msra.mxu0 0.0
    %392 = vmatprep.subr.mxu0 0.0
    %393 = vmatpush1.msra.mxu0 0.0
    %394 = vmatprep.subr.mxu0 0.0
    %395 = vmatpush1.msra.mxu0 0.0
    %396 = vmatprep.subr.mxu0 0.0
    %397 = vmatpush1.msra.mxu0 0.0
    %398 = vmatprep.subr.mxu0 0.0
    %399 = vmatpush1.msra.mxu0 0.0
    %400 = vmatprep.subr.mxu0 0.0
    %401 = vmatpush1.msra.mxu0 0.0
    %402 = vmatprep.subr.mxu0 0.0
    %403 = vmatpush1.msra.mxu0 0.0
    %404 = vmatprep.subr.mxu0 0.0
    %405 = vmatpush1.msra.mxu0 0.0
    %406 = vmatprep.subr.mxu0 0.0
    %407 = vmatpush1.msra.mxu0 0.0
    %408 = vmatprep.subr.mxu0 0.0
    %409 = vmatpush1.msra.mxu0 0.0
    %410 = vmatprep.subr.mxu0 0.0
    %411 = vmatpush1.msra.mxu0 0.0
    %412 = vmatprep.subr.mxu0 0.0
    %413 = vmatpush1.msra.mxu0 0.0
    %414 = vmatprep.subr.mxu0 0.0
    %415 = vmatpush1.msra.mxu0 0.0
    %416 = vmatprep.subr.mxu0 0.0
    %417 = vmatpush1.msra.mxu0 0.0
    %418 = vmatprep.mubr.f32.mxu0 0.0
    %419 = vmatmul.mubr.f32.gmra.mrb[0].mxu0 %v139
    %v420 = vpop.f32.mrb[0].mxu0
    %v421 = vadd.f32 %v119, %v420
    %v422 = vpop.f32.mrb[0].mxu0
    %v423 = vadd.f32 %v123, %v422
    %424 = vdwg.mxu0
    %425 = vmatprep.subr.mxu0 0.0
    %426 = vmatpush1.msra.mxu0 %v60
    %427 = vmatprep.subr.mxu0 0.0
    %428 = vmatpush1.msra.mxu0 %v69
    %429 = vmatprep.subr.mxu0 0.0
    %430 = vmatpush1.msra.mxu0 %v78
    %431 = vmatprep.subr.mxu0 0.0
    %432 = vmatpush1.msra.mxu0 %v87
    %433 = vmatprep.subr.mxu0 0.0
    %434 = vmatpush1.msra.mxu0 0.0
    %435 = vmatprep.subr.mxu0 0.0
    %436 = vmatpush1.msra.mxu0 0.0
    %437 = vmatprep.subr.mxu0 0.0
    %438 = vmatpush1.msra.mxu0 0.0
    %439 = vmatprep.subr.mxu0 0.0
    %440 = vmatpush1.msra.mxu0 0.0
    %441 = vmatprep.subr.mxu0 0.0
    %442 = vmatpush1.msra.mxu0 0.0
    %443 = vmatprep.subr.mxu0 0.0
    %444 = vmatpush1.msra.mxu0 0.0
    %445 = vmatprep.subr.mxu0 0.0
    %446 = vmatpush1.msra.mxu0 0.0
    %447 = vmatprep.subr.mxu0 0.0
    %448 = vmatpush1.msra.mxu0 0.0
    %449 = vmatprep.subr.mxu0 0.0
    %450 = vmatpush1.msra.mxu0 0.0
    %451 = vmatprep.subr.mxu0 0.0
    %452 = vmatpush1.msra.mxu0 0.0
    %453 = vmatprep.subr.mxu0 0.0
    %454 = vmatpush1.msra.mxu0 0.0
    %455 = vmatprep.subr.mxu0 0.0
    %456 = vmatpush1.msra.mxu0 0.0
    %457 = vmatprep.subr.mxu0 0.0
    %458 = vmatpush1.msra.mxu0 0.0
    %459 = vmatprep.subr.mxu0 0.0
    %460 = vmatpush1.msra.mxu0 0.0
    %461 = vmatprep.subr.mxu0 0.0
    %462 = vmatpush1.msra.mxu0 0.0
    %463 = vmatprep.subr.mxu0 0.0
    %464 = vmatpush1.msra.mxu0 0.0
    %465 = vmatprep.subr.mxu0 0.0
    %466 = vmatpush1.msra.mxu0 0.0
    %467 = vmatprep.subr.mxu0 0.0
    %468 = vmatpush1.msra.mxu0 0.0
    %469 = vmatprep.subr.mxu0 0.0
    %470 = vmatpush1.msra.mxu0 0.0
    %471 = vmatprep.subr.mxu0 0.0
    %472 = vmatpush1.msra.mxu0 0.0
    %473 = vmatprep.subr.mxu0 0.0
    %474 = vmatpush1.msra.mxu0 0.0
    %475 = vmatprep.subr.mxu0 0.0
    %476 = vmatpush1.msra.mxu0 0.0
    %477 = vmatprep.subr.mxu0 0.0
    %478 = vmatpush1.msra.mxu0 0.0
    %479 = vmatprep.subr.mxu0 0.0
    %480 = vmatpush1.msra.mxu0 0.0
    %481 = vmatprep.subr.mxu0 0.0
    %482 = vmatpush1.msra.mxu0 0.0
    %483 = vmatprep.subr.mxu0 0.0
    %484 = vmatpush1.msra.mxu0 0.0
    %485 = vmatprep.subr.mxu0 0.0
    %486 = vmatpush1.msra.mxu0 0.0
    %487 = vmatprep.subr.mxu0 0.0
    %488 = vmatpush1.msra.mxu0 0.0
    %489 = vmatprep.mubr.f32.mxu0 0.0
    %490 = vmatmul.mubr.f32.gmra.mrb[0].mxu0 %v139
    %v491 = vpop.f32.mrb[0].mxu0
    %v492 = vadd.f32 %v127, %v491
    %v493 = vpop.f32.mrb[0].mxu0
    %494 = vdwg.mxu0
    %v495 = vld [vmem:[#allocation4 + $0x48] sm:$0xff]
    %v496 = vld [vmem:[#allocation4 + $0xb0] sm:$0xff]
    %v497 = vld [vmem:[#allocation4 + $0x118] sm:$0xff]
    %v498 = vld [vmem:[#allocation4 + $0x180] sm:$0xff]
    %v499 = vld [vmem:[#allocation4 + $0x50] sm:$0xff]
    %v500 = vld [vmem:[#allocation4 + $0xb8] sm:$0xff]
    %v501 = vld [vmem:[#allocation4 + $0x120] sm:$0xff]
    %v502 = vld [vmem:[#allocation4 + $0x188] sm:$0xff]
    %v503 = vld [vmem:[#allocation4 + $0x58] sm:$0xff]
    %v504 = vld [vmem:[#allocation4 + $0xc0] sm:$0xff]
    %v505 = vld [vmem:[#allocation4 + $0x128] sm:$0xff]
    %v506 = vld [vmem:[#allocation4 + $0x190] sm:$0xff]
    %v507 = vld [vmem:[#allocation4 + $0x60] sm:$0xff]
    %v508 = vld [vmem:[#allocation4 + $0xc8] sm:$0xff]
    %v509 = vld [vmem:[#allocation4 + $0x130] sm:$0xff]
    %v510 = vld [vmem:[#allocation4 + $0x198] sm:$0xff]
    %v511 = vld [vmem:[#allocation6 + $0x9] sm:$0x1]
    %v512 = vld [vmem:[#allocation6 + $0xa] sm:$0x1]
    %v514 = vsel %vm137, %v208, 0
    %516 = vmatprep.subr.mxu0 0.0
    %517 = vmatpush1.msra.mxu0 %v495
    %518 = vmatprep.subr.mxu0 0.0
    %519 = vmatpush1.msra.mxu0 %v496
    %520 = vmatprep.subr.mxu0 0.0
    %521 = vmatpush1.msra.mxu0 %v497
    %522 = vmatprep.subr.mxu0 0.0
    %523 = vmatpush1.msra.mxu0 %v498
    %524 = vmatprep.subr.mxu0 0.0
    %525 = vmatpush1.msra.mxu0 0.0
    %526 = vmatprep.subr.mxu0 0.0
    %527 = vmatpush1.msra.mxu0 0.0
    %528 = vmatprep.subr.mxu0 0.0
    %529 = vmatpush1.msra.mxu0 0.0
    %530 = vmatprep.subr.mxu0 0.0
    %531 = vmatpush1.msra.mxu0 0.0
    %532 = vmatprep.subr.mxu0 0.0
    %533 = vmatpush1.msra.mxu0 0.0
    %534 = vmatprep.subr.mxu0 0.0
    %535 = vmatpush1.msra.mxu0 0.0
    %536 = vmatprep.subr.mxu0 0.0
    %537 = vmatpush1.msra.mxu0 0.0
    %538 = vmatprep.subr.mxu0 0.0
    %539 = vmatpush1.msra.mxu0 0.0
    %540 = vmatprep.subr.mxu0 0.0
    %541 = vmatpush1.msra.mxu0 0.0
    %542 = vmatprep.subr.mxu0 0.0
    %543 = vmatpush1.msra.mxu0 0.0
    %544 = vmatprep.subr.mxu0 0.0
    %545 = vmatpush1.msra.mxu0 0.0
    %546 = vmatprep.subr.mxu0 0.0
    %547 = vmatpush1.msra.mxu0 0.0
    %548 = vmatprep.subr.mxu0 0.0
    %549 = vmatpush1.msra.mxu0 0.0
    %550 = vmatprep.subr.mxu0 0.0
    %551 = vmatpush1.msra.mxu0 0.0
    %552 = vmatprep.subr.mxu0 0.0
    %553 = vmatpush1.msra.mxu0 0.0
    %554 = vmatprep.subr.mxu0 0.0
    %555 = vmatpush1.msra.mxu0 0.0
    %556 = vmatprep.subr.mxu0 0.0
    %557 = vmatpush1.msra.mxu0 0.0
    %558 = vmatprep.subr.mxu0 0.0
    %559 = vmatpush1.msra.mxu0 0.0
    %560 = vmatprep.subr.mxu0 0.0
    %561 = vmatpush1.msra.mxu0 0.0
    %562 = vmatprep.subr.mxu0 0.0
    %563 = vmatpush1.msra.mxu0 0.0
    %564 = vmatprep.subr.mxu0 0.0
    %565 = vmatpush1.msra.mxu0 0.0
    %566 = vmatprep.subr.mxu0 0.0
    %567 = vmatpush1.msra.mxu0 0.0
    %568 = vmatprep.subr.mxu0 0.0
    %569 = vmatpush1.msra.mxu0 0.0
    %570 = vmatprep.subr.mxu0 0.0
    %571 = vmatpush1.msra.mxu0 0.0
    %572 = vmatprep.subr.mxu0 0.0
    %573 = vmatpush1.msra.mxu0 0.0
    %574 = vmatprep.subr.mxu0 0.0
    %575 = vmatpush1.msra.mxu0 0.0
    %576 = vmatprep.subr.mxu0 0.0
    %577 = vmatpush1.msra.mxu0 0.0
    %578 = vmatprep.subr.mxu0 0.0
    %579 = vmatpush1.msra.mxu0 0.0
    %580 = vmatprep.mubr.f32.mxu0 0.0
    %581 = vmatmul.mubr.f32.gmra.mrb[0].mxu0 %v514
    %v582 = vpop.f32.mrb[0].mxu0
    %v583 = vadd.f32 0.0, %v582
    %v584 = vpop.f32.mrb[0].mxu0
    %585 = vdwg.mxu0
    %v586 = vadd.f32 %v210, %v583
    %v587 = vxor.u32 %v586, 2147483648
    %v588 = vmul.f32 %v587, 1.442695
    %v589 = vpow.pop %v588
    %v590 = vadd.f32 %v589, 1.0
    %v591 = vrcp.pop %v590
    %v592 = vmul.f32 1.0, %v591
    %v593 = vtanh.pop %v586
    %594 = vrot.lane.b32.xlu0 %v208, 96
    %v595 = vpop.permute.xlu0 %594
    %v597 = vmul.f32 %v592, %v595
    %599 = vrot.lane.b32.xlu0 %v593, 64
    %v600 = vpop.permute.xlu0 %599
    %v602 = vmul.f32 %v592, %v600
    %604 = vrot.lane.b32.xlu0 %v602, 32
    %v605 = vpop.permute.xlu0 %604
    %v607 = vadd.f32 %v597, %v605
    %v608 = vtanh.pop %v607
    %610 = vrot.lane.b32.xlu0 %v608, 64
    %v611 = vpop.permute.xlu0 %610
    %v613 = vmul.f32 %v592, %v611
    %v614 = vsel %vm137, %v595, 0
    %616 = vmatprep.subr.mxu0 0.0
    %617 = vmatpush1.msra.mxu0 %v503
    %618 = vmatprep.subr.mxu0 0.0
    %619 = vmatpush1.msra.mxu0 %v504
    %620 = vmatprep.subr.mxu0 0.0
    %621 = vmatpush1.msra.mxu0 %v505
    %622 = vmatprep.subr.mxu0 0.0
    %623 = vmatpush1.msra.mxu0 %v506
    %624 = vmatprep.subr.mxu0 0.0
    %625 = vmatpush1.msra.mxu0 0.0
    %626 = vmatprep.subr.mxu0 0.0
    %627 = vmatpush1.msra.mxu0 0.0
    %628 = vmatprep.subr.mxu0 0.0
    %629 = vmatpush1.msra.mxu0 0.0
    %630 = vmatprep.subr.mxu0 0.0
    %631 = vmatpush1.msra.mxu0 0.0
    %632 = vmatprep.subr.mxu0 0.0
    %633 = vmatpush1.msra.mxu0 0.0
    %634 = vmatprep.subr.mxu0 0.0
    %635 = vmatpush1.msra.mxu0 0.0
    %636 = vmatprep.subr.mxu0 0.0
    %637 = vmatpush1.msra.mxu0 0.0
    %638 = vmatprep.subr.mxu0 0.0
    %639 = vmatpush1.msra.mxu0 0.0
    %640 = vmatprep.subr.mxu0 0.0
    %641 = vmatpush1.msra.mxu0 0.0
    %642 = vmatprep.subr.mxu0 0.0
    %643 = vmatpush1.msra.mxu0 0.0
    %644 = vmatprep.subr.mxu0 0.0
    %645 = vmatpush1.msra.mxu0 0.0
    %646 = vmatprep.subr.mxu0 0.0
    %647 = vmatpush1.msra.mxu0 0.0
    %648 = vmatprep.subr.mxu0 0.0
    %649 = vmatpush1.msra.mxu0 0.0
    %650 = vmatprep.subr.mxu0 0.0
    %651 = vmatpush1.msra.mxu0 0.0
    %652 = vmatprep.subr.mxu0 0.0
    %653 = vmatpush1.msra.mxu0 0.0
    %654 = vmatprep.subr.mxu0 0.0
    %655 = vmatpush1.msra.mxu0 0.0
    %656 = vmatprep.subr.mxu0 0.0
    %657 = vmatpush1.msra.mxu0 0.0
    %658 = vmatprep.subr.mxu0 0.0
    %659 = vmatpush1.msra.mxu0 0.0
    %660 = vmatprep.subr.mxu0 0.0
    %661 = vmatpush1.msra.mxu0 0.0
    %662 = vmatprep.subr.mxu0 0.0
    %663 = vmatpush1.msra.mxu0 0.0
    %664 = vmatprep.subr.mxu0 0.0
    %665 = vmatpush1.msra.mxu0 0.0
    %666 = vmatprep.subr.mxu0 0.0
    %667 = vmatpush1.msra.mxu0 0.0
    %668 = vmatprep.subr.mxu0 0.0
    %669 = vmatpush1.msra.mxu0 0.0
    %670 = vmatprep.subr.mxu0 0.0
    %671 = vmatpush1.msra.mxu0 0.0
    %672 = vmatprep.subr.mxu0 0.0
    %673 = vmatpush1.msra.mxu0 0.0
    %674 = vmatprep.subr.mxu0 0.0
    %675 = vmatpush1.msra.mxu0 0.0
    %676 = vmatprep.subr.mxu0 0.0
    %677 = vmatpush1.msra.mxu0 0.0
    %678 = vmatprep.subr.mxu0 0.0
    %679 = vmatpush1.msra.mxu0 0.0
    %680 = vmatprep.mubr.f32.mxu0 0.0
    %681 = vmatmul.mubr.f32.gmra.mrb[0].mxu0 %v614
    %v682 = vpop.f32.mrb[0].mxu0
    %v683 = vadd.f32 0.0, %v682
    %v684 = vpop.f32.mrb[0].mxu0
    %685 = vdwg.mxu0
    %687 = vrot.lane.b32.xlu0 %v613, 32
    %v688 = vpop.permute.xlu0 %687
    %v689 = vsel %vm137, %v688, 0
    %691 = vmatprep.subr.mxu0 0.0
    %692 = vmatpush1.msra.mxu0 %v499
    %693 = vmatprep.subr.mxu0 0.0
    %694 = vmatpush1.msra.mxu0 %v500
    %695 = vmatprep.subr.mxu0 0.0
    %696 = vmatpush1.msra.mxu0 %v501
    %697 = vmatprep.subr.mxu0 0.0
    %698 = vmatpush1.msra.mxu0 %v502
    %699 = vmatprep.subr.mxu0 0.0
    %700 = vmatpush1.msra.mxu0 0.0
    %701 = vmatprep.subr.mxu0 0.0
    %702 = vmatpush1.msra.mxu0 0.0
    %703 = vmatprep.subr.mxu0 0.0
    %704 = vmatpush1.msra.mxu0 0.0
    %705 = vmatprep.subr.mxu0 0.0
    %706 = vmatpush1.msra.mxu0 0.0
    %707 = vmatprep.subr.mxu0 0.0
    %708 = vmatpush1.msra.mxu0 0.0
    %709 = vmatprep.subr.mxu0 0.0
    %710 = vmatpush1.msra.mxu0 0.0
    %711 = vmatprep.subr.mxu0 0.0
    %712 = vmatpush1.msra.mxu0 0.0
    %713 = vmatprep.subr.mxu0 0.0
    %714 = vmatpush1.msra.mxu0 0.0
    %715 = vmatprep.subr.mxu0 0.0
    %716 = vmatpush1.msra.mxu0 0.0
    %717 = vmatprep.subr.mxu0 0.0
    %718 = vmatpush1.msra.mxu0 0.0
    %719 = vmatprep.subr.mxu0 0.0
    %720 = vmatpush1.msra.mxu0 0.0
    %721 = vmatprep.subr.mxu0 0.0
    %722 = vmatpush1.msra.mxu0 0.0
    %723 = vmatprep.subr.mxu0 0.0
    %724 = vmatpush1.msra.mxu0 0.0
    %725 = vmatprep.subr.mxu0 0.0
    %726 = vmatpush1.msra.mxu0 0.0
    %727 = vmatprep.subr.mxu0 0.0
    %728 = vmatpush1.msra.mxu0 0.0
    %729 = vmatprep.subr.mxu0 0.0
    %730 = vmatpush1.msra.mxu0 0.0
    %731 = vmatprep.subr.mxu0 0.0
    %732 = vmatpush1.msra.mxu0 0.0
    %733 = vmatprep.subr.mxu0 0.0
    %734 = vmatpush1.msra.mxu0 0.0
    %735 = vmatprep.subr.mxu0 0.0
    %736 = vmatpush1.msra.mxu0 0.0
    %737 = vmatprep.subr.mxu0 0.0
    %738 = vmatpush1.msra.mxu0 0.0
    %739 = vmatprep.subr.mxu0 0.0
    %740 = vmatpush1.msra.mxu0 0.0
    %741 = vmatprep.subr.mxu0 0.0
    %742 = vmatpush1.msra.mxu0 0.0
    %743 = vmatprep.subr.mxu0 0.0
    %744 = vmatpush1.msra.mxu0 0.0
    %745 = vmatprep.subr.mxu0 0.0
    %746 = vmatpush1.msra.mxu0 0.0
    %747 = vmatprep.subr.mxu0 0.0
    %748 = vmatpush1.msra.mxu0 0.0
    %749 = vmatprep.subr.mxu0 0.0
    %750 = vmatpush1.msra.mxu0 0.0
    %751 = vmatprep.subr.mxu0 0.0
    %752 = vmatpush1.msra.mxu0 0.0
    %753 = vmatprep.subr.mxu0 0.0
    %754 = vmatpush1.msra.mxu0 0.0
    %755 = vmatprep.mubr.f32.mxu0 0.0
    %756 = vmatmul.mubr.f32.gmra.mrb[0].mxu0 %v689
    %v757 = vpop.f32.mrb[0].mxu0
    %v758 = vadd.f32 %v683, %v757
    %v759 = vpop.f32.mrb[0].mxu0
    %760 = vdwg.mxu0
    %v762 = vlaneseq
    %v763 = vshrl.u32 %v762, 7
    %v764 = vsub.s32 0, %v763
    %v765 = vrot.slane %v511, %v764
    %v767 = vadd.f32 %v758, %v765
    %v768 = vxor.u32 %v767, 2147483648
    %v769 = vmul.f32 %v768, 1.442695
    %v770 = vpow.pop %v769
    %v771 = vadd.f32 %v770, 1.0
    %v772 = vrcp.pop %v771
    %v773 = vmul.f32 1.0, %v772
    %v774 = vtanh.pop %v767
    %775 = vrot.lane.b32.xlu0 %v208, 64
    %v776 = vpop.permute.xlu0 %775
    %v778 = vmul.f32 %v773, %v776
    %780 = vrot.lane.b32.xlu0 %v774, 64
    %v781 = vpop.permute.xlu0 %780
    %v783 = vmul.f32 %v773, %v781
    %785 = vrot.lane.b32.xlu0 %v783, 32
    %v786 = vpop.permute.xlu0 %785
    %v788 = vadd.f32 %v778, %v786
    %v789 = vtanh.pop %v788
    %791 = vrot.lane.b32.xlu0 %v789, 64
    %v792 = vpop.permute.xlu0 %791
    %v794 = vmul.f32 %v773, %v792
    %v796 = vlaneseq
    %v797 = vshrl.u32 %v796, 7
    %v798 = vsub.s32 0, %v797
    %v799 = vrot.slane %v512, %v798
    %802 = vrot.lane.b32.xlu0 %v794, 32
    %v803 = vpop.permute.xlu0 %802
    %v804 = vsel %vm137, %v803, 0
    %806 = vmatprep.subr.mxu0 0.0
    %807 = vmatpush1.msra.mxu0 %v507
    %808 = vmatprep.subr.mxu0 0.0
    %809 = vmatpush1.msra.mxu0 %v508
    %810 = vmatprep.subr.mxu0 0.0
    %811 = vmatpush1.msra.mxu0 %v509
    %812 = vmatprep.subr.mxu0 0.0
    %813 = vmatpush1.msra.mxu0 %v510
    %814 = vmatprep.subr.mxu0 0.0
    %815 = vmatpush1.msra.mxu0 0.0
    %816 = vmatprep.subr.mxu0 0.0
    %817 = vmatpush1.msra.mxu0 0.0
    %818 = vmatprep.subr.mxu0 0.0
    %819 = vmatpush1.msra.mxu0 0.0
    %820 = vmatprep.subr.mxu0 0.0
    %821 = vmatpush1.msra.mxu0 0.0
    %822 = vmatprep.subr.mxu0 0.0
    %823 = vmatpush1.msra.mxu0 0.0
    %824 = vmatprep.subr.mxu0 0.0
    %825 = vmatpush1.msra.mxu0 0.0
    %826 = vmatprep.subr.mxu0 0.0
    %827 = vmatpush1.msra.mxu0 0.0
    %828 = vmatprep.subr.mxu0 0.0
    %829 = vmatpush1.msra.mxu0 0.0
    %830 = vmatprep.subr.mxu0 0.0
    %831 = vmatpush1.msra.mxu0 0.0
    %832 = vmatprep.subr.mxu0 0.0
    %833 = vmatpush1.msra.mxu0 0.0
    %834 = vmatprep.subr.mxu0 0.0
    %835 = vmatpush1.msra.mxu0 0.0
    %836 = vmatprep.subr.mxu0 0.0
    %837 = vmatpush1.msra.mxu0 0.0
    %838 = vmatprep.subr.mxu0 0.0
    %839 = vmatpush1.msra.mxu0 0.0
    %840 = vmatprep.subr.mxu0 0.0
    %841 = vmatpush1.msra.mxu0 0.0
    %842 = vmatprep.subr.mxu0 0.0
    %843 = vmatpush1.msra.mxu0 0.0
    %844 = vmatprep.subr.mxu0 0.0
    %845 = vmatpush1.msra.mxu0 0.0
    %846 = vmatprep.subr.mxu0 0.0
    %847 = vmatpush1.msra.mxu0 0.0
    %848 = vmatprep.subr.mxu0 0.0
    %849 = vmatpush1.msra.mxu0 0.0
    %850 = vmatprep.subr.mxu0 0.0
    %851 = vmatpush1.msra.mxu0 0.0
    %852 = vmatprep.subr.mxu0 0.0
    %853 = vmatpush1.msra.mxu0 0.0
    %854 = vmatprep.subr.mxu0 0.0
    %855 = vmatpush1.msra.mxu0 0.0
    %856 = vmatprep.subr.mxu0 0.0
    %857 = vmatpush1.msra.mxu0 0.0
    %858 = vmatprep.subr.mxu0 0.0
    %859 = vmatpush1.msra.mxu0 0.0
    %860 = vmatprep.subr.mxu0 0.0
    %861 = vmatpush1.msra.mxu0 0.0
    %862 = vmatprep.subr.mxu0 0.0
    %863 = vmatpush1.msra.mxu0 0.0
    %864 = vmatprep.subr.mxu0 0.0
    %865 = vmatpush1.msra.mxu0 0.0
    %866 = vmatprep.subr.mxu0 0.0
    %867 = vmatpush1.msra.mxu0 0.0
    %868 = vmatprep.subr.mxu0 0.0
    %869 = vmatpush1.msra.mxu0 0.0
    %870 = vmatprep.mubr.f32.mxu0 0.0
    %871 = vmatmul.mubr.f32.gmra.mrb[0].mxu0 %v804
    %v872 = vpop.f32.mrb[0].mxu0
    %v873 = vadd.f32 %v799, %v872
    %v874 = vpop.f32.mrb[0].mxu0
    %875 = vdwg.mxu0
    %876 = vmatprep.subr.mxu0 0.0
    %877 = vmatpush1.msra.mxu0 %v495
    %878 = vmatprep.subr.mxu0 0.0
    %879 = vmatpush1.msra.mxu0 %v496
    %880 = vmatprep.subr.mxu0 0.0
    %881 = vmatpush1.msra.mxu0 %v497
    %882 = vmatprep.subr.mxu0 0.0
    %883 = vmatpush1.msra.mxu0 %v498
    %884 = vmatprep.subr.mxu0 0.0
    %885 = vmatpush1.msra.mxu0 0.0
    %886 = vmatprep.subr.mxu0 0.0
    %887 = vmatpush1.msra.mxu0 0.0
    %888 = vmatprep.subr.mxu0 0.0
    %889 = vmatpush1.msra.mxu0 0.0
    %890 = vmatprep.subr.mxu0 0.0
    %891 = vmatpush1.msra.mxu0 0.0
    %892 = vmatprep.subr.mxu0 0.0
    %893 = vmatpush1.msra.mxu0 0.0
    %894 = vmatprep.subr.mxu0 0.0
    %895 = vmatpush1.msra.mxu0 0.0
    %896 = vmatprep.subr.mxu0 0.0
    %897 = vmatpush1.msra.mxu0 0.0
    %898 = vmatprep.subr.mxu0 0.0
    %899 = vmatpush1.msra.mxu0 0.0
    %900 = vmatprep.subr.mxu0 0.0
    %901 = vmatpush1.msra.mxu0 0.0
    %902 = vmatprep.subr.mxu0 0.0
    %903 = vmatpush1.msra.mxu0 0.0
    %904 = vmatprep.subr.mxu0 0.0
    %905 = vmatpush1.msra.mxu0 0.0
    %906 = vmatprep.subr.mxu0 0.0
    %907 = vmatpush1.msra.mxu0 0.0
    %908 = vmatprep.subr.mxu0 0.0
    %909 = vmatpush1.msra.mxu0 0.0
    %910 = vmatprep.subr.mxu0 0.0
    %911 = vmatpush1.msra.mxu0 0.0
    %912 = vmatprep.subr.mxu0 0.0
    %913 = vmatpush1.msra.mxu0 0.0
    %914 = vmatprep.subr.mxu0 0.0
    %915 = vmatpush1.msra.mxu0 0.0
    %916 = vmatprep.subr.mxu0 0.0
    %917 = vmatpush1.msra.mxu0 0.0
    %918 = vmatprep.subr.mxu0 0.0
    %919 = vmatpush1.msra.mxu0 0.0
    %920 = vmatprep.subr.mxu0 0.0
    %921 = vmatpush1.msra.mxu0 0.0
    %922 = vmatprep.subr.mxu0 0.0
    %923 = vmatpush1.msra.mxu0 0.0
    %924 = vmatprep.subr.mxu0 0.0
    %925 = vmatpush1.msra.mxu0 0.0
    %926 = vmatprep.subr.mxu0 0.0
    %927 = vmatpush1.msra.mxu0 0.0
    %928 = vmatprep.subr.mxu0 0.0
    %929 = vmatpush1.msra.mxu0 0.0
    %930 = vmatprep.subr.mxu0 0.0
    %931 = vmatpush1.msra.mxu0 0.0
    %932 = vmatprep.subr.mxu0 0.0
    %933 = vmatpush1.msra.mxu0 0.0
    %934 = vmatprep.subr.mxu0 0.0
    %935 = vmatpush1.msra.mxu0 0.0
    %936 = vmatprep.subr.mxu0 0.0
    %937 = vmatpush1.msra.mxu0 0.0
    %938 = vmatprep.subr.mxu0 0.0
    %939 = vmatpush1.msra.mxu0 0.0
    %940 = vmatprep.mubr.f32.mxu0 0.0
    %941 = vmatmul.mubr.f32.gmra.mrb[0].mxu0 %v689
    %v942 = vpop.f32.mrb[0].mxu0
    %v943 = vadd.f32 0.0, %v942
    %v944 = vpop.f32.mrb[0].mxu0
    %945 = vdwg.mxu0
    %v946 = vadd.f32 %v279, %v943
    %v947 = vxor.u32 %v946, 2147483648
    %v948 = vmul.f32 %v947, 1.442695
    %v949 = vpow.pop %v948
    %v950 = vadd.f32 %v949, 1.0
    %v951 = vrcp.pop %v950
    %v952 = vmul.f32 1.0, %v951
    %v953 = vtanh.pop %v946
    %v954 = vmul.f32 %v952, %v607
    %956 = vrot.lane.b32.xlu0 %v953, 64
    %v957 = vpop.permute.xlu0 %956
    %v959 = vmul.f32 %v952, %v957
    %961 = vrot.lane.b32.xlu0 %v959, 32
    %v962 = vpop.permute.xlu0 %961
    %v964 = vadd.f32 %v954, %v962
    %v965 = vtanh.pop %v964
    %967 = vrot.lane.b32.xlu0 %v965, 64
    %v968 = vpop.permute.xlu0 %967
    %v970 = vmul.f32 %v952, %v968
    %971 = vmatprep.subr.mxu0 0.0
    %972 = vmatpush1.msra.mxu0 %v503
    %973 = vmatprep.subr.mxu0 0.0
    %974 = vmatpush1.msra.mxu0 %v504
    %975 = vmatprep.subr.mxu0 0.0
    %976 = vmatpush1.msra.mxu0 %v505
    %977 = vmatprep.subr.mxu0 0.0
    %978 = vmatpush1.msra.mxu0 %v506
    %979 = vmatprep.subr.mxu0 0.0
    %980 = vmatpush1.msra.mxu0 0.0
    %981 = vmatprep.subr.mxu0 0.0
    %982 = vmatpush1.msra.mxu0 0.0
    %983 = vmatprep.subr.mxu0 0.0
    %984 = vmatpush1.msra.mxu0 0.0
    %985 = vmatprep.subr.mxu0 0.0
    %986 = vmatpush1.msra.mxu0 0.0
    %987 = vmatprep.subr.mxu0 0.0
    %988 = vmatpush1.msra.mxu0 0.0
    %989 = vmatprep.subr.mxu0 0.0
    %990 = vmatpush1.msra.mxu0 0.0
    %991 = vmatprep.subr.mxu0 0.0
    %992 = vmatpush1.msra.mxu0 0.0
    %993 = vmatprep.subr.mxu0 0.0
    %994 = vmatpush1.msra.mxu0 0.0
    %995 = vmatprep.subr.mxu0 0.0
    %996 = vmatpush1.msra.mxu0 0.0
    %997 = vmatprep.subr.mxu0 0.0
    %998 = vmatpush1.msra.mxu0 0.0
    %999 = vmatprep.subr.mxu0 0.0
    %1000 = vmatpush1.msra.mxu0 0.0
    %1001 = vmatprep.subr.mxu0 0.0
    %1002 = vmatpush1.msra.mxu0 0.0
    %1003 = vmatprep.subr.mxu0 0.0
    %1004 = vmatpush1.msra.mxu0 0.0
    %1005 = vmatprep.subr.mxu0 0.0
    %1006 = vmatpush1.msra.mxu0 0.0
    %1007 = vmatprep.subr.mxu0 0.0
    %1008 = vmatpush1.msra.mxu0 0.0
    %1009 = vmatprep.subr.mxu0 0.0
    %1010 = vmatpush1.msra.mxu0 0.0
    %1011 = vmatprep.subr.mxu0 0.0
    %1012 = vmatpush1.msra.mxu0 0.0
    %1013 = vmatprep.subr.mxu0 0.0
    %1014 = vmatpush1.msra.mxu0 0.0
    %1015 = vmatprep.subr.mxu0 0.0
    %1016 = vmatpush1.msra.mxu0 0.0
    %1017 = vmatprep.subr.mxu0 0.0
    %1018 = vmatpush1.msra.mxu0 0.0
    %1019 = vmatprep.subr.mxu0 0.0
    %1020 = vmatpush1.msra.mxu0 0.0
    %1021 = vmatprep.subr.mxu0 0.0
    %1022 = vmatpush1.msra.mxu0 0.0
    %1023 = vmatprep.subr.mxu0 0.0
    %1024 = vmatpush1.msra.mxu0 0.0
    %1025 = vmatprep.subr.mxu0 0.0
    %1026 = vmatpush1.msra.mxu0 0.0
    %1027 = vmatprep.subr.mxu0 0.0
    %1028 = vmatpush1.msra.mxu0 0.0
    %1029 = vmatprep.subr.mxu0 0.0
    %1030 = vmatpush1.msra.mxu0 0.0
    %1031 = vmatprep.subr.mxu0 0.0
    %1032 = vmatpush1.msra.mxu0 0.0
    %1033 = vmatprep.subr.mxu0 0.0
    %1034 = vmatpush1.msra.mxu0 0.0
    %1035 = vmatprep.mubr.f32.mxu0 0.0
    %1036 = vmatmul.mubr.f32.gmra.mrb[0].mxu0 %v804
    %v1037 = vpop.f32.mrb[0].mxu0
    %v1038 = vadd.f32 0.0, %v1037
    %v1039 = vpop.f32.mrb[0].mxu0
    %1040 = vdwg.mxu0
    %1042 = vrot.lane.b32.xlu0 %v970, 32
    %v1043 = vpop.permute.xlu0 %1042
    %v1044 = vsel %vm137, %v1043, 0
    %1046 = vmatprep.subr.mxu0 0.0
    %1047 = vmatpush1.msra.mxu0 %v499
    %1048 = vmatprep.subr.mxu0 0.0
    %1049 = vmatpush1.msra.mxu0 %v500
    %1050 = vmatprep.subr.mxu0 0.0
    %1051 = vmatpush1.msra.mxu0 %v501
    %1052 = vmatprep.subr.mxu0 0.0
    %1053 = vmatpush1.msra.mxu0 %v502
    %1054 = vmatprep.subr.mxu0 0.0
    %1055 = vmatpush1.msra.mxu0 0.0
    %1056 = vmatprep.subr.mxu0 0.0
    %1057 = vmatpush1.msra.mxu0 0.0
    %1058 = vmatprep.subr.mxu0 0.0
    %1059 = vmatpush1.msra.mxu0 0.0
    %1060 = vmatprep.subr.mxu0 0.0
    %1061 = vmatpush1.msra.mxu0 0.0
    %1062 = vmatprep.subr.mxu0 0.0
    %1063 = vmatpush1.msra.mxu0 0.0
    %1064 = vmatprep.subr.mxu0 0.0
    %1065 = vmatpush1.msra.mxu0 0.0
    %1066 = vmatprep.subr.mxu0 0.0
    %1067 = vmatpush1.msra.mxu0 0.0
    %1068 = vmatprep.subr.mxu0 0.0
    %1069 = vmatpush1.msra.mxu0 0.0
    %1070 = vmatprep.subr.mxu0 0.0
    %1071 = vmatpush1.msra.mxu0 0.0
    %1072 = vmatprep.subr.mxu0 0.0
    %1073 = vmatpush1.msra.mxu0 0.0
    %1074 = vmatprep.subr.mxu0 0.0
    %1075 = vmatpush1.msra.mxu0 0.0
    %1076 = vmatprep.subr.mxu0 0.0
    %1077 = vmatpush1.msra.mxu0 0.0
    %1078 = vmatprep.subr.mxu0 0.0
    %1079 = vmatpush1.msra.mxu0 0.0
    %1080 = vmatprep.subr.mxu0 0.0
    %1081 = vmatpush1.msra.mxu0 0.0
    %1082 = vmatprep.subr.mxu0 0.0
    %1083 = vmatpush1.msra.mxu0 0.0
    %1084 = vmatprep.subr.mxu0 0.0
    %1085 = vmatpush1.msra.mxu0 0.0
    %1086 = vmatprep.subr.mxu0 0.0
    %1087 = vmatpush1.msra.mxu0 0.0
    %1088 = vmatprep.subr.mxu0 0.0
    %1089 = vmatpush1.msra.mxu0 0.0
    %1090 = vmatprep.subr.mxu0 0.0
    %1091 = vmatpush1.msra.mxu0 0.0
    %1092 = vmatprep.subr.mxu0 0.0
    %1093 = vmatpush1.msra.mxu0 0.0
    %1094 = vmatprep.subr.mxu0 0.0
    %1095 = vmatpush1.msra.mxu0 0.0
    %1096 = vmatprep.subr.mxu0 0.0
    %1097 = vmatpush1.msra.mxu0 0.0
    %1098 = vmatprep.subr.mxu0 0.0
    %1099 = vmatpush1.msra.mxu0 0.0
    %1100 = vmatprep.subr.mxu0 0.0
    %1101 = vmatpush1.msra.mxu0 0.0
    %1102 = vmatprep.subr.mxu0 0.0
    %1103 = vmatpush1.msra.mxu0 0.0
    %1104 = vmatprep.subr.mxu0 0.0
    %1105 = vmatpush1.msra.mxu0 0.0
    %1106 = vmatprep.subr.mxu0 0.0
    %1107 = vmatpush1.msra.mxu0 0.0
    %1108 = vmatprep.subr.mxu0 0.0
    %1109 = vmatpush1.msra.mxu0 0.0
    %1110 = vmatprep.mubr.f32.mxu0 0.0
    %1111 = vmatmul.mubr.f32.gmra.mrb[0].mxu0 %v1044
    %v1112 = vpop.f32.mrb[0].mxu0
    %v1113 = vadd.f32 %v1038, %v1112
    %v1114 = vpop.f32.mrb[0].mxu0
    %1115 = vdwg.mxu0
    %v1116 = vadd.f32 %v1113, %v765
    %v1117 = vxor.u32 %v1116, 2147483648
    %v1118 = vmul.f32 %v1117, 1.442695
    %v1119 = vpow.pop %v1118
    %v1120 = vadd.f32 %v1119, 1.0
    %v1121 = vrcp.pop %v1120
    %v1122 = vmul.f32 1.0, %v1121
    %v1123 = vtanh.pop %v1116
    %v1124 = vmul.f32 %v1122, %v788
    %1126 = vrot.lane.b32.xlu0 %v1123, 64
    %v1127 = vpop.permute.xlu0 %1126
    %v1129 = vmul.f32 %v1122, %v1127
    %1131 = vrot.lane.b32.xlu0 %v1129, 32
    %v1132 = vpop.permute.xlu0 %1131
    %v1134 = vadd.f32 %v1124, %v1132
    %v1135 = vtanh.pop %v1134
    %1137 = vrot.lane.b32.xlu0 %v1135, 64
    %v1138 = vpop.permute.xlu0 %1137
    %v1140 = vmul.f32 %v1122, %v1138
    %1142 = vrot.lane.b32.xlu0 %v1140, 32
    %v1143 = vpop.permute.xlu0 %1142
    %v1144 = vsel %vm137, %v1143, 0
    %1146 = vmatprep.subr.mxu0 0.0
    %1147 = vmatpush1.msra.mxu0 %v507
    %1148 = vmatprep.subr.mxu0 0.0
    %1149 = vmatpush1.msra.mxu0 %v508
    %1150 = vmatprep.subr.mxu0 0.0
    %1151 = vmatpush1.msra.mxu0 %v509
    %1152 = vmatprep.subr.mxu0 0.0
    %1153 = vmatpush1.msra.mxu0 %v510
    %1154 = vmatprep.subr.mxu0 0.0
    %1155 = vmatpush1.msra.mxu0 0.0
    %1156 = vmatprep.subr.mxu0 0.0
    %1157 = vmatpush1.msra.mxu0 0.0
    %1158 = vmatprep.subr.mxu0 0.0
    %1159 = vmatpush1.msra.mxu0 0.0
    %1160 = vmatprep.subr.mxu0 0.0
    %1161 = vmatpush1.msra.mxu0 0.0
    %1162 = vmatprep.subr.mxu0 0.0
    %1163 = vmatpush1.msra.mxu0 0.0
    %1164 = vmatprep.subr.mxu0 0.0
    %1165 = vmatpush1.msra.mxu0 0.0
    %1166 = vmatprep.subr.mxu0 0.0
    %1167 = vmatpush1.msra.mxu0 0.0
    %1168 = vmatprep.subr.mxu0 0.0
    %1169 = vmatpush1.msra.mxu0 0.0
    %1170 = vmatprep.subr.mxu0 0.0
    %1171 = vmatpush1.msra.mxu0 0.0
    %1172 = vmatprep.subr.mxu0 0.0
    %1173 = vmatpush1.msra.mxu0 0.0
    %1174 = vmatprep.subr.mxu0 0.0
    %1175 = vmatpush1.msra.mxu0 0.0
    %1176 = vmatprep.subr.mxu0 0.0
    %1177 = vmatpush1.msra.mxu0 0.0
    %1178 = vmatprep.subr.mxu0 0.0
    %1179 = vmatpush1.msra.mxu0 0.0
    %1180 = vmatprep.subr.mxu0 0.0
    %1181 = vmatpush1.msra.mxu0 0.0
    %1182 = vmatprep.subr.mxu0 0.0
    %1183 = vmatpush1.msra.mxu0 0.0
    %1184 = vmatprep.subr.mxu0 0.0
    %1185 = vmatpush1.msra.mxu0 0.0
    %1186 = vmatprep.subr.mxu0 0.0
    %1187 = vmatpush1.msra.mxu0 0.0
    %1188 = vmatprep.subr.mxu0 0.0
    %1189 = vmatpush1.msra.mxu0 0.0
    %1190 = vmatprep.subr.mxu0 0.0
    %1191 = vmatpush1.msra.mxu0 0.0
    %1192 = vmatprep.subr.mxu0 0.0
    %1193 = vmatpush1.msra.mxu0 0.0
    %1194 = vmatprep.subr.mxu0 0.0
    %1195 = vmatpush1.msra.mxu0 0.0
    %1196 = vmatprep.subr.mxu0 0.0
    %1197 = vmatpush1.msra.mxu0 0.0
    %1198 = vmatprep.subr.mxu0 0.0
    %1199 = vmatpush1.msra.mxu0 0.0
    %1200 = vmatprep.subr.mxu0 0.0
    %1201 = vmatpush1.msra.mxu0 0.0
    %1202 = vmatprep.subr.mxu0 0.0
    %1203 = vmatpush1.msra.mxu0 0.0
    %1204 = vmatprep.subr.mxu0 0.0
    %1205 = vmatpush1.msra.mxu0 0.0
    %1206 = vmatprep.subr.mxu0 0.0
    %1207 = vmatpush1.msra.mxu0 0.0
    %1208 = vmatprep.subr.mxu0 0.0
    %1209 = vmatpush1.msra.mxu0 0.0
    %1210 = vmatprep.mubr.f32.mxu0 0.0
    %1211 = vmatmul.mubr.f32.gmra.mrb[0].mxu0 %v1144
    %v1212 = vpop.f32.mrb[0].mxu0
    %v1213 = vadd.f32 %v799, %v1212
    %v1214 = vpop.f32.mrb[0].mxu0
    %1215 = vdwg.mxu0
    %1216 = vmatprep.subr.mxu0 0.0
    %1217 = vmatpush1.msra.mxu0 %v495
    %1218 = vmatprep.subr.mxu0 0.0
    %1219 = vmatpush1.msra.mxu0 %v496
    %1220 = vmatprep.subr.mxu0 0.0
    %1221 = vmatpush1.msra.mxu0 %v497
    %1222 = vmatprep.subr.mxu0 0.0
    %1223 = vmatpush1.msra.mxu0 %v498
    %1224 = vmatprep.subr.mxu0 0.0
    %1225 = vmatpush1.msra.mxu0 0.0
    %1226 = vmatprep.subr.mxu0 0.0
    %1227 = vmatpush1.msra.mxu0 0.0
    %1228 = vmatprep.subr.mxu0 0.0
    %1229 = vmatpush1.msra.mxu0 0.0
    %1230 = vmatprep.subr.mxu0 0.0
    %1231 = vmatpush1.msra.mxu0 0.0
    %1232 = vmatprep.subr.mxu0 0.0
    %1233 = vmatpush1.msra.mxu0 0.0
    %1234 = vmatprep.subr.mxu0 0.0
    %1235 = vmatpush1.msra.mxu0 0.0
    %1236 = vmatprep.subr.mxu0 0.0
    %1237 = vmatpush1.msra.mxu0 0.0
    %1238 = vmatprep.subr.mxu0 0.0
    %1239 = vmatpush1.msra.mxu0 0.0
    %1240 = vmatprep.subr.mxu0 0.0
    %1241 = vmatpush1.msra.mxu0 0.0
    %1242 = vmatprep.subr.mxu0 0.0
    %1243 = vmatpush1.msra.mxu0 0.0
    %1244 = vmatprep.subr.mxu0 0.0
    %1245 = vmatpush1.msra.mxu0 0.0
    %1246 = vmatprep.subr.mxu0 0.0
    %1247 = vmatpush1.msra.mxu0 0.0
    %1248 = vmatprep.subr.mxu0 0.0
    %1249 = vmatpush1.msra.mxu0 0.0
    %1250 = vmatprep.subr.mxu0 0.0
    %1251 = vmatpush1.msra.mxu0 0.0
    %1252 = vmatprep.subr.mxu0 0.0
    %1253 = vmatpush1.msra.mxu0 0.0
    %1254 = vmatprep.subr.mxu0 0.0
    %1255 = vmatpush1.msra.mxu0 0.0
    %1256 = vmatprep.subr.mxu0 0.0
    %1257 = vmatpush1.msra.mxu0 0.0
    %1258 = vmatprep.subr.mxu0 0.0
    %1259 = vmatpush1.msra.mxu0 0.0
    %1260 = vmatprep.subr.mxu0 0.0
    %1261 = vmatpush1.msra.mxu0 0.0
    %1262 = vmatprep.subr.mxu0 0.0
    %1263 = vmatpush1.msra.mxu0 0.0
    %1264 = vmatprep.subr.mxu0 0.0
    %1265 = vmatpush1.msra.mxu0 0.0
    %1266 = vmatprep.subr.mxu0 0.0
    %1267 = vmatpush1.msra.mxu0 0.0
    %1268 = vmatprep.subr.mxu0 0.0
    %1269 = vmatpush1.msra.mxu0 0.0
    %1270 = vmatprep.subr.mxu0 0.0
    %1271 = vmatpush1.msra.mxu0 0.0
    %1272 = vmatprep.subr.mxu0 0.0
    %1273 = vmatpush1.msra.mxu0 0.0
    %1274 = vmatprep.subr.mxu0 0.0
    %1275 = vmatpush1.msra.mxu0 0.0
    %1276 = vmatprep.subr.mxu0 0.0
    %1277 = vmatpush1.msra.mxu0 0.0
    %1278 = vmatprep.subr.mxu0 0.0
    %1279 = vmatpush1.msra.mxu0 0.0
    %1280 = vmatprep.mubr.f32.mxu0 0.0
    %1281 = vmatmul.mubr.f32.gmra.mrb[0].mxu0 %v1044
    %v1282 = vpop.f32.mrb[0].mxu0
    %v1283 = vadd.f32 0.0, %v1282
    %v1284 = vpop.f32.mrb[0].mxu0
    %1285 = vdwg.mxu0
    %v1286 = vadd.f32 %v281, %v1283
    %v1287 = vxor.u32 %v1286, 2147483648
    %v1288 = vmul.f32 %v1287, 1.442695
    %v1289 = vpow.pop %v1288
    %v1290 = vadd.f32 %v1289, 1.0
    %v1291 = vrcp.pop %v1290
    %v1292 = vmul.f32 1.0, %v1291
    %v1293 = vtanh.pop %v1286
    %v1294 = vmul.f32 %v1292, %v964
    %1296 = vrot.lane.b32.xlu0 %v1293, 64
    %v1297 = vpop.permute.xlu0 %1296
    %v1299 = vmul.f32 %v1292, %v1297
    %1301 = vrot.lane.b32.xlu0 %v1299, 32
    %v1302 = vpop.permute.xlu0 %1301
    %v1304 = vadd.f32 %v1294, %v1302
    %v1305 = vtanh.pop %v1304
    %1307 = vrot.lane.b32.xlu0 %v1305, 64
    %v1308 = vpop.permute.xlu0 %1307
    %v1310 = vmul.f32 %v1292, %v1308
    %1311 = vmatprep.subr.mxu0 0.0
    %1312 = vmatpush1.msra.mxu0 %v503
    %1313 = vmatprep.subr.mxu0 0.0
    %1314 = vmatpush1.msra.mxu0 %v504
    %1315 = vmatprep.subr.mxu0 0.0
    %1316 = vmatpush1.msra.mxu0 %v505
    %1317 = vmatprep.subr.mxu0 0.0
    %1318 = vmatpush1.msra.mxu0 %v506
    %1319 = vmatprep.subr.mxu0 0.0
    %1320 = vmatpush1.msra.mxu0 0.0
    %1321 = vmatprep.subr.mxu0 0.0
    %1322 = vmatpush1.msra.mxu0 0.0
    %1323 = vmatprep.subr.mxu0 0.0
    %1324 = vmatpush1.msra.mxu0 0.0
    %1325 = vmatprep.subr.mxu0 0.0
    %1326 = vmatpush1.msra.mxu0 0.0
    %1327 = vmatprep.subr.mxu0 0.0
    %1328 = vmatpush1.msra.mxu0 0.0
    %1329 = vmatprep.subr.mxu0 0.0
    %1330 = vmatpush1.msra.mxu0 0.0
    %1331 = vmatprep.subr.mxu0 0.0
    %1332 = vmatpush1.msra.mxu0 0.0
    %1333 = vmatprep.subr.mxu0 0.0
    %1334 = vmatpush1.msra.mxu0 0.0
    %1335 = vmatprep.subr.mxu0 0.0
    %1336 = vmatpush1.msra.mxu0 0.0
    %1337 = vmatprep.subr.mxu0 0.0
    %1338 = vmatpush1.msra.mxu0 0.0
    %1339 = vmatprep.subr.mxu0 0.0
    %1340 = vmatpush1.msra.mxu0 0.0
    %1341 = vmatprep.subr.mxu0 0.0
    %1342 = vmatpush1.msra.mxu0 0.0
    %1343 = vmatprep.subr.mxu0 0.0
    %1344 = vmatpush1.msra.mxu0 0.0
    %1345 = vmatprep.subr.mxu0 0.0
    %1346 = vmatpush1.msra.mxu0 0.0
    %1347 = vmatprep.subr.mxu0 0.0
    %1348 = vmatpush1.msra.mxu0 0.0
    %1349 = vmatprep.subr.mxu0 0.0
    %1350 = vmatpush1.msra.mxu0 0.0
    %1351 = vmatprep.subr.mxu0 0.0
    %1352 = vmatpush1.msra.mxu0 0.0
    %1353 = vmatprep.subr.mxu0 0.0
    %1354 = vmatpush1.msra.mxu0 0.0
    %1355 = vmatprep.subr.mxu0 0.0
    %1356 = vmatpush1.msra.mxu0 0.0
    %1357 = vmatprep.subr.mxu0 0.0
    %1358 = vmatpush1.msra.mxu0 0.0
    %1359 = vmatprep.subr.mxu0 0.0
    %1360 = vmatpush1.msra.mxu0 0.0
    %1361 = vmatprep.subr.mxu0 0.0
    %1362 = vmatpush1.msra.mxu0 0.0
    %1363 = vmatprep.subr.mxu0 0.0
    %1364 = vmatpush1.msra.mxu0 0.0
    %1365 = vmatprep.subr.mxu0 0.0
    %1366 = vmatpush1.msra.mxu0 0.0
    %1367 = vmatprep.subr.mxu0 0.0
    %1368 = vmatpush1.msra.mxu0 0.0
    %1369 = vmatprep.subr.mxu0 0.0
    %1370 = vmatpush1.msra.mxu0 0.0
    %1371 = vmatprep.subr.mxu0 0.0
    %1372 = vmatpush1.msra.mxu0 0.0
    %1373 = vmatprep.subr.mxu0 0.0
    %1374 = vmatpush1.msra.mxu0 0.0
    %1375 = vmatprep.mubr.f32.mxu0 0.0
    %1376 = vmatmul.mubr.f32.gmra.mrb[0].mxu0 %v1144
    %v1377 = vpop.f32.mrb[0].mxu0
    %v1378 = vadd.f32 0.0, %v1377
    %v1379 = vpop.f32.mrb[0].mxu0
    %1380 = vdwg.mxu0
    %1382 = vrot.lane.b32.xlu0 %v1310, 32
    %v1383 = vpop.permute.xlu0 %1382
    %v1384 = vsel %vm137, %v1383, 0
    %1386 = vmatprep.subr.mxu0 0.0
    %1387 = vmatpush1.msra.mxu0 %v499
    %1388 = vmatprep.subr.mxu0 0.0
    %1389 = vmatpush1.msra.mxu0 %v500
    %1390 = vmatprep.subr.mxu0 0.0
    %1391 = vmatpush1.msra.mxu0 %v501
    %1392 = vmatprep.subr.mxu0 0.0
    %1393 = vmatpush1.msra.mxu0 %v502
    %1394 = vmatprep.subr.mxu0 0.0
    %1395 = vmatpush1.msra.mxu0 0.0
    %1396 = vmatprep.subr.mxu0 0.0
    %1397 = vmatpush1.msra.mxu0 0.0
    %1398 = vmatprep.subr.mxu0 0.0
    %1399 = vmatpush1.msra.mxu0 0.0
    %1400 = vmatprep.subr.mxu0 0.0
    %1401 = vmatpush1.msra.mxu0 0.0
    %1402 = vmatprep.subr.mxu0 0.0
    %1403 = vmatpush1.msra.mxu0 0.0
    %1404 = vmatprep.subr.mxu0 0.0
    %1405 = vmatpush1.msra.mxu0 0.0
    %1406 = vmatprep.subr.mxu0 0.0
    %1407 = vmatpush1.msra.mxu0 0.0
    %1408 = vmatprep.subr.mxu0 0.0
    %1409 = vmatpush1.msra.mxu0 0.0
    %1410 = vmatprep.subr.mxu0 0.0
    %1411 = vmatpush1.msra.mxu0 0.0
    %1412 = vmatprep.subr.mxu0 0.0
    %1413 = vmatpush1.msra.mxu0 0.0
    %1414 = vmatprep.subr.mxu0 0.0
    %1415 = vmatpush1.msra.mxu0 0.0
    %1416 = vmatprep.subr.mxu0 0.0
    %1417 = vmatpush1.msra.mxu0 0.0
    %1418 = vmatprep.subr.mxu0 0.0
    %1419 = vmatpush1.msra.mxu0 0.0
    %1420 = vmatprep.subr.mxu0 0.0
    %1421 = vmatpush1.msra.mxu0 0.0
    %1422 = vmatprep.subr.mxu0 0.0
    %1423 = vmatpush1.msra.mxu0 0.0
    %1424 = vmatprep.subr.mxu0 0.0
    %1425 = vmatpush1.msra.mxu0 0.0
    %1426 = vmatprep.subr.mxu0 0.0
    %1427 = vmatpush1.msra.mxu0 0.0
    %1428 = vmatprep.subr.mxu0 0.0
    %1429 = vmatpush1.msra.mxu0 0.0
    %1430 = vmatprep.subr.mxu0 0.0
    %1431 = vmatpush1.msra.mxu0 0.0
    %1432 = vmatprep.subr.mxu0 0.0
    %1433 = vmatpush1.msra.mxu0 0.0
    %1434 = vmatprep.subr.mxu0 0.0
    %1435 = vmatpush1.msra.mxu0 0.0
    %1436 = vmatprep.subr.mxu0 0.0
    %1437 = vmatpush1.msra.mxu0 0.0
    %1438 = vmatprep.subr.mxu0 0.0
    %1439 = vmatpush1.msra.mxu0 0.0
    %1440 = vmatprep.subr.mxu0 0.0
    %1441 = vmatpush1.msra.mxu0 0.0
    %1442 = vmatprep.subr.mxu0 0.0
    %1443 = vmatpush1.msra.mxu0 0.0
    %1444 = vmatprep.subr.mxu0 0.0
    %1445 = vmatpush1.msra.mxu0 0.0
    %1446 = vmatprep.subr.mxu0 0.0
    %1447 = vmatpush1.msra.mxu0 0.0
    %1448 = vmatprep.subr.mxu0 0.0
    %1449 = vmatpush1.msra.mxu0 0.0
    %1450 = vmatprep.mubr.f32.mxu0 0.0
    %1451 = vmatmul.mubr.f32.gmra.mrb[0].mxu0 %v1384
    %v1452 = vpop.f32.mrb[0].mxu0
    %v1453 = vadd.f32 %v1378, %v1452
    %v1454 = vpop.f32.mrb[0].mxu0
    %1455 = vdwg.mxu0
    %v1456 = vadd.f32 %v1453, %v765
    %v1457 = vxor.u32 %v1456, 2147483648
    %v1458 = vmul.f32 %v1457, 1.442695
    %v1459 = vpow.pop %v1458
    %v1460 = vadd.f32 %v1459, 1.0
    %v1461 = vrcp.pop %v1460
    %v1462 = vmul.f32 1.0, %v1461
    %v1463 = vtanh.pop %v1456
    %v1464 = vmul.f32 %v1462, %v1134
    %1466 = vrot.lane.b32.xlu0 %v1463, 64
    %v1467 = vpop.permute.xlu0 %1466
    %v1469 = vmul.f32 %v1462, %v1467
    %1471 = vrot.lane.b32.xlu0 %v1469, 32
    %v1472 = vpop.permute.xlu0 %1471
    %v1474 = vadd.f32 %v1464, %v1472
    %v1475 = vtanh.pop %v1474
    %1477 = vrot.lane.b32.xlu0 %v1475, 64
    %v1478 = vpop.permute.xlu0 %1477
    %v1480 = vmul.f32 %v1462, %v1478
    %1482 = vrot.lane.b32.xlu0 %v1480, 32
    %v1483 = vpop.permute.xlu0 %1482
    %v1484 = vsel %vm137, %v1483, 0
    %1486 = vmatprep.subr.mxu0 0.0
    %1487 = vmatpush1.msra.mxu0 %v507
    %1488 = vmatprep.subr.mxu0 0.0
    %1489 = vmatpush1.msra.mxu0 %v508
    %1490 = vmatprep.subr.mxu0 0.0
    %1491 = vmatpush1.msra.mxu0 %v509
    %1492 = vmatprep.subr.mxu0 0.0
    %1493 = vmatpush1.msra.mxu0 %v510
    %1494 = vmatprep.subr.mxu0 0.0
    %1495 = vmatpush1.msra.mxu0 0.0
    %1496 = vmatprep.subr.mxu0 0.0
    %1497 = vmatpush1.msra.mxu0 0.0
    %1498 = vmatprep.subr.mxu0 0.0
    %1499 = vmatpush1.msra.mxu0 0.0
    %1500 = vmatprep.subr.mxu0 0.0
    %1501 = vmatpush1.msra.mxu0 0.0
    %1502 = vmatprep.subr.mxu0 0.0
    %1503 = vmatpush1.msra.mxu0 0.0
    %1504 = vmatprep.subr.mxu0 0.0
    %1505 = vmatpush1.msra.mxu0 0.0
    %1506 = vmatprep.subr.mxu0 0.0
    %1507 = vmatpush1.msra.mxu0 0.0
    %1508 = vmatprep.subr.mxu0 0.0
    %1509 = vmatpush1.msra.mxu0 0.0
    %1510 = vmatprep.subr.mxu0 0.0
    %1511 = vmatpush1.msra.mxu0 0.0
    %1512 = vmatprep.subr.mxu0 0.0
    %1513 = vmatpush1.msra.mxu0 0.0
    %1514 = vmatprep.subr.mxu0 0.0
    %1515 = vmatpush1.msra.mxu0 0.0
    %1516 = vmatprep.subr.mxu0 0.0
    %1517 = vmatpush1.msra.mxu0 0.0
    %1518 = vmatprep.subr.mxu0 0.0
    %1519 = vmatpush1.msra.mxu0 0.0
    %1520 = vmatprep.subr.mxu0 0.0
    %1521 = vmatpush1.msra.mxu0 0.0
    %1522 = vmatprep.subr.mxu0 0.0
    %1523 = vmatpush1.msra.mxu0 0.0
    %1524 = vmatprep.subr.mxu0 0.0
    %1525 = vmatpush1.msra.mxu0 0.0
    %1526 = vmatprep.subr.mxu0 0.0
    %1527 = vmatpush1.msra.mxu0 0.0
    %1528 = vmatprep.subr.mxu0 0.0
    %1529 = vmatpush1.msra.mxu0 0.0
    %1530 = vmatprep.subr.mxu0 0.0
    %1531 = vmatpush1.msra.mxu0 0.0
    %1532 = vmatprep.subr.mxu0 0.0
    %1533 = vmatpush1.msra.mxu0 0.0
    %1534 = vmatprep.subr.mxu0 0.0
    %1535 = vmatpush1.msra.mxu0 0.0
    %1536 = vmatprep.subr.mxu0 0.0
    %1537 = vmatpush1.msra.mxu0 0.0
    %1538 = vmatprep.subr.mxu0 0.0
    %1539 = vmatpush1.msra.mxu0 0.0
    %1540 = vmatprep.subr.mxu0 0.0
    %1541 = vmatpush1.msra.mxu0 0.0
    %1542 = vmatprep.subr.mxu0 0.0
    %1543 = vmatpush1.msra.mxu0 0.0
    %1544 = vmatprep.subr.mxu0 0.0
    %1545 = vmatpush1.msra.mxu0 0.0
    %1546 = vmatprep.subr.mxu0 0.0
    %1547 = vmatpush1.msra.mxu0 0.0
    %1548 = vmatprep.subr.mxu0 0.0
    %1549 = vmatpush1.msra.mxu0 0.0
    %1550 = vmatprep.mubr.f32.mxu0 0.0
    %1551 = vmatmul.mubr.f32.gmra.mrb[0].mxu0 %v1484
    %v1552 = vpop.f32.mrb[0].mxu0
    %v1553 = vadd.f32 %v799, %v1552
    %v1554 = vpop.f32.mrb[0].mxu0
    %1555 = vdwg.mxu0
    %1556 = vmatprep.subr.mxu0 0.0
    %1557 = vmatpush1.msra.mxu0 %v495
    %1558 = vmatprep.subr.mxu0 0.0
    %1559 = vmatpush1.msra.mxu0 %v496
    %1560 = vmatprep.subr.mxu0 0.0
    %1561 = vmatpush1.msra.mxu0 %v497
    %1562 = vmatprep.subr.mxu0 0.0
    %1563 = vmatpush1.msra.mxu0 %v498
    %1564 = vmatprep.subr.mxu0 0.0
    %1565 = vmatpush1.msra.mxu0 0.0
    %1566 = vmatprep.subr.mxu0 0.0
    %1567 = vmatpush1.msra.mxu0 0.0
    %1568 = vmatprep.subr.mxu0 0.0
    %1569 = vmatpush1.msra.mxu0 0.0
    %1570 = vmatprep.subr.mxu0 0.0
    %1571 = vmatpush1.msra.mxu0 0.0
    %1572 = vmatprep.subr.mxu0 0.0
    %1573 = vmatpush1.msra.mxu0 0.0
    %1574 = vmatprep.subr.mxu0 0.0
    %1575 = vmatpush1.msra.mxu0 0.0
    %1576 = vmatprep.subr.mxu0 0.0
    %1577 = vmatpush1.msra.mxu0 0.0
    %1578 = vmatprep.subr.mxu0 0.0
    %1579 = vmatpush1.msra.mxu0 0.0
    %1580 = vmatprep.subr.mxu0 0.0
    %1581 = vmatpush1.msra.mxu0 0.0
    %1582 = vmatprep.subr.mxu0 0.0
    %1583 = vmatpush1.msra.mxu0 0.0
    %1584 = vmatprep.subr.mxu0 0.0
    %1585 = vmatpush1.msra.mxu0 0.0
    %1586 = vmatprep.subr.mxu0 0.0
    %1587 = vmatpush1.msra.mxu0 0.0
    %1588 = vmatprep.subr.mxu0 0.0
    %1589 = vmatpush1.msra.mxu0 0.0
    %1590 = vmatprep.subr.mxu0 0.0
    %1591 = vmatpush1.msra.mxu0 0.0
    %1592 = vmatprep.subr.mxu0 0.0
    %1593 = vmatpush1.msra.mxu0 0.0
    %1594 = vmatprep.subr.mxu0 0.0
    %1595 = vmatpush1.msra.mxu0 0.0
    %1596 = vmatprep.subr.mxu0 0.0
    %1597 = vmatpush1.msra.mxu0 0.0
    %1598 = vmatprep.subr.mxu0 0.0
    %1599 = vmatpush1.msra.mxu0 0.0
    %1600 = vmatprep.subr.mxu0 0.0
    %1601 = vmatpush1.msra.mxu0 0.0
    %1602 = vmatprep.subr.mxu0 0.0
    %1603 = vmatpush1.msra.mxu0 0.0
    %1604 = vmatprep.subr.mxu0 0.0
    %1605 = vmatpush1.msra.mxu0 0.0
    %1606 = vmatprep.subr.mxu0 0.0
    %1607 = vmatpush1.msra.mxu0 0.0
    %1608 = vmatprep.subr.mxu0 0.0
    %1609 = vmatpush1.msra.mxu0 0.0
    %1610 = vmatprep.subr.mxu0 0.0
    %1611 = vmatpush1.msra.mxu0 0.0
    %1612 = vmatprep.subr.mxu0 0.0
    %1613 = vmatpush1.msra.mxu0 0.0
    %1614 = vmatprep.subr.mxu0 0.0
    %1615 = vmatpush1.msra.mxu0 0.0
    %1616 = vmatprep.subr.mxu0 0.0
    %1617 = vmatpush1.msra.mxu0 0.0
    %1618 = vmatprep.subr.mxu0 0.0
    %1619 = vmatpush1.msra.mxu0 0.0
    %1620 = vmatprep.mubr.f32.mxu0 0.0
    %1621 = vmatmul.mubr.f32.gmra.mrb[0].mxu0 %v1384
    %v1622 = vpop.f32.mrb[0].mxu0
    %v1623 = vadd.f32 0.0, %v1622
    %v1624 = vpop.f32.mrb[0].mxu0
    %1625 = vdwg.mxu0
    %v1626 = vadd.f32 %v350, %v1623
    %v1627 = vxor.u32 %v1626, 2147483648
    %v1628 = vmul.f32 %v1627, 1.442695
    %v1629 = vpow.pop %v1628
    %v1630 = vadd.f32 %v1629, 1.0
    %v1631 = vrcp.pop %v1630
    %v1632 = vmul.f32 1.0, %v1631
    %v1633 = vtanh.pop %v1626
    %v1634 = vmul.f32 %v1632, %v1304
    %1636 = vrot.lane.b32.xlu0 %v1633, 64
    %v1637 = vpop.permute.xlu0 %1636
    %v1639 = vmul.f32 %v1632, %v1637
    %1641 = vrot.lane.b32.xlu0 %v1639, 32
    %v1642 = vpop.permute.xlu0 %1641
    %v1644 = vadd.f32 %v1634, %v1642
    %v1645 = vtanh.pop %v1644
    %1647 = vrot.lane.b32.xlu0 %v1645, 64
    %v1648 = vpop.permute.xlu0 %1647
    %v1650 = vmul.f32 %v1632, %v1648
    %1651 = vmatprep.subr.mxu0 0.0
    %1652 = vmatpush1.msra.mxu0 %v503
    %1653 = vmatprep.subr.mxu0 0.0
    %1654 = vmatpush1.msra.mxu0 %v504
    %1655 = vmatprep.subr.mxu0 0.0
    %1656 = vmatpush1.msra.mxu0 %v505
    %1657 = vmatprep.subr.mxu0 0.0
    %1658 = vmatpush1.msra.mxu0 %v506
    %1659 = vmatprep.subr.mxu0 0.0
    %1660 = vmatpush1.msra.mxu0 0.0
    %1661 = vmatprep.subr.mxu0 0.0
    %1662 = vmatpush1.msra.mxu0 0.0
    %1663 = vmatprep.subr.mxu0 0.0
    %1664 = vmatpush1.msra.mxu0 0.0
    %1665 = vmatprep.subr.mxu0 0.0
    %1666 = vmatpush1.msra.mxu0 0.0
    %1667 = vmatprep.subr.mxu0 0.0
    %1668 = vmatpush1.msra.mxu0 0.0
    %1669 = vmatprep.subr.mxu0 0.0
    %1670 = vmatpush1.msra.mxu0 0.0
    %1671 = vmatprep.subr.mxu0 0.0
    %1672 = vmatpush1.msra.mxu0 0.0
    %1673 = vmatprep.subr.mxu0 0.0
    %1674 = vmatpush1.msra.mxu0 0.0
    %1675 = vmatprep.subr.mxu0 0.0
    %1676 = vmatpush1.msra.mxu0 0.0
    %1677 = vmatprep.subr.mxu0 0.0
    %1678 = vmatpush1.msra.mxu0 0.0
    %1679 = vmatprep.subr.mxu0 0.0
    %1680 = vmatpush1.msra.mxu0 0.0
    %1681 = vmatprep.subr.mxu0 0.0
    %1682 = vmatpush1.msra.mxu0 0.0
    %1683 = vmatprep.subr.mxu0 0.0
    %1684 = vmatpush1.msra.mxu0 0.0
    %1685 = vmatprep.subr.mxu0 0.0
    %1686 = vmatpush1.msra.mxu0 0.0
    %1687 = vmatprep.subr.mxu0 0.0
    %1688 = vmatpush1.msra.mxu0 0.0
    %1689 = vmatprep.subr.mxu0 0.0
    %1690 = vmatpush1.msra.mxu0 0.0
    %1691 = vmatprep.subr.mxu0 0.0
    %1692 = vmatpush1.msra.mxu0 0.0
    %1693 = vmatprep.subr.mxu0 0.0
    %1694 = vmatpush1.msra.mxu0 0.0
    %1695 = vmatprep.subr.mxu0 0.0
    %1696 = vmatpush1.msra.mxu0 0.0
    %1697 = vmatprep.subr.mxu0 0.0
    %1698 = vmatpush1.msra.mxu0 0.0
    %1699 = vmatprep.subr.mxu0 0.0
    %1700 = vmatpush1.msra.mxu0 0.0
    %1701 = vmatprep.subr.mxu0 0.0
    %1702 = vmatpush1.msra.mxu0 0.0
    %1703 = vmatprep.subr.mxu0 0.0
    %1704 = vmatpush1.msra.mxu0 0.0
    %1705 = vmatprep.subr.mxu0 0.0
    %1706 = vmatpush1.msra.mxu0 0.0
    %1707 = vmatprep.subr.mxu0 0.0
    %1708 = vmatpush1.msra.mxu0 0.0
    %1709 = vmatprep.subr.mxu0 0.0
    %1710 = vmatpush1.msra.mxu0 0.0
    %1711 = vmatprep.subr.mxu0 0.0
    %1712 = vmatpush1.msra.mxu0 0.0
    %1713 = vmatprep.subr.mxu0 0.0
    %1714 = vmatpush1.msra.mxu0 0.0
    %1715 = vmatprep.mubr.f32.mxu0 0.0
    %1716 = vmatmul.mubr.f32.gmra.mrb[0].mxu0 %v1484
    %v1717 = vpop.f32.mrb[0].mxu0
    %v1718 = vadd.f32 0.0, %v1717
    %v1719 = vpop.f32.mrb[0].mxu0
    %1720 = vdwg.mxu0
    %1722 = vrot.lane.b32.xlu0 %v1650, 32
    %v1723 = vpop.permute.xlu0 %1722
    %v1724 = vsel %vm137, %v1723, 0
    %1726 = vmatprep.subr.mxu0 0.0
    %1727 = vmatpush1.msra.mxu0 %v499
    %1728 = vmatprep.subr.mxu0 0.0
    %1729 = vmatpush1.msra.mxu0 %v500
    %1730 = vmatprep.subr.mxu0 0.0
    %1731 = vmatpush1.msra.mxu0 %v501
    %1732 = vmatprep.subr.mxu0 0.0
    %1733 = vmatpush1.msra.mxu0 %v502
    %1734 = vmatprep.subr.mxu0 0.0
    %1735 = vmatpush1.msra.mxu0 0.0
    %1736 = vmatprep.subr.mxu0 0.0
    %1737 = vmatpush1.msra.mxu0 0.0
    %1738 = vmatprep.subr.mxu0 0.0
    %1739 = vmatpush1.msra.mxu0 0.0
    %1740 = vmatprep.subr.mxu0 0.0
    %1741 = vmatpush1.msra.mxu0 0.0
    %1742 = vmatprep.subr.mxu0 0.0
    %1743 = vmatpush1.msra.mxu0 0.0
    %1744 = vmatprep.subr.mxu0 0.0
    %1745 = vmatpush1.msra.mxu0 0.0
    %1746 = vmatprep.subr.mxu0 0.0
    %1747 = vmatpush1.msra.mxu0 0.0
    %1748 = vmatprep.subr.mxu0 0.0
    %1749 = vmatpush1.msra.mxu0 0.0
    %1750 = vmatprep.subr.mxu0 0.0
    %1751 = vmatpush1.msra.mxu0 0.0
    %1752 = vmatprep.subr.mxu0 0.0
    %1753 = vmatpush1.msra.mxu0 0.0
    %1754 = vmatprep.subr.mxu0 0.0
    %1755 = vmatpush1.msra.mxu0 0.0
    %1756 = vmatprep.subr.mxu0 0.0
    %1757 = vmatpush1.msra.mxu0 0.0
    %1758 = vmatprep.subr.mxu0 0.0
    %1759 = vmatpush1.msra.mxu0 0.0
    %1760 = vmatprep.subr.mxu0 0.0
    %1761 = vmatpush1.msra.mxu0 0.0
    %1762 = vmatprep.subr.mxu0 0.0
    %1763 = vmatpush1.msra.mxu0 0.0
    %1764 = vmatprep.subr.mxu0 0.0
    %1765 = vmatpush1.msra.mxu0 0.0
    %1766 = vmatprep.subr.mxu0 0.0
    %1767 = vmatpush1.msra.mxu0 0.0
    %1768 = vmatprep.subr.mxu0 0.0
    %1769 = vmatpush1.msra.mxu0 0.0
    %1770 = vmatprep.subr.mxu0 0.0
    %1771 = vmatpush1.msra.mxu0 0.0
    %1772 = vmatprep.subr.mxu0 0.0
    %1773 = vmatpush1.msra.mxu0 0.0
    %1774 = vmatprep.subr.mxu0 0.0
    %1775 = vmatpush1.msra.mxu0 0.0
    %1776 = vmatprep.subr.mxu0 0.0
    %1777 = vmatpush1.msra.mxu0 0.0
    %1778 = vmatprep.subr.mxu0 0.0
    %1779 = vmatpush1.msra.mxu0 0.0
    %1780 = vmatprep.subr.mxu0 0.0
    %1781 = vmatpush1.msra.mxu0 0.0
    %1782 = vmatprep.subr.mxu0 0.0
    %1783 = vmatpush1.msra.mxu0 0.0
    %1784 = vmatprep.subr.mxu0 0.0
    %1785 = vmatpush1.msra.mxu0 0.0
    %1786 = vmatprep.subr.mxu0 0.0
    %1787 = vmatpush1.msra.mxu0 0.0
    %1788 = vmatprep.subr.mxu0 0.0
    %1789 = vmatpush1.msra.mxu0 0.0
    %1790 = vmatprep.mubr.f32.mxu0 0.0
    %1791 = vmatmul.mubr.f32.gmra.mrb[0].mxu0 %v1724
    %v1792 = vpop.f32.mrb[0].mxu0
    %v1793 = vadd.f32 %v1718, %v1792
    %v1794 = vpop.f32.mrb[0].mxu0
    %1795 = vdwg.mxu0
    %v1796 = vadd.f32 %v1793, %v765
    %v1797 = vxor.u32 %v1796, 2147483648
    %v1798 = vmul.f32 %v1797, 1.442695
    %v1799 = vpow.pop %v1798
    %v1800 = vadd.f32 %v1799, 1.0
    %v1801 = vrcp.pop %v1800
    %v1802 = vmul.f32 1.0, %v1801
    %v1803 = vtanh.pop %v1796
    %v1804 = vmul.f32 %v1802, %v1474
    %1806 = vrot.lane.b32.xlu0 %v1803, 64
    %v1807 = vpop.permute.xlu0 %1806
    %v1809 = vmul.f32 %v1802, %v1807
    %1811 = vrot.lane.b32.xlu0 %v1809, 32
    %v1812 = vpop.permute.xlu0 %1811
    %v1814 = vadd.f32 %v1804, %v1812
    %v1815 = vtanh.pop %v1814
    %1817 = vrot.lane.b32.xlu0 %v1815, 64
    %v1818 = vpop.permute.xlu0 %1817
    %v1820 = vmul.f32 %v1802, %v1818
    %1822 = vrot.lane.b32.xlu0 %v1820, 32
    %v1823 = vpop.permute.xlu0 %1822
    %v1824 = vsel %vm137, %v1823, 0
    %1826 = vmatprep.subr.mxu0 0.0
    %1827 = vmatpush1.msra.mxu0 %v507
    %1828 = vmatprep.subr.mxu0 0.0
    %1829 = vmatpush1.msra.mxu0 %v508
    %1830 = vmatprep.subr.mxu0 0.0
    %1831 = vmatpush1.msra.mxu0 %v509
    %1832 = vmatprep.subr.mxu0 0.0
    %1833 = vmatpush1.msra.mxu0 %v510
    %1834 = vmatprep.subr.mxu0 0.0
    %1835 = vmatpush1.msra.mxu0 0.0
    %1836 = vmatprep.subr.mxu0 0.0
    %1837 = vmatpush1.msra.mxu0 0.0
    %1838 = vmatprep.subr.mxu0 0.0
    %1839 = vmatpush1.msra.mxu0 0.0
    %1840 = vmatprep.subr.mxu0 0.0
    %1841 = vmatpush1.msra.mxu0 0.0
    %1842 = vmatprep.subr.mxu0 0.0
    %1843 = vmatpush1.msra.mxu0 0.0
    %1844 = vmatprep.subr.mxu0 0.0
    %1845 = vmatpush1.msra.mxu0 0.0
    %1846 = vmatprep.subr.mxu0 0.0
    %1847 = vmatpush1.msra.mxu0 0.0
    %1848 = vmatprep.subr.mxu0 0.0
    %1849 = vmatpush1.msra.mxu0 0.0
    %1850 = vmatprep.subr.mxu0 0.0
    %1851 = vmatpush1.msra.mxu0 0.0
    %1852 = vmatprep.subr.mxu0 0.0
    %1853 = vmatpush1.msra.mxu0 0.0
    %1854 = vmatprep.subr.mxu0 0.0
    %1855 = vmatpush1.msra.mxu0 0.0
    %1856 = vmatprep.subr.mxu0 0.0
    %1857 = vmatpush1.msra.mxu0 0.0
    %1858 = vmatprep.subr.mxu0 0.0
    %1859 = vmatpush1.msra.mxu0 0.0
    %1860 = vmatprep.subr.mxu0 0.0
    %1861 = vmatpush1.msra.mxu0 0.0
    %1862 = vmatprep.subr.mxu0 0.0
    %1863 = vmatpush1.msra.mxu0 0.0
    %1864 = vmatprep.subr.mxu0 0.0
    %1865 = vmatpush1.msra.mxu0 0.0
    %1866 = vmatprep.subr.mxu0 0.0
    %1867 = vmatpush1.msra.mxu0 0.0
    %1868 = vmatprep.subr.mxu0 0.0
    %1869 = vmatpush1.msra.mxu0 0.0
    %1870 = vmatprep.subr.mxu0 0.0
    %1871 = vmatpush1.msra.mxu0 0.0
    %1872 = vmatprep.subr.mxu0 0.0
    %1873 = vmatpush1.msra.mxu0 0.0
    %1874 = vmatprep.subr.mxu0 0.0
    %1875 = vmatpush1.msra.mxu0 0.0
    %1876 = vmatprep.subr.mxu0 0.0
    %1877 = vmatpush1.msra.mxu0 0.0
    %1878 = vmatprep.subr.mxu0 0.0
    %1879 = vmatpush1.msra.mxu0 0.0
    %1880 = vmatprep.subr.mxu0 0.0
    %1881 = vmatpush1.msra.mxu0 0.0
    %1882 = vmatprep.subr.mxu0 0.0
    %1883 = vmatpush1.msra.mxu0 0.0
    %1884 = vmatprep.subr.mxu0 0.0
    %1885 = vmatpush1.msra.mxu0 0.0
    %1886 = vmatprep.subr.mxu0 0.0
    %1887 = vmatpush1.msra.mxu0 0.0
    %1888 = vmatprep.subr.mxu0 0.0
    %1889 = vmatpush1.msra.mxu0 0.0
    %1890 = vmatprep.mubr.f32.mxu0 0.0
    %1891 = vmatmul.mubr.f32.gmra.mrb[0].mxu0 %v1824
    %v1892 = vpop.f32.mrb[0].mxu0
    %v1893 = vadd.f32 %v799, %v1892
    %v1894 = vpop.f32.mrb[0].mxu0
    %1895 = vdwg.mxu0
    %1896 = vmatprep.subr.mxu0 0.0
    %1897 = vmatpush1.msra.mxu0 %v495
    %1898 = vmatprep.subr.mxu0 0.0
    %1899 = vmatpush1.msra.mxu0 %v496
    %1900 = vmatprep.subr.mxu0 0.0
    %1901 = vmatpush1.msra.mxu0 %v497
    %1902 = vmatprep.subr.mxu0 0.0
    %1903 = vmatpush1.msra.mxu0 %v498
    %1904 = vmatprep.subr.mxu0 0.0
    %1905 = vmatpush1.msra.mxu0 0.0
    %1906 = vmatprep.subr.mxu0 0.0
    %1907 = vmatpush1.msra.mxu0 0.0
    %1908 = vmatprep.subr.mxu0 0.0
    %1909 = vmatpush1.msra.mxu0 0.0
    %1910 = vmatprep.subr.mxu0 0.0
    %1911 = vmatpush1.msra.mxu0 0.0
    %1912 = vmatprep.subr.mxu0 0.0
    %1913 = vmatpush1.msra.mxu0 0.0
    %1914 = vmatprep.subr.mxu0 0.0
    %1915 = vmatpush1.msra.mxu0 0.0
    %1916 = vmatprep.subr.mxu0 0.0
    %1917 = vmatpush1.msra.mxu0 0.0
    %1918 = vmatprep.subr.mxu0 0.0
    %1919 = vmatpush1.msra.mxu0 0.0
    %1920 = vmatprep.subr.mxu0 0.0
    %1921 = vmatpush1.msra.mxu0 0.0
    %1922 = vmatprep.subr.mxu0 0.0
    %1923 = vmatpush1.msra.mxu0 0.0
    %1924 = vmatprep.subr.mxu0 0.0
    %1925 = vmatpush1.msra.mxu0 0.0
    %1926 = vmatprep.subr.mxu0 0.0
    %1927 = vmatpush1.msra.mxu0 0.0
    %1928 = vmatprep.subr.mxu0 0.0
    %1929 = vmatpush1.msra.mxu0 0.0
    %1930 = vmatprep.subr.mxu0 0.0
    %1931 = vmatpush1.msra.mxu0 0.0
    %1932 = vmatprep.subr.mxu0 0.0
    %1933 = vmatpush1.msra.mxu0 0.0
    %1934 = vmatprep.subr.mxu0 0.0
    %1935 = vmatpush1.msra.mxu0 0.0
    %1936 = vmatprep.subr.mxu0 0.0
    %1937 = vmatpush1.msra.mxu0 0.0
    %1938 = vmatprep.subr.mxu0 0.0
    %1939 = vmatpush1.msra.mxu0 0.0
    %1940 = vmatprep.subr.mxu0 0.0
    %1941 = vmatpush1.msra.mxu0 0.0
    %1942 = vmatprep.subr.mxu0 0.0
    %1943 = vmatpush1.msra.mxu0 0.0
    %1944 = vmatprep.subr.mxu0 0.0
    %1945 = vmatpush1.msra.mxu0 0.0
    %1946 = vmatprep.subr.mxu0 0.0
    %1947 = vmatpush1.msra.mxu0 0.0
    %1948 = vmatprep.subr.mxu0 0.0
    %1949 = vmatpush1.msra.mxu0 0.0
    %1950 = vmatprep.subr.mxu0 0.0
    %1951 = vmatpush1.msra.mxu0 0.0
    %1952 = vmatprep.subr.mxu0 0.0
    %1953 = vmatpush1.msra.mxu0 0.0
    %1954 = vmatprep.subr.mxu0 0.0
    %1955 = vmatpush1.msra.mxu0 0.0
    %1956 = vmatprep.subr.mxu0 0.0
    %1957 = vmatpush1.msra.mxu0 0.0
    %1958 = vmatprep.subr.mxu0 0.0
    %1959 = vmatpush1.msra.mxu0 0.0
    %1960 = vmatprep.mubr.f32.mxu0 0.0
    %1961 = vmatmul.mubr.f32.gmra.mrb[0].mxu0 %v1724
    %v1962 = vpop.f32.mrb[0].mxu0
    %v1963 = vadd.f32 0.0, %v1962
    %v1964 = vpop.f32.mrb[0].mxu0
    %1965 = vdwg.mxu0
    %v1966 = vadd.f32 %v352, %v1963
    %v1967 = vxor.u32 %v1966, 2147483648
    %v1968 = vmul.f32 %v1967, 1.442695
    %v1969 = vpow.pop %v1968
    %v1970 = vadd.f32 %v1969, 1.0
    %v1971 = vrcp.pop %v1970
    %v1972 = vmul.f32 1.0, %v1971
    %v1973 = vtanh.pop %v1966
    %v1974 = vmul.f32 %v1972, %v1644
    %1976 = vrot.lane.b32.xlu0 %v1973, 64
    %v1977 = vpop.permute.xlu0 %1976
    %v1979 = vmul.f32 %v1972, %v1977
    %1981 = vrot.lane.b32.xlu0 %v1979, 32
    %v1982 = vpop.permute.xlu0 %1981
    %v1984 = vadd.f32 %v1974, %v1982
    %v1985 = vtanh.pop %v1984
    %1987 = vrot.lane.b32.xlu0 %v1985, 64
    %v1988 = vpop.permute.xlu0 %1987
    %v1990 = vmul.f32 %v1972, %v1988
    %1991 = vmatprep.subr.mxu0 0.0
    %1992 = vmatpush1.msra.mxu0 %v503
    %1993 = vmatprep.subr.mxu0 0.0
    %1994 = vmatpush1.msra.mxu0 %v504
    %1995 = vmatprep.subr.mxu0 0.0
    %1996 = vmatpush1.msra.mxu0 %v505
    %1997 = vmatprep.subr.mxu0 0.0
    %1998 = vmatpush1.msra.mxu0 %v506
    %1999 = vmatprep.subr.mxu0 0.0
    %2000 = vmatpush1.msra.mxu0 0.0
    %2001 = vmatprep.subr.mxu0 0.0
    %2002 = vmatpush1.msra.mxu0 0.0
    %2003 = vmatprep.subr.mxu0 0.0
    %2004 = vmatpush1.msra.mxu0 0.0
    %2005 = vmatprep.subr.mxu0 0.0
    %2006 = vmatpush1.msra.mxu0 0.0
    %2007 = vmatprep.subr.mxu0 0.0
    %2008 = vmatpush1.msra.mxu0 0.0
    %2009 = vmatprep.subr.mxu0 0.0
    %2010 = vmatpush1.msra.mxu0 0.0
    %2011 = vmatprep.subr.mxu0 0.0
    %2012 = vmatpush1.msra.mxu0 0.0
    %2013 = vmatprep.subr.mxu0 0.0
    %2014 = vmatpush1.msra.mxu0 0.0
    %2015 = vmatprep.subr.mxu0 0.0
    %2016 = vmatpush1.msra.mxu0 0.0
    %2017 = vmatprep.subr.mxu0 0.0
    %2018 = vmatpush1.msra.mxu0 0.0
    %2019 = vmatprep.subr.mxu0 0.0
    %2020 = vmatpush1.msra.mxu0 0.0
    %2021 = vmatprep.subr.mxu0 0.0
    %2022 = vmatpush1.msra.mxu0 0.0
    %2023 = vmatprep.subr.mxu0 0.0
    %2024 = vmatpush1.msra.mxu0 0.0
    %2025 = vmatprep.subr.mxu0 0.0
    %2026 = vmatpush1.msra.mxu0 0.0
    %2027 = vmatprep.subr.mxu0 0.0
    %2028 = vmatpush1.msra.mxu0 0.0
    %2029 = vmatprep.subr.mxu0 0.0
    %2030 = vmatpush1.msra.mxu0 0.0
    %2031 = vmatprep.subr.mxu0 0.0
    %2032 = vmatpush1.msra.mxu0 0.0
    %2033 = vmatprep.subr.mxu0 0.0
    %2034 = vmatpush1.msra.mxu0 0.0
    %2035 = vmatprep.subr.mxu0 0.0
    %2036 = vmatpush1.msra.mxu0 0.0
    %2037 = vmatprep.subr.mxu0 0.0
    %2038 = vmatpush1.msra.mxu0 0.0
    %2039 = vmatprep.subr.mxu0 0.0
    %2040 = vmatpush1.msra.mxu0 0.0
    %2041 = vmatprep.subr.mxu0 0.0
    %2042 = vmatpush1.msra.mxu0 0.0
    %2043 = vmatprep.subr.mxu0 0.0
    %2044 = vmatpush1.msra.mxu0 0.0
    %2045 = vmatprep.subr.mxu0 0.0
    %2046 = vmatpush1.msra.mxu0 0.0
    %2047 = vmatprep.subr.mxu0 0.0
    %2048 = vmatpush1.msra.mxu0 0.0
    %2049 = vmatprep.subr.mxu0 0.0
    %2050 = vmatpush1.msra.mxu0 0.0
    %2051 = vmatprep.subr.mxu0 0.0
    %2052 = vmatpush1.msra.mxu0 0.0
    %2053 = vmatprep.subr.mxu0 0.0
    %2054 = vmatpush1.msra.mxu0 0.0
    %2055 = vmatprep.mubr.f32.mxu0 0.0
    %2056 = vmatmul.mubr.f32.gmra.mrb[0].mxu0 %v1824
    %v2057 = vpop.f32.mrb[0].mxu0
    %v2058 = vadd.f32 0.0, %v2057
    %v2059 = vpop.f32.mrb[0].mxu0
    %2060 = vdwg.mxu0
    %2062 = vrot.lane.b32.xlu0 %v1990, 32
    %v2063 = vpop.permute.xlu0 %2062
    %v2064 = vsel %vm137, %v2063, 0
    %2066 = vmatprep.subr.mxu0 0.0
    %2067 = vmatpush1.msra.mxu0 %v499
    %2068 = vmatprep.subr.mxu0 0.0
    %2069 = vmatpush1.msra.mxu0 %v500
    %2070 = vmatprep.subr.mxu0 0.0
    %2071 = vmatpush1.msra.mxu0 %v501
    %2072 = vmatprep.subr.mxu0 0.0
    %2073 = vmatpush1.msra.mxu0 %v502
    %2074 = vmatprep.subr.mxu0 0.0
    %2075 = vmatpush1.msra.mxu0 0.0
    %2076 = vmatprep.subr.mxu0 0.0
    %2077 = vmatpush1.msra.mxu0 0.0
    %2078 = vmatprep.subr.mxu0 0.0
    %2079 = vmatpush1.msra.mxu0 0.0
    %2080 = vmatprep.subr.mxu0 0.0
    %2081 = vmatpush1.msra.mxu0 0.0
    %2082 = vmatprep.subr.mxu0 0.0
    %2083 = vmatpush1.msra.mxu0 0.0
    %2084 = vmatprep.subr.mxu0 0.0
    %2085 = vmatpush1.msra.mxu0 0.0
    %2086 = vmatprep.subr.mxu0 0.0
    %2087 = vmatpush1.msra.mxu0 0.0
    %2088 = vmatprep.subr.mxu0 0.0
    %2089 = vmatpush1.msra.mxu0 0.0
    %2090 = vmatprep.subr.mxu0 0.0
    %2091 = vmatpush1.msra.mxu0 0.0
    %2092 = vmatprep.subr.mxu0 0.0
    %2093 = vmatpush1.msra.mxu0 0.0
    %2094 = vmatprep.subr.mxu0 0.0
    %2095 = vmatpush1.msra.mxu0 0.0
    %2096 = vmatprep.subr.mxu0 0.0
    %2097 = vmatpush1.msra.mxu0 0.0
    %2098 = vmatprep.subr.mxu0 0.0
    %2099 = vmatpush1.msra.mxu0 0.0
    %2100 = vmatprep.subr.mxu0 0.0
    %2101 = vmatpush1.msra.mxu0 0.0
    %2102 = vmatprep.subr.mxu0 0.0
    %2103 = vmatpush1.msra.mxu0 0.0
    %2104 = vmatprep.subr.mxu0 0.0
    %2105 = vmatpush1.msra.mxu0 0.0
    %2106 = vmatprep.subr.mxu0 0.0
    %2107 = vmatpush1.msra.mxu0 0.0
    %2108 = vmatprep.subr.mxu0 0.0
    %2109 = vmatpush1.msra.mxu0 0.0
    %2110 = vmatprep.subr.mxu0 0.0
    %2111 = vmatpush1.msra.mxu0 0.0
    %2112 = vmatprep.subr.mxu0 0.0
    %2113 = vmatpush1.msra.mxu0 0.0
    %2114 = vmatprep.subr.mxu0 0.0
    %2115 = vmatpush1.msra.mxu0 0.0
    %2116 = vmatprep.subr.mxu0 0.0
    %2117 = vmatpush1.msra.mxu0 0.0
    %2118 = vmatprep.subr.mxu0 0.0
    %2119 = vmatpush1.msra.mxu0 0.0
    %2120 = vmatprep.subr.mxu0 0.0
    %2121 = vmatpush1.msra.mxu0 0.0
    %2122 = vmatprep.subr.mxu0 0.0
    %2123 = vmatpush1.msra.mxu0 0.0
    %2124 = vmatprep.subr.mxu0 0.0
    %2125 = vmatpush1.msra.mxu0 0.0
    %2126 = vmatprep.subr.mxu0 0.0
    %2127 = vmatpush1.msra.mxu0 0.0
    %2128 = vmatprep.subr.mxu0 0.0
    %2129 = vmatpush1.msra.mxu0 0.0
    %2130 = vmatprep.mubr.f32.mxu0 0.0
    %2131 = vmatmul.mubr.f32.gmra.mrb[0].mxu0 %v2064
    %v2132 = vpop.f32.mrb[0].mxu0
    %v2133 = vadd.f32 %v2058, %v2132
    %v2134 = vpop.f32.mrb[0].mxu0
    %2135 = vdwg.mxu0
    %v2136 = vadd.f32 %v2133, %v765
    %v2137 = vxor.u32 %v2136, 2147483648
    %v2138 = vmul.f32 %v2137, 1.442695
    %v2139 = vpow.pop %v2138
    %v2140 = vadd.f32 %v2139, 1.0
    %v2141 = vrcp.pop %v2140
    %v2142 = vmul.f32 1.0, %v2141
    %v2143 = vtanh.pop %v2136
    %v2144 = vmul.f32 %v2142, %v1814
    %2146 = vrot.lane.b32.xlu0 %v2143, 64
    %v2147 = vpop.permute.xlu0 %2146
    %v2149 = vmul.f32 %v2142, %v2147
    %2151 = vrot.lane.b32.xlu0 %v2149, 32
    %v2152 = vpop.permute.xlu0 %2151
    %v2154 = vadd.f32 %v2144, %v2152
    %v2155 = vtanh.pop %v2154
    %2157 = vrot.lane.b32.xlu0 %v2155, 64
    %v2158 = vpop.permute.xlu0 %2157
    %v2160 = vmul.f32 %v2142, %v2158
    %2162 = vrot.lane.b32.xlu0 %v2160, 32
    %v2163 = vpop.permute.xlu0 %2162
    %v2164 = vsel %vm137, %v2163, 0
    %2166 = vmatprep.subr.mxu0 0.0
    %2167 = vmatpush1.msra.mxu0 %v507
    %2168 = vmatprep.subr.mxu0 0.0
    %2169 = vmatpush1.msra.mxu0 %v508
    %2170 = vmatprep.subr.mxu0 0.0
    %2171 = vmatpush1.msra.mxu0 %v509
    %2172 = vmatprep.subr.mxu0 0.0
    %2173 = vmatpush1.msra.mxu0 %v510
    %2174 = vmatprep.subr.mxu0 0.0
    %2175 = vmatpush1.msra.mxu0 0.0
    %2176 = vmatprep.subr.mxu0 0.0
    %2177 = vmatpush1.msra.mxu0 0.0
    %2178 = vmatprep.subr.mxu0 0.0
    %2179 = vmatpush1.msra.mxu0 0.0
    %2180 = vmatprep.subr.mxu0 0.0
    %2181 = vmatpush1.msra.mxu0 0.0
    %2182 = vmatprep.subr.mxu0 0.0
    %2183 = vmatpush1.msra.mxu0 0.0
    %2184 = vmatprep.subr.mxu0 0.0
    %2185 = vmatpush1.msra.mxu0 0.0
    %2186 = vmatprep.subr.mxu0 0.0
    %2187 = vmatpush1.msra.mxu0 0.0
    %2188 = vmatprep.subr.mxu0 0.0
    %2189 = vmatpush1.msra.mxu0 0.0
    %2190 = vmatprep.subr.mxu0 0.0
    %2191 = vmatpush1.msra.mxu0 0.0
    %2192 = vmatprep.subr.mxu0 0.0
    %2193 = vmatpush1.msra.mxu0 0.0
    %2194 = vmatprep.subr.mxu0 0.0
    %2195 = vmatpush1.msra.mxu0 0.0
    %2196 = vmatprep.subr.mxu0 0.0
    %2197 = vmatpush1.msra.mxu0 0.0
    %2198 = vmatprep.subr.mxu0 0.0
    %2199 = vmatpush1.msra.mxu0 0.0
    %2200 = vmatprep.subr.mxu0 0.0
    %2201 = vmatpush1.msra.mxu0 0.0
    %2202 = vmatprep.subr.mxu0 0.0
    %2203 = vmatpush1.msra.mxu0 0.0
    %2204 = vmatprep.subr.mxu0 0.0
    %2205 = vmatpush1.msra.mxu0 0.0
    %2206 = vmatprep.subr.mxu0 0.0
    %2207 = vmatpush1.msra.mxu0 0.0
    %2208 = vmatprep.subr.mxu0 0.0
    %2209 = vmatpush1.msra.mxu0 0.0
    %2210 = vmatprep.subr.mxu0 0.0
    %2211 = vmatpush1.msra.mxu0 0.0
    %2212 = vmatprep.subr.mxu0 0.0
    %2213 = vmatpush1.msra.mxu0 0.0
    %2214 = vmatprep.subr.mxu0 0.0
    %2215 = vmatpush1.msra.mxu0 0.0
    %2216 = vmatprep.subr.mxu0 0.0
    %2217 = vmatpush1.msra.mxu0 0.0
    %2218 = vmatprep.subr.mxu0 0.0
    %2219 = vmatpush1.msra.mxu0 0.0
    %2220 = vmatprep.subr.mxu0 0.0
    %2221 = vmatpush1.msra.mxu0 0.0
    %2222 = vmatprep.subr.mxu0 0.0
    %2223 = vmatpush1.msra.mxu0 0.0
    %2224 = vmatprep.subr.mxu0 0.0
    %2225 = vmatpush1.msra.mxu0 0.0
    %2226 = vmatprep.subr.mxu0 0.0
    %2227 = vmatpush1.msra.mxu0 0.0
    %2228 = vmatprep.subr.mxu0 0.0
    %2229 = vmatpush1.msra.mxu0 0.0
    %2230 = vmatprep.mubr.f32.mxu0 0.0
    %2231 = vmatmul.mubr.f32.gmra.mrb[0].mxu0 %v2164
    %v2232 = vpop.f32.mrb[0].mxu0
    %v2233 = vadd.f32 %v799, %v2232
    %v2234 = vpop.f32.mrb[0].mxu0
    %2235 = vdwg.mxu0
    %2236 = vmatprep.subr.mxu0 0.0
    %2237 = vmatpush1.msra.mxu0 %v495
    %2238 = vmatprep.subr.mxu0 0.0
    %2239 = vmatpush1.msra.mxu0 %v496
    %2240 = vmatprep.subr.mxu0 0.0
    %2241 = vmatpush1.msra.mxu0 %v497
    %2242 = vmatprep.subr.mxu0 0.0
    %2243 = vmatpush1.msra.mxu0 %v498
    %2244 = vmatprep.subr.mxu0 0.0
    %2245 = vmatpush1.msra.mxu0 0.0
    %2246 = vmatprep.subr.mxu0 0.0
    %2247 = vmatpush1.msra.mxu0 0.0
    %2248 = vmatprep.subr.mxu0 0.0
    %2249 = vmatpush1.msra.mxu0 0.0
    %2250 = vmatprep.subr.mxu0 0.0
    %2251 = vmatpush1.msra.mxu0 0.0
    %2252 = vmatprep.subr.mxu0 0.0
    %2253 = vmatpush1.msra.mxu0 0.0
    %2254 = vmatprep.subr.mxu0 0.0
    %2255 = vmatpush1.msra.mxu0 0.0
    %2256 = vmatprep.subr.mxu0 0.0
    %2257 = vmatpush1.msra.mxu0 0.0
    %2258 = vmatprep.subr.mxu0 0.0
    %2259 = vmatpush1.msra.mxu0 0.0
    %2260 = vmatprep.subr.mxu0 0.0
    %2261 = vmatpush1.msra.mxu0 0.0
    %2262 = vmatprep.subr.mxu0 0.0
    %2263 = vmatpush1.msra.mxu0 0.0
    %2264 = vmatprep.subr.mxu0 0.0
    %2265 = vmatpush1.msra.mxu0 0.0
    %2266 = vmatprep.subr.mxu0 0.0
    %2267 = vmatpush1.msra.mxu0 0.0
    %2268 = vmatprep.subr.mxu0 0.0
    %2269 = vmatpush1.msra.mxu0 0.0
    %2270 = vmatprep.subr.mxu0 0.0
    %2271 = vmatpush1.msra.mxu0 0.0
    %2272 = vmatprep.subr.mxu0 0.0
    %2273 = vmatpush1.msra.mxu0 0.0
    %2274 = vmatprep.subr.mxu0 0.0
    %2275 = vmatpush1.msra.mxu0 0.0
    %2276 = vmatprep.subr.mxu0 0.0
    %2277 = vmatpush1.msra.mxu0 0.0
    %2278 = vmatprep.subr.mxu0 0.0
    %2279 = vmatpush1.msra.mxu0 0.0
    %2280 = vmatprep.subr.mxu0 0.0
    %2281 = vmatpush1.msra.mxu0 0.0
    %2282 = vmatprep.subr.mxu0 0.0
    %2283 = vmatpush1.msra.mxu0 0.0
    %2284 = vmatprep.subr.mxu0 0.0
    %2285 = vmatpush1.msra.mxu0 0.0
    %2286 = vmatprep.subr.mxu0 0.0
    %2287 = vmatpush1.msra.mxu0 0.0
    %2288 = vmatprep.subr.mxu0 0.0
    %2289 = vmatpush1.msra.mxu0 0.0
    %2290 = vmatprep.subr.mxu0 0.0
    %2291 = vmatpush1.msra.mxu0 0.0
    %2292 = vmatprep.subr.mxu0 0.0
    %2293 = vmatpush1.msra.mxu0 0.0
    %2294 = vmatprep.subr.mxu0 0.0
    %2295 = vmatpush1.msra.mxu0 0.0
    %2296 = vmatprep.subr.mxu0 0.0
    %2297 = vmatpush1.msra.mxu0 0.0
    %2298 = vmatprep.subr.mxu0 0.0
    %2299 = vmatpush1.msra.mxu0 0.0
    %2300 = vmatprep.mubr.f32.mxu0 0.0
    %2301 = vmatmul.mubr.f32.gmra.mrb[0].mxu0 %v2064
    %v2302 = vpop.f32.mrb[0].mxu0
    %v2303 = vadd.f32 0.0, %v2302
    %v2304 = vpop.f32.mrb[0].mxu0
    %2305 = vdwg.mxu0
    %v2306 = vadd.f32 %v421, %v2303
    %v2307 = vxor.u32 %v2306, 2147483648
    %v2308 = vmul.f32 %v2307, 1.442695
    %v2309 = vpow.pop %v2308
    %v2310 = vadd.f32 %v2309, 1.0
    %v2311 = vrcp.pop %v2310
    %v2312 = vmul.f32 1.0, %v2311
    %v2313 = vtanh.pop %v2306
    %v2314 = vmul.f32 %v2312, %v1984
    %2316 = vrot.lane.b32.xlu0 %v2313, 64
    %v2317 = vpop.permute.xlu0 %2316
    %v2319 = vmul.f32 %v2312, %v2317
    %2321 = vrot.lane.b32.xlu0 %v2319, 32
    %v2322 = vpop.permute.xlu0 %2321
    %v2324 = vadd.f32 %v2314, %v2322
    %v2325 = vtanh.pop %v2324
    %2327 = vrot.lane.b32.xlu0 %v2325, 64
    %v2328 = vpop.permute.xlu0 %2327
    %v2330 = vmul.f32 %v2312, %v2328
    %2331 = vmatprep.subr.mxu0 0.0
    %2332 = vmatpush1.msra.mxu0 %v503
    %2333 = vmatprep.subr.mxu0 0.0
    %2334 = vmatpush1.msra.mxu0 %v504
    %2335 = vmatprep.subr.mxu0 0.0
    %2336 = vmatpush1.msra.mxu0 %v505
    %2337 = vmatprep.subr.mxu0 0.0
    %2338 = vmatpush1.msra.mxu0 %v506
    %2339 = vmatprep.subr.mxu0 0.0
    %2340 = vmatpush1.msra.mxu0 0.0
    %2341 = vmatprep.subr.mxu0 0.0
    %2342 = vmatpush1.msra.mxu0 0.0
    %2343 = vmatprep.subr.mxu0 0.0
    %2344 = vmatpush1.msra.mxu0 0.0
    %2345 = vmatprep.subr.mxu0 0.0
    %2346 = vmatpush1.msra.mxu0 0.0
    %2347 = vmatprep.subr.mxu0 0.0
    %2348 = vmatpush1.msra.mxu0 0.0
    %2349 = vmatprep.subr.mxu0 0.0
    %2350 = vmatpush1.msra.mxu0 0.0
    %2351 = vmatprep.subr.mxu0 0.0
    %2352 = vmatpush1.msra.mxu0 0.0
    %2353 = vmatprep.subr.mxu0 0.0
    %2354 = vmatpush1.msra.mxu0 0.0
    %2355 = vmatprep.subr.mxu0 0.0
    %2356 = vmatpush1.msra.mxu0 0.0
    %2357 = vmatprep.subr.mxu0 0.0
    %2358 = vmatpush1.msra.mxu0 0.0
    %2359 = vmatprep.subr.mxu0 0.0
    %2360 = vmatpush1.msra.mxu0 0.0
    %2361 = vmatprep.subr.mxu0 0.0
    %2362 = vmatpush1.msra.mxu0 0.0
    %2363 = vmatprep.subr.mxu0 0.0
    %2364 = vmatpush1.msra.mxu0 0.0
    %2365 = vmatprep.subr.mxu0 0.0
    %2366 = vmatpush1.msra.mxu0 0.0
    %2367 = vmatprep.subr.mxu0 0.0
    %2368 = vmatpush1.msra.mxu0 0.0
    %2369 = vmatprep.subr.mxu0 0.0
    %2370 = vmatpush1.msra.mxu0 0.0
    %2371 = vmatprep.subr.mxu0 0.0
    %2372 = vmatpush1.msra.mxu0 0.0
    %2373 = vmatprep.subr.mxu0 0.0
    %2374 = vmatpush1.msra.mxu0 0.0
    %2375 = vmatprep.subr.mxu0 0.0
    %2376 = vmatpush1.msra.mxu0 0.0
    %2377 = vmatprep.subr.mxu0 0.0
    %2378 = vmatpush1.msra.mxu0 0.0
    %2379 = vmatprep.subr.mxu0 0.0
    %2380 = vmatpush1.msra.mxu0 0.0
    %2381 = vmatprep.subr.mxu0 0.0
    %2382 = vmatpush1.msra.mxu0 0.0
    %2383 = vmatprep.subr.mxu0 0.0
    %2384 = vmatpush1.msra.mxu0 0.0
    %2385 = vmatprep.subr.mxu0 0.0
    %2386 = vmatpush1.msra.mxu0 0.0
    %2387 = vmatprep.subr.mxu0 0.0
    %2388 = vmatpush1.msra.mxu0 0.0
    %2389 = vmatprep.subr.mxu0 0.0
    %2390 = vmatpush1.msra.mxu0 0.0
    %2391 = vmatprep.subr.mxu0 0.0
    %2392 = vmatpush1.msra.mxu0 0.0
    %2393 = vmatprep.subr.mxu0 0.0
    %2394 = vmatpush1.msra.mxu0 0.0
    %2395 = vmatprep.mubr.f32.mxu0 0.0
    %2396 = vmatmul.mubr.f32.gmra.mrb[0].mxu0 %v2164
    %v2397 = vpop.f32.mrb[0].mxu0
    %v2398 = vadd.f32 0.0, %v2397
    %v2399 = vpop.f32.mrb[0].mxu0
    %2400 = vdwg.mxu0
    %2402 = vrot.lane.b32.xlu0 %v2330, 32
    %v2403 = vpop.permute.xlu0 %2402
    %v2404 = vsel %vm137, %v2403, 0
    %2406 = vmatprep.subr.mxu0 0.0
    %2407 = vmatpush1.msra.mxu0 %v499
    %2408 = vmatprep.subr.mxu0 0.0
    %2409 = vmatpush1.msra.mxu0 %v500
    %2410 = vmatprep.subr.mxu0 0.0
    %2411 = vmatpush1.msra.mxu0 %v501
    %2412 = vmatprep.subr.mxu0 0.0
    %2413 = vmatpush1.msra.mxu0 %v502
    %2414 = vmatprep.subr.mxu0 0.0
    %2415 = vmatpush1.msra.mxu0 0.0
    %2416 = vmatprep.subr.mxu0 0.0
    %2417 = vmatpush1.msra.mxu0 0.0
    %2418 = vmatprep.subr.mxu0 0.0
    %2419 = vmatpush1.msra.mxu0 0.0
    %2420 = vmatprep.subr.mxu0 0.0
    %2421 = vmatpush1.msra.mxu0 0.0
    %2422 = vmatprep.subr.mxu0 0.0
    %2423 = vmatpush1.msra.mxu0 0.0
    %2424 = vmatprep.subr.mxu0 0.0
    %2425 = vmatpush1.msra.mxu0 0.0
    %2426 = vmatprep.subr.mxu0 0.0
    %2427 = vmatpush1.msra.mxu0 0.0
    %2428 = vmatprep.subr.mxu0 0.0
    %2429 = vmatpush1.msra.mxu0 0.0
    %2430 = vmatprep.subr.mxu0 0.0
    %2431 = vmatpush1.msra.mxu0 0.0
    %2432 = vmatprep.subr.mxu0 0.0
    %2433 = vmatpush1.msra.mxu0 0.0
    %2434 = vmatprep.subr.mxu0 0.0
    %2435 = vmatpush1.msra.mxu0 0.0
    %2436 = vmatprep.subr.mxu0 0.0
    %2437 = vmatpush1.msra.mxu0 0.0
    %2438 = vmatprep.subr.mxu0 0.0
    %2439 = vmatpush1.msra.mxu0 0.0
    %2440 = vmatprep.subr.mxu0 0.0
    %2441 = vmatpush1.msra.mxu0 0.0
    %2442 = vmatprep.subr.mxu0 0.0
    %2443 = vmatpush1.msra.mxu0 0.0
    %2444 = vmatprep.subr.mxu0 0.0
    %2445 = vmatpush1.msra.mxu0 0.0
    %2446 = vmatprep.subr.mxu0 0.0
    %2447 = vmatpush1.msra.mxu0 0.0
    %2448 = vmatprep.subr.mxu0 0.0
    %2449 = vmatpush1.msra.mxu0 0.0
    %2450 = vmatprep.subr.mxu0 0.0
    %2451 = vmatpush1.msra.mxu0 0.0
    %2452 = vmatprep.subr.mxu0 0.0
    %2453 = vmatpush1.msra.mxu0 0.0
    %2454 = vmatprep.subr.mxu0 0.0
    %2455 = vmatpush1.msra.mxu0 0.0
    %2456 = vmatprep.subr.mxu0 0.0
    %2457 = vmatpush1.msra.mxu0 0.0
    %2458 = vmatprep.subr.mxu0 0.0
    %2459 = vmatpush1.msra.mxu0 0.0
    %2460 = vmatprep.subr.mxu0 0.0
    %2461 = vmatpush1.msra.mxu0 0.0
    %2462 = vmatprep.subr.mxu0 0.0
    %2463 = vmatpush1.msra.mxu0 0.0
    %2464 = vmatprep.subr.mxu0 0.0
    %2465 = vmatpush1.msra.mxu0 0.0
    %2466 = vmatprep.subr.mxu0 0.0
    %2467 = vmatpush1.msra.mxu0 0.0
    %2468 = vmatprep.subr.mxu0 0.0
    %2469 = vmatpush1.msra.mxu0 0.0
    %2470 = vmatprep.mubr.f32.mxu0 0.0
    %2471 = vmatmul.mubr.f32.gmra.mrb[0].mxu0 %v2404
    %v2472 = vpop.f32.mrb[0].mxu0
    %v2473 = vadd.f32 %v2398, %v2472
    %v2474 = vpop.f32.mrb[0].mxu0
    %2475 = vdwg.mxu0
    %v2476 = vadd.f32 %v2473, %v765
    %v2477 = vxor.u32 %v2476, 2147483648
    %v2478 = vmul.f32 %v2477, 1.442695
    %v2479 = vpow.pop %v2478
    %v2480 = vadd.f32 %v2479, 1.0
    %v2481 = vrcp.pop %v2480
    %v2482 = vmul.f32 1.0, %v2481
    %v2483 = vtanh.pop %v2476
    %v2484 = vmul.f32 %v2482, %v2154
    %2486 = vrot.lane.b32.xlu0 %v2483, 64
    %v2487 = vpop.permute.xlu0 %2486
    %v2489 = vmul.f32 %v2482, %v2487
    %2491 = vrot.lane.b32.xlu0 %v2489, 32
    %v2492 = vpop.permute.xlu0 %2491
    %v2494 = vadd.f32 %v2484, %v2492
    %v2495 = vtanh.pop %v2494
    %2497 = vrot.lane.b32.xlu0 %v2495, 64
    %v2498 = vpop.permute.xlu0 %2497
    %v2500 = vmul.f32 %v2482, %v2498
    %2502 = vrot.lane.b32.xlu0 %v2500, 32
    %v2503 = vpop.permute.xlu0 %2502
    %v2504 = vsel %vm137, %v2503, 0
    %2506 = vmatprep.subr.mxu0 0.0
    %2507 = vmatpush1.msra.mxu0 %v507
    %2508 = vmatprep.subr.mxu0 0.0
    %2509 = vmatpush1.msra.mxu0 %v508
    %2510 = vmatprep.subr.mxu0 0.0
    %2511 = vmatpush1.msra.mxu0 %v509
    %2512 = vmatprep.subr.mxu0 0.0
    %2513 = vmatpush1.msra.mxu0 %v510
    %2514 = vmatprep.subr.mxu0 0.0
    %2515 = vmatpush1.msra.mxu0 0.0
    %2516 = vmatprep.subr.mxu0 0.0
    %2517 = vmatpush1.msra.mxu0 0.0
    %2518 = vmatprep.subr.mxu0 0.0
    %2519 = vmatpush1.msra.mxu0 0.0
    %2520 = vmatprep.subr.mxu0 0.0
    %2521 = vmatpush1.msra.mxu0 0.0
    %2522 = vmatprep.subr.mxu0 0.0
    %2523 = vmatpush1.msra.mxu0 0.0
    %2524 = vmatprep.subr.mxu0 0.0
    %2525 = vmatpush1.msra.mxu0 0.0
    %2526 = vmatprep.subr.mxu0 0.0
    %2527 = vmatpush1.msra.mxu0 0.0
    %2528 = vmatprep.subr.mxu0 0.0
    %2529 = vmatpush1.msra.mxu0 0.0
    %2530 = vmatprep.subr.mxu0 0.0
    %2531 = vmatpush1.msra.mxu0 0.0
    %2532 = vmatprep.subr.mxu0 0.0
    %2533 = vmatpush1.msra.mxu0 0.0
    %2534 = vmatprep.subr.mxu0 0.0
    %2535 = vmatpush1.msra.mxu0 0.0
    %2536 = vmatprep.subr.mxu0 0.0
    %2537 = vmatpush1.msra.mxu0 0.0
    %2538 = vmatprep.subr.mxu0 0.0
    %2539 = vmatpush1.msra.mxu0 0.0
    %2540 = vmatprep.subr.mxu0 0.0
    %2541 = vmatpush1.msra.mxu0 0.0
    %2542 = vmatprep.subr.mxu0 0.0
    %2543 = vmatpush1.msra.mxu0 0.0
    %2544 = vmatprep.subr.mxu0 0.0
    %2545 = vmatpush1.msra.mxu0 0.0
    %2546 = vmatprep.subr.mxu0 0.0
    %2547 = vmatpush1.msra.mxu0 0.0
    %2548 = vmatprep.subr.mxu0 0.0
    %2549 = vmatpush1.msra.mxu0 0.0
    %2550 = vmatprep.subr.mxu0 0.0
    %2551 = vmatpush1.msra.mxu0 0.0
    %2552 = vmatprep.subr.mxu0 0.0
    %2553 = vmatpush1.msra.mxu0 0.0
    %2554 = vmatprep.subr.mxu0 0.0
    %2555 = vmatpush1.msra.mxu0 0.0
    %2556 = vmatprep.subr.mxu0 0.0
    %2557 = vmatpush1.msra.mxu0 0.0
    %2558 = vmatprep.subr.mxu0 0.0
    %2559 = vmatpush1.msra.mxu0 0.0
    %2560 = vmatprep.subr.mxu0 0.0
    %2561 = vmatpush1.msra.mxu0 0.0
    %2562 = vmatprep.subr.mxu0 0.0
    %2563 = vmatpush1.msra.mxu0 0.0
    %2564 = vmatprep.subr.mxu0 0.0
    %2565 = vmatpush1.msra.mxu0 0.0
    %2566 = vmatprep.subr.mxu0 0.0
    %2567 = vmatpush1.msra.mxu0 0.0
    %2568 = vmatprep.subr.mxu0 0.0
    %2569 = vmatpush1.msra.mxu0 0.0
    %2570 = vmatprep.mubr.f32.mxu0 0.0
    %2571 = vmatmul.mubr.f32.gmra.mrb[0].mxu0 %v2504
    %v2572 = vpop.f32.mrb[0].mxu0
    %v2573 = vadd.f32 %v799, %v2572
    %v2574 = vpop.f32.mrb[0].mxu0
    %2575 = vdwg.mxu0
    %2576 = vmatprep.subr.mxu0 0.0
    %2577 = vmatpush1.msra.mxu0 %v495
    %2578 = vmatprep.subr.mxu0 0.0
    %2579 = vmatpush1.msra.mxu0 %v496
    %2580 = vmatprep.subr.mxu0 0.0
    %2581 = vmatpush1.msra.mxu0 %v497
    %2582 = vmatprep.subr.mxu0 0.0
    %2583 = vmatpush1.msra.mxu0 %v498
    %2584 = vmatprep.subr.mxu0 0.0
    %2585 = vmatpush1.msra.mxu0 0.0
    %2586 = vmatprep.subr.mxu0 0.0
    %2587 = vmatpush1.msra.mxu0 0.0
    %2588 = vmatprep.subr.mxu0 0.0
    %2589 = vmatpush1.msra.mxu0 0.0
    %2590 = vmatprep.subr.mxu0 0.0
    %2591 = vmatpush1.msra.mxu0 0.0
    %2592 = vmatprep.subr.mxu0 0.0
    %2593 = vmatpush1.msra.mxu0 0.0
    %2594 = vmatprep.subr.mxu0 0.0
    %2595 = vmatpush1.msra.mxu0 0.0
    %2596 = vmatprep.subr.mxu0 0.0
    %2597 = vmatpush1.msra.mxu0 0.0
    %2598 = vmatprep.subr.mxu0 0.0
    %2599 = vmatpush1.msra.mxu0 0.0
    %2600 = vmatprep.subr.mxu0 0.0
    %2601 = vmatpush1.msra.mxu0 0.0
    %2602 = vmatprep.subr.mxu0 0.0
    %2603 = vmatpush1.msra.mxu0 0.0
    %2604 = vmatprep.subr.mxu0 0.0
    %2605 = vmatpush1.msra.mxu0 0.0
    %2606 = vmatprep.subr.mxu0 0.0
    %2607 = vmatpush1.msra.mxu0 0.0
    %2608 = vmatprep.subr.mxu0 0.0
    %2609 = vmatpush1.msra.mxu0 0.0
    %2610 = vmatprep.subr.mxu0 0.0
    %2611 = vmatpush1.msra.mxu0 0.0
    %2612 = vmatprep.subr.mxu0 0.0
    %2613 = vmatpush1.msra.mxu0 0.0
    %2614 = vmatprep.subr.mxu0 0.0
    %2615 = vmatpush1.msra.mxu0 0.0
    %2616 = vmatprep.subr.mxu0 0.0
    %2617 = vmatpush1.msra.mxu0 0.0
    %2618 = vmatprep.subr.mxu0 0.0
    %2619 = vmatpush1.msra.mxu0 0.0
    %2620 = vmatprep.subr.mxu0 0.0
    %2621 = vmatpush1.msra.mxu0 0.0
    %2622 = vmatprep.subr.mxu0 0.0
    %2623 = vmatpush1.msra.mxu0 0.0
    %2624 = vmatprep.subr.mxu0 0.0
    %2625 = vmatpush1.msra.mxu0 0.0
    %2626 = vmatprep.subr.mxu0 0.0
    %2627 = vmatpush1.msra.mxu0 0.0
    %2628 = vmatprep.subr.mxu0 0.0
    %2629 = vmatpush1.msra.mxu0 0.0
    %2630 = vmatprep.subr.mxu0 0.0
    %2631 = vmatpush1.msra.mxu0 0.0
    %2632 = vmatprep.subr.mxu0 0.0
    %2633 = vmatpush1.msra.mxu0 0.0
    %2634 = vmatprep.subr.mxu0 0.0
    %2635 = vmatpush1.msra.mxu0 0.0
    %2636 = vmatprep.subr.mxu0 0.0
    %2637 = vmatpush1.msra.mxu0 0.0
    %2638 = vmatprep.subr.mxu0 0.0
    %2639 = vmatpush1.msra.mxu0 0.0
    %2640 = vmatprep.mubr.f32.mxu0 0.0
    %2641 = vmatmul.mubr.f32.gmra.mrb[0].mxu0 %v2404
    %v2642 = vpop.f32.mrb[0].mxu0
    %v2643 = vadd.f32 0.0, %v2642
    %v2644 = vpop.f32.mrb[0].mxu0
    %2645 = vdwg.mxu0
    %v2646 = vadd.f32 %v423, %v2643
    %v2647 = vxor.u32 %v2646, 2147483648
    %v2648 = vmul.f32 %v2647, 1.442695
    %v2649 = vpow.pop %v2648
    %v2650 = vadd.f32 %v2649, 1.0
    %v2651 = vrcp.pop %v2650
    %v2652 = vmul.f32 1.0, %v2651
    %v2653 = vtanh.pop %v2646
    %v2654 = vmul.f32 %v2652, %v2324
    %2656 = vrot.lane.b32.xlu0 %v2653, 64
    %v2657 = vpop.permute.xlu0 %2656
    %v2659 = vmul.f32 %v2652, %v2657
    %2661 = vrot.lane.b32.xlu0 %v2659, 32
    %v2662 = vpop.permute.xlu0 %2661
    %v2664 = vadd.f32 %v2654, %v2662
    %v2665 = vtanh.pop %v2664
    %2667 = vrot.lane.b32.xlu0 %v2665, 64
    %v2668 = vpop.permute.xlu0 %2667
    %v2670 = vmul.f32 %v2652, %v2668
    %2671 = vmatprep.subr.mxu0 0.0
    %2672 = vmatpush1.msra.mxu0 %v503
    %2673 = vmatprep.subr.mxu0 0.0
    %2674 = vmatpush1.msra.mxu0 %v504
    %2675 = vmatprep.subr.mxu0 0.0
    %2676 = vmatpush1.msra.mxu0 %v505
    %2677 = vmatprep.subr.mxu0 0.0
    %2678 = vmatpush1.msra.mxu0 %v506
    %2679 = vmatprep.subr.mxu0 0.0
    %2680 = vmatpush1.msra.mxu0 0.0
    %2681 = vmatprep.subr.mxu0 0.0
    %2682 = vmatpush1.msra.mxu0 0.0
    %2683 = vmatprep.subr.mxu0 0.0
    %2684 = vmatpush1.msra.mxu0 0.0
    %2685 = vmatprep.subr.mxu0 0.0
    %2686 = vmatpush1.msra.mxu0 0.0
    %2687 = vmatprep.subr.mxu0 0.0
    %2688 = vmatpush1.msra.mxu0 0.0
    %2689 = vmatprep.subr.mxu0 0.0
    %2690 = vmatpush1.msra.mxu0 0.0
    %2691 = vmatprep.subr.mxu0 0.0
    %2692 = vmatpush1.msra.mxu0 0.0
    %2693 = vmatprep.subr.mxu0 0.0
    %2694 = vmatpush1.msra.mxu0 0.0
    %2695 = vmatprep.subr.mxu0 0.0
    %2696 = vmatpush1.msra.mxu0 0.0
    %2697 = vmatprep.subr.mxu0 0.0
    %2698 = vmatpush1.msra.mxu0 0.0
    %2699 = vmatprep.subr.mxu0 0.0
    %2700 = vmatpush1.msra.mxu0 0.0
    %2701 = vmatprep.subr.mxu0 0.0
    %2702 = vmatpush1.msra.mxu0 0.0
    %2703 = vmatprep.subr.mxu0 0.0
    %2704 = vmatpush1.msra.mxu0 0.0
    %2705 = vmatprep.subr.mxu0 0.0
    %2706 = vmatpush1.msra.mxu0 0.0
    %2707 = vmatprep.subr.mxu0 0.0
    %2708 = vmatpush1.msra.mxu0 0.0
    %2709 = vmatprep.subr.mxu0 0.0
    %2710 = vmatpush1.msra.mxu0 0.0
    %2711 = vmatprep.subr.mxu0 0.0
    %2712 = vmatpush1.msra.mxu0 0.0
    %2713 = vmatprep.subr.mxu0 0.0
    %2714 = vmatpush1.msra.mxu0 0.0
    %2715 = vmatprep.subr.mxu0 0.0
    %2716 = vmatpush1.msra.mxu0 0.0
    %2717 = vmatprep.subr.mxu0 0.0
    %2718 = vmatpush1.msra.mxu0 0.0
    %2719 = vmatprep.subr.mxu0 0.0
    %2720 = vmatpush1.msra.mxu0 0.0
    %2721 = vmatprep.subr.mxu0 0.0
    %2722 = vmatpush1.msra.mxu0 0.0
    %2723 = vmatprep.subr.mxu0 0.0
    %2724 = vmatpush1.msra.mxu0 0.0
    %2725 = vmatprep.subr.mxu0 0.0
    %2726 = vmatpush1.msra.mxu0 0.0
    %2727 = vmatprep.subr.mxu0 0.0
    %2728 = vmatpush1.msra.mxu0 0.0
    %2729 = vmatprep.subr.mxu0 0.0
    %2730 = vmatpush1.msra.mxu0 0.0
    %2731 = vmatprep.subr.mxu0 0.0
    %2732 = vmatpush1.msra.mxu0 0.0
    %2733 = vmatprep.subr.mxu0 0.0
    %2734 = vmatpush1.msra.mxu0 0.0
    %2735 = vmatprep.mubr.f32.mxu0 0.0
    %2736 = vmatmul.mubr.f32.gmra.mrb[0].mxu0 %v2504
    %v2737 = vpop.f32.mrb[0].mxu0
    %v2738 = vadd.f32 0.0, %v2737
    %v2739 = vpop.f32.mrb[0].mxu0
    %2740 = vdwg.mxu0
    %2742 = vrot.lane.b32.xlu0 %v2670, 32
    %v2743 = vpop.permute.xlu0 %2742
    %v2744 = vsel %vm137, %v2743, 0
    %2746 = vmatprep.subr.mxu0 0.0
    %2747 = vmatpush1.msra.mxu0 %v499
    %2748 = vmatprep.subr.mxu0 0.0
    %2749 = vmatpush1.msra.mxu0 %v500
    %2750 = vmatprep.subr.mxu0 0.0
    %2751 = vmatpush1.msra.mxu0 %v501
    %2752 = vmatprep.subr.mxu0 0.0
    %2753 = vmatpush1.msra.mxu0 %v502
    %2754 = vmatprep.subr.mxu0 0.0
    %2755 = vmatpush1.msra.mxu0 0.0
    %2756 = vmatprep.subr.mxu0 0.0
    %2757 = vmatpush1.msra.mxu0 0.0
    %2758 = vmatprep.subr.mxu0 0.0
    %2759 = vmatpush1.msra.mxu0 0.0
    %2760 = vmatprep.subr.mxu0 0.0
    %2761 = vmatpush1.msra.mxu0 0.0
    %2762 = vmatprep.subr.mxu0 0.0
    %2763 = vmatpush1.msra.mxu0 0.0
    %2764 = vmatprep.subr.mxu0 0.0
    %2765 = vmatpush1.msra.mxu0 0.0
    %2766 = vmatprep.subr.mxu0 0.0
    %2767 = vmatpush1.msra.mxu0 0.0
    %2768 = vmatprep.subr.mxu0 0.0
    %2769 = vmatpush1.msra.mxu0 0.0
    %2770 = vmatprep.subr.mxu0 0.0
    %2771 = vmatpush1.msra.mxu0 0.0
    %2772 = vmatprep.subr.mxu0 0.0
    %2773 = vmatpush1.msra.mxu0 0.0
    %2774 = vmatprep.subr.mxu0 0.0
    %2775 = vmatpush1.msra.mxu0 0.0
    %2776 = vmatprep.subr.mxu0 0.0
    %2777 = vmatpush1.msra.mxu0 0.0
    %2778 = vmatprep.subr.mxu0 0.0
    %2779 = vmatpush1.msra.mxu0 0.0
    %2780 = vmatprep.subr.mxu0 0.0
    %2781 = vmatpush1.msra.mxu0 0.0
    %2782 = vmatprep.subr.mxu0 0.0
    %2783 = vmatpush1.msra.mxu0 0.0
    %2784 = vmatprep.subr.mxu0 0.0
    %2785 = vmatpush1.msra.mxu0 0.0
    %2786 = vmatprep.subr.mxu0 0.0
    %2787 = vmatpush1.msra.mxu0 0.0
    %2788 = vmatprep.subr.mxu0 0.0
    %2789 = vmatpush1.msra.mxu0 0.0
    %2790 = vmatprep.subr.mxu0 0.0
    %2791 = vmatpush1.msra.mxu0 0.0
    %2792 = vmatprep.subr.mxu0 0.0
    %2793 = vmatpush1.msra.mxu0 0.0
    %2794 = vmatprep.subr.mxu0 0.0
    %2795 = vmatpush1.msra.mxu0 0.0
    %2796 = vmatprep.subr.mxu0 0.0
    %2797 = vmatpush1.msra.mxu0 0.0
    %2798 = vmatprep.subr.mxu0 0.0
    %2799 = vmatpush1.msra.mxu0 0.0
    %2800 = vmatprep.subr.mxu0 0.0
    %2801 = vmatpush1.msra.mxu0 0.0
    %2802 = vmatprep.subr.mxu0 0.0
    %2803 = vmatpush1.msra.mxu0 0.0
    %2804 = vmatprep.subr.mxu0 0.0
    %2805 = vmatpush1.msra.mxu0 0.0
    %2806 = vmatprep.subr.mxu0 0.0
    %2807 = vmatpush1.msra.mxu0 0.0
    %2808 = vmatprep.subr.mxu0 0.0
    %2809 = vmatpush1.msra.mxu0 0.0
    %2810 = vmatprep.mubr.f32.mxu0 0.0
    %2811 = vmatmul.mubr.f32.gmra.mrb[0].mxu0 %v2744
    %v2812 = vpop.f32.mrb[0].mxu0
    %v2813 = vadd.f32 %v2738, %v2812
    %v2814 = vpop.f32.mrb[0].mxu0
    %2815 = vdwg.mxu0
    %v2816 = vadd.f32 %v2813, %v765
    %v2817 = vxor.u32 %v2816, 2147483648
    %v2818 = vmul.f32 %v2817, 1.442695
    %v2819 = vpow.pop %v2818
    %v2820 = vadd.f32 %v2819, 1.0
    %v2821 = vrcp.pop %v2820
    %v2822 = vmul.f32 1.0, %v2821
    %v2823 = vtanh.pop %v2816
    %v2824 = vmul.f32 %v2822, %v2494
    %2826 = vrot.lane.b32.xlu0 %v2823, 64
    %v2827 = vpop.permute.xlu0 %2826
    %v2829 = vmul.f32 %v2822, %v2827
    %2831 = vrot.lane.b32.xlu0 %v2829, 32
    %v2832 = vpop.permute.xlu0 %2831
    %v2834 = vadd.f32 %v2824, %v2832
    %v2835 = vtanh.pop %v2834
    %2837 = vrot.lane.b32.xlu0 %v2835, 64
    %v2838 = vpop.permute.xlu0 %2837
    %v2840 = vmul.f32 %v2822, %v2838
    %2842 = vrot.lane.b32.xlu0 %v2840, 32
    %v2843 = vpop.permute.xlu0 %2842
    %v2844 = vsel %vm137, %v2843, 0
    %2846 = vmatprep.subr.mxu0 0.0
    %2847 = vmatpush1.msra.mxu0 %v507
    %2848 = vmatprep.subr.mxu0 0.0
    %2849 = vmatpush1.msra.mxu0 %v508
    %2850 = vmatprep.subr.mxu0 0.0
    %2851 = vmatpush1.msra.mxu0 %v509
    %2852 = vmatprep.subr.mxu0 0.0
    %2853 = vmatpush1.msra.mxu0 %v510
    %2854 = vmatprep.subr.mxu0 0.0
    %2855 = vmatpush1.msra.mxu0 0.0
    %2856 = vmatprep.subr.mxu0 0.0
    %2857 = vmatpush1.msra.mxu0 0.0
    %2858 = vmatprep.subr.mxu0 0.0
    %2859 = vmatpush1.msra.mxu0 0.0
    %2860 = vmatprep.subr.mxu0 0.0
    %2861 = vmatpush1.msra.mxu0 0.0
    %2862 = vmatprep.subr.mxu0 0.0
    %2863 = vmatpush1.msra.mxu0 0.0
    %2864 = vmatprep.subr.mxu0 0.0
    %2865 = vmatpush1.msra.mxu0 0.0
    %2866 = vmatprep.subr.mxu0 0.0
    %2867 = vmatpush1.msra.mxu0 0.0
    %2868 = vmatprep.subr.mxu0 0.0
    %2869 = vmatpush1.msra.mxu0 0.0
    %2870 = vmatprep.subr.mxu0 0.0
    %2871 = vmatpush1.msra.mxu0 0.0
    %2872 = vmatprep.subr.mxu0 0.0
    %2873 = vmatpush1.msra.mxu0 0.0
    %2874 = vmatprep.subr.mxu0 0.0
    %2875 = vmatpush1.msra.mxu0 0.0
    %2876 = vmatprep.subr.mxu0 0.0
    %2877 = vmatpush1.msra.mxu0 0.0
    %2878 = vmatprep.subr.mxu0 0.0
    %2879 = vmatpush1.msra.mxu0 0.0
    %2880 = vmatprep.subr.mxu0 0.0
    %2881 = vmatpush1.msra.mxu0 0.0
    %2882 = vmatprep.subr.mxu0 0.0
    %2883 = vmatpush1.msra.mxu0 0.0
    %2884 = vmatprep.subr.mxu0 0.0
    %2885 = vmatpush1.msra.mxu0 0.0
    %2886 = vmatprep.subr.mxu0 0.0
    %2887 = vmatpush1.msra.mxu0 0.0
    %2888 = vmatprep.subr.mxu0 0.0
    %2889 = vmatpush1.msra.mxu0 0.0
    %2890 = vmatprep.subr.mxu0 0.0
    %2891 = vmatpush1.msra.mxu0 0.0
    %2892 = vmatprep.subr.mxu0 0.0
    %2893 = vmatpush1.msra.mxu0 0.0
    %2894 = vmatprep.subr.mxu0 0.0
    %2895 = vmatpush1.msra.mxu0 0.0
    %2896 = vmatprep.subr.mxu0 0.0
    %2897 = vmatpush1.msra.mxu0 0.0
    %2898 = vmatprep.subr.mxu0 0.0
    %2899 = vmatpush1.msra.mxu0 0.0
    %2900 = vmatprep.subr.mxu0 0.0
    %2901 = vmatpush1.msra.mxu0 0.0
    %2902 = vmatprep.subr.mxu0 0.0
    %2903 = vmatpush1.msra.mxu0 0.0
    %2904 = vmatprep.subr.mxu0 0.0
    %2905 = vmatpush1.msra.mxu0 0.0
    %2906 = vmatprep.subr.mxu0 0.0
    %2907 = vmatpush1.msra.mxu0 0.0
    %2908 = vmatprep.subr.mxu0 0.0
    %2909 = vmatpush1.msra.mxu0 0.0
    %2910 = vmatprep.mubr.f32.mxu0 0.0
    %2911 = vmatmul.mubr.f32.gmra.mrb[0].mxu0 %v2844
    %v2912 = vpop.f32.mrb[0].mxu0
    %v2913 = vadd.f32 %v799, %v2912
    %v2914 = vpop.f32.mrb[0].mxu0
    %2915 = vdwg.mxu0
    %2916 = vmatprep.subr.mxu0 0.0
    %2917 = vmatpush1.msra.mxu0 %v495
    %2918 = vmatprep.subr.mxu0 0.0
    %2919 = vmatpush1.msra.mxu0 %v496
    %2920 = vmatprep.subr.mxu0 0.0
    %2921 = vmatpush1.msra.mxu0 %v497
    %2922 = vmatprep.subr.mxu0 0.0
    %2923 = vmatpush1.msra.mxu0 %v498
    %2924 = vmatprep.subr.mxu0 0.0
    %2925 = vmatpush1.msra.mxu0 0.0
    %2926 = vmatprep.subr.mxu0 0.0
    %2927 = vmatpush1.msra.mxu0 0.0
    %2928 = vmatprep.subr.mxu0 0.0
    %2929 = vmatpush1.msra.mxu0 0.0
    %2930 = vmatprep.subr.mxu0 0.0
    %2931 = vmatpush1.msra.mxu0 0.0
    %2932 = vmatprep.subr.mxu0 0.0
    %2933 = vmatpush1.msra.mxu0 0.0
    %2934 = vmatprep.subr.mxu0 0.0
    %2935 = vmatpush1.msra.mxu0 0.0
    %2936 = vmatprep.subr.mxu0 0.0
    %2937 = vmatpush1.msra.mxu0 0.0
    %2938 = vmatprep.subr.mxu0 0.0
    %2939 = vmatpush1.msra.mxu0 0.0
    %2940 = vmatprep.subr.mxu0 0.0
    %2941 = vmatpush1.msra.mxu0 0.0
    %2942 = vmatprep.subr.mxu0 0.0
    %2943 = vmatpush1.msra.mxu0 0.0
    %2944 = vmatprep.subr.mxu0 0.0
    %2945 = vmatpush1.msra.mxu0 0.0
    %2946 = vmatprep.subr.mxu0 0.0
    %2947 = vmatpush1.msra.mxu0 0.0
    %2948 = vmatprep.subr.mxu0 0.0
    %2949 = vmatpush1.msra.mxu0 0.0
    %2950 = vmatprep.subr.mxu0 0.0
    %2951 = vmatpush1.msra.mxu0 0.0
    %2952 = vmatprep.subr.mxu0 0.0
    %2953 = vmatpush1.msra.mxu0 0.0
    %2954 = vmatprep.subr.mxu0 0.0
    %2955 = vmatpush1.msra.mxu0 0.0
    %2956 = vmatprep.subr.mxu0 0.0
    %2957 = vmatpush1.msra.mxu0 0.0
    %2958 = vmatprep.subr.mxu0 0.0
    %2959 = vmatpush1.msra.mxu0 0.0
    %2960 = vmatprep.subr.mxu0 0.0
    %2961 = vmatpush1.msra.mxu0 0.0
    %2962 = vmatprep.subr.mxu0 0.0
    %2963 = vmatpush1.msra.mxu0 0.0
    %2964 = vmatprep.subr.mxu0 0.0
    %2965 = vmatpush1.msra.mxu0 0.0
    %2966 = vmatprep.subr.mxu0 0.0
    %2967 = vmatpush1.msra.mxu0 0.0
    %2968 = vmatprep.subr.mxu0 0.0
    %2969 = vmatpush1.msra.mxu0 0.0
    %2970 = vmatprep.subr.mxu0 0.0
    %2971 = vmatpush1.msra.mxu0 0.0
    %2972 = vmatprep.subr.mxu0 0.0
    %2973 = vmatpush1.msra.mxu0 0.0
    %2974 = vmatprep.subr.mxu0 0.0
    %2975 = vmatpush1.msra.mxu0 0.0
    %2976 = vmatprep.subr.mxu0 0.0
    %2977 = vmatpush1.msra.mxu0 0.0
    %2978 = vmatprep.subr.mxu0 0.0
    %2979 = vmatpush1.msra.mxu0 0.0
    %2980 = vmatprep.mubr.f32.mxu0 0.0
    %2981 = vmatmul.mubr.f32.gmra.mrb[0].mxu0 %v2744
    %v2982 = vpop.f32.mrb[0].mxu0
    %v2983 = vadd.f32 0.0, %v2982
    %v2984 = vpop.f32.mrb[0].mxu0
    %2985 = vdwg.mxu0
    %v2986 = vadd.f32 %v492, %v2983
    %v2987 = vxor.u32 %v2986, 2147483648
    %v2988 = vmul.f32 %v2987, 1.442695
    %v2989 = vpow.pop %v2988
    %v2990 = vadd.f32 %v2989, 1.0
    %v2991 = vrcp.pop %v2990
    %v2992 = vmul.f32 1.0, %v2991
    %v2993 = vtanh.pop %v2986
    %v2994 = vmul.f32 %v2992, %v2664
    %2996 = vrot.lane.b32.xlu0 %v2993, 64
    %v2997 = vpop.permute.xlu0 %2996
    %v2999 = vmul.f32 %v2992, %v2997
    %3001 = vrot.lane.b32.xlu0 %v2999, 32
    %v3002 = vpop.permute.xlu0 %3001
    %v3004 = vadd.f32 %v2994, %v3002
    %v3005 = vtanh.pop %v3004
    %3007 = vrot.lane.b32.xlu0 %v3005, 64
    %v3008 = vpop.permute.xlu0 %3007
    %v3010 = vmul.f32 %v2992, %v3008
    %3011 = vmatprep.subr.mxu0 0.0
    %3012 = vmatpush1.msra.mxu0 %v503
    %3013 = vmatprep.subr.mxu0 0.0
    %3014 = vmatpush1.msra.mxu0 %v504
    %3015 = vmatprep.subr.mxu0 0.0
    %3016 = vmatpush1.msra.mxu0 %v505
    %3017 = vmatprep.subr.mxu0 0.0
    %3018 = vmatpush1.msra.mxu0 %v506
    %3019 = vmatprep.subr.mxu0 0.0
    %3020 = vmatpush1.msra.mxu0 0.0
    %3021 = vmatprep.subr.mxu0 0.0
    %3022 = vmatpush1.msra.mxu0 0.0
    %3023 = vmatprep.subr.mxu0 0.0
    %3024 = vmatpush1.msra.mxu0 0.0
    %3025 = vmatprep.subr.mxu0 0.0
    %3026 = vmatpush1.msra.mxu0 0.0
    %3027 = vmatprep.subr.mxu0 0.0
    %3028 = vmatpush1.msra.mxu0 0.0
    %3029 = vmatprep.subr.mxu0 0.0
    %3030 = vmatpush1.msra.mxu0 0.0
    %3031 = vmatprep.subr.mxu0 0.0
    %3032 = vmatpush1.msra.mxu0 0.0
    %3033 = vmatprep.subr.mxu0 0.0
    %3034 = vmatpush1.msra.mxu0 0.0
    %3035 = vmatprep.subr.mxu0 0.0
    %3036 = vmatpush1.msra.mxu0 0.0
    %3037 = vmatprep.subr.mxu0 0.0
    %3038 = vmatpush1.msra.mxu0 0.0
    %3039 = vmatprep.subr.mxu0 0.0
    %3040 = vmatpush1.msra.mxu0 0.0
    %3041 = vmatprep.subr.mxu0 0.0
    %3042 = vmatpush1.msra.mxu0 0.0
    %3043 = vmatprep.subr.mxu0 0.0
    %3044 = vmatpush1.msra.mxu0 0.0
    %3045 = vmatprep.subr.mxu0 0.0
    %3046 = vmatpush1.msra.mxu0 0.0
    %3047 = vmatprep.subr.mxu0 0.0
    %3048 = vmatpush1.msra.mxu0 0.0
    %3049 = vmatprep.subr.mxu0 0.0
    %3050 = vmatpush1.msra.mxu0 0.0
    %3051 = vmatprep.subr.mxu0 0.0
    %3052 = vmatpush1.msra.mxu0 0.0
    %3053 = vmatprep.subr.mxu0 0.0
    %3054 = vmatpush1.msra.mxu0 0.0
    %3055 = vmatprep.subr.mxu0 0.0
    %3056 = vmatpush1.msra.mxu0 0.0
    %3057 = vmatprep.subr.mxu0 0.0
    %3058 = vmatpush1.msra.mxu0 0.0
    %3059 = vmatprep.subr.mxu0 0.0
    %3060 = vmatpush1.msra.mxu0 0.0
    %3061 = vmatprep.subr.mxu0 0.0
    %3062 = vmatpush1.msra.mxu0 0.0
    %3063 = vmatprep.subr.mxu0 0.0
    %3064 = vmatpush1.msra.mxu0 0.0
    %3065 = vmatprep.subr.mxu0 0.0
    %3066 = vmatpush1.msra.mxu0 0.0
    %3067 = vmatprep.subr.mxu0 0.0
    %3068 = vmatpush1.msra.mxu0 0.0
    %3069 = vmatprep.subr.mxu0 0.0
    %3070 = vmatpush1.msra.mxu0 0.0
    %3071 = vmatprep.subr.mxu0 0.0
    %3072 = vmatpush1.msra.mxu0 0.0
    %3073 = vmatprep.subr.mxu0 0.0
    %3074 = vmatpush1.msra.mxu0 0.0
    %3075 = vmatprep.mubr.f32.mxu0 0.0
    %3076 = vmatmul.mubr.f32.gmra.mrb[0].mxu0 %v2844
    %v3077 = vpop.f32.mrb[0].mxu0
    %v3078 = vadd.f32 0.0, %v3077
    %v3079 = vpop.f32.mrb[0].mxu0
    %3080 = vdwg.mxu0
    %3082 = vrot.lane.b32.xlu0 %v3010, 32
    %v3083 = vpop.permute.xlu0 %3082
    %v3084 = vsel %vm137, %v3083, 0
    %3086 = vmatprep.subr.mxu0 0.0
    %3087 = vmatpush1.msra.mxu0 %v499
    %3088 = vmatprep.subr.mxu0 0.0
    %3089 = vmatpush1.msra.mxu0 %v500
    %3090 = vmatprep.subr.mxu0 0.0
    %3091 = vmatpush1.msra.mxu0 %v501
    %3092 = vmatprep.subr.mxu0 0.0
    %3093 = vmatpush1.msra.mxu0 %v502
    %3094 = vmatprep.subr.mxu0 0.0
    %3095 = vmatpush1.msra.mxu0 0.0
    %3096 = vmatprep.subr.mxu0 0.0
    %3097 = vmatpush1.msra.mxu0 0.0
    %3098 = vmatprep.subr.mxu0 0.0
    %3099 = vmatpush1.msra.mxu0 0.0
    %3100 = vmatprep.subr.mxu0 0.0
    %3101 = vmatpush1.msra.mxu0 0.0
    %3102 = vmatprep.subr.mxu0 0.0
    %3103 = vmatpush1.msra.mxu0 0.0
    %3104 = vmatprep.subr.mxu0 0.0
    %3105 = vmatpush1.msra.mxu0 0.0
    %3106 = vmatprep.subr.mxu0 0.0
    %3107 = vmatpush1.msra.mxu0 0.0
    %3108 = vmatprep.subr.mxu0 0.0
    %3109 = vmatpush1.msra.mxu0 0.0
    %3110 = vmatprep.subr.mxu0 0.0
    %3111 = vmatpush1.msra.mxu0 0.0
    %3112 = vmatprep.subr.mxu0 0.0
    %3113 = vmatpush1.msra.mxu0 0.0
    %3114 = vmatprep.subr.mxu0 0.0
    %3115 = vmatpush1.msra.mxu0 0.0
    %3116 = vmatprep.subr.mxu0 0.0
    %3117 = vmatpush1.msra.mxu0 0.0
    %3118 = vmatprep.subr.mxu0 0.0
    %3119 = vmatpush1.msra.mxu0 0.0
    %3120 = vmatprep.subr.mxu0 0.0
    %3121 = vmatpush1.msra.mxu0 0.0
    %3122 = vmatprep.subr.mxu0 0.0
    %3123 = vmatpush1.msra.mxu0 0.0
    %3124 = vmatprep.subr.mxu0 0.0
    %3125 = vmatpush1.msra.mxu0 0.0
    %3126 = vmatprep.subr.mxu0 0.0
    %3127 = vmatpush1.msra.mxu0 0.0
    %3128 = vmatprep.subr.mxu0 0.0
    %3129 = vmatpush1.msra.mxu0 0.0
    %3130 = vmatprep.subr.mxu0 0.0
    %3131 = vmatpush1.msra.mxu0 0.0
    %3132 = vmatprep.subr.mxu0 0.0
    %3133 = vmatpush1.msra.mxu0 0.0
    %3134 = vmatprep.subr.mxu0 0.0
    %3135 = vmatpush1.msra.mxu0 0.0
    %3136 = vmatprep.subr.mxu0 0.0
    %3137 = vmatpush1.msra.mxu0 0.0
    %3138 = vmatprep.subr.mxu0 0.0
    %3139 = vmatpush1.msra.mxu0 0.0
    %3140 = vmatprep.subr.mxu0 0.0
    %3141 = vmatpush1.msra.mxu0 0.0
    %3142 = vmatprep.subr.mxu0 0.0
    %3143 = vmatpush1.msra.mxu0 0.0
    %3144 = vmatprep.subr.mxu0 0.0
    %3145 = vmatpush1.msra.mxu0 0.0
    %3146 = vmatprep.subr.mxu0 0.0
    %3147 = vmatpush1.msra.mxu0 0.0
    %3148 = vmatprep.subr.mxu0 0.0
    %3149 = vmatpush1.msra.mxu0 0.0
    %3150 = vmatprep.mubr.f32.mxu0 0.0
    %3151 = vmatmul.mubr.f32.gmra.mrb[0].mxu0 %v3084
    %v3152 = vpop.f32.mrb[0].mxu0
    %v3153 = vadd.f32 %v3078, %v3152
    %v3154 = vpop.f32.mrb[0].mxu0
    %3155 = vdwg.mxu0
    %v3156 = vadd.f32 %v3153, %v765
    %v3157 = vxor.u32 %v3156, 2147483648
    %v3158 = vmul.f32 %v3157, 1.442695
    %v3159 = vpow.pop %v3158
    %v3160 = vadd.f32 %v3159, 1.0
    %v3161 = vrcp.pop %v3160
    %v3162 = vmul.f32 1.0, %v3161
    %v3163 = vtanh.pop %v3156
    %v3164 = vmul.f32 %v3162, %v2834
    %3166 = vrot.lane.b32.xlu0 %v3163, 64
    %v3167 = vpop.permute.xlu0 %3166
    %v3169 = vmul.f32 %v3162, %v3167
    %3171 = vrot.lane.b32.xlu0 %v3169, 32
    %v3172 = vpop.permute.xlu0 %3171
    %v3174 = vadd.f32 %v3164, %v3172
    %v3175 = vtanh.pop %v3174
    %3177 = vrot.lane.b32.xlu0 %v3175, 64
    %v3178 = vpop.permute.xlu0 %3177
    %v3180 = vmul.f32 %v3162, %v3178
    %3182 = vrot.lane.b32.xlu0 %v3180, 32
    %v3183 = vpop.permute.xlu0 %3182
    %v3184 = vsel %vm137, %v3183, 0
    %3186 = vmatprep.subr.mxu0 0.0
    %3187 = vmatpush1.msra.mxu0 %v507
    %3188 = vmatprep.subr.mxu0 0.0
    %3189 = vmatpush1.msra.mxu0 %v508
    %3190 = vmatprep.subr.mxu0 0.0
    %3191 = vmatpush1.msra.mxu0 %v509
    %3192 = vmatprep.subr.mxu0 0.0
    %3193 = vmatpush1.msra.mxu0 %v510
    %3194 = vmatprep.subr.mxu0 0.0
    %3195 = vmatpush1.msra.mxu0 0.0
    %3196 = vmatprep.subr.mxu0 0.0
    %3197 = vmatpush1.msra.mxu0 0.0
    %3198 = vmatprep.subr.mxu0 0.0
    %3199 = vmatpush1.msra.mxu0 0.0
    %3200 = vmatprep.subr.mxu0 0.0
    %3201 = vmatpush1.msra.mxu0 0.0
    %3202 = vmatprep.subr.mxu0 0.0
    %3203 = vmatpush1.msra.mxu0 0.0
    %3204 = vmatprep.subr.mxu0 0.0
    %3205 = vmatpush1.msra.mxu0 0.0
    %3206 = vmatprep.subr.mxu0 0.0
    %3207 = vmatpush1.msra.mxu0 0.0
    %3208 = vmatprep.subr.mxu0 0.0
    %3209 = vmatpush1.msra.mxu0 0.0
    %3210 = vmatprep.subr.mxu0 0.0
    %3211 = vmatpush1.msra.mxu0 0.0
    %3212 = vmatprep.subr.mxu0 0.0
    %3213 = vmatpush1.msra.mxu0 0.0
    %3214 = vmatprep.subr.mxu0 0.0
    %3215 = vmatpush1.msra.mxu0 0.0
    %3216 = vmatprep.subr.mxu0 0.0
    %3217 = vmatpush1.msra.mxu0 0.0
    %3218 = vmatprep.subr.mxu0 0.0
    %3219 = vmatpush1.msra.mxu0 0.0
    %3220 = vmatprep.subr.mxu0 0.0
    %3221 = vmatpush1.msra.mxu0 0.0
    %3222 = vmatprep.subr.mxu0 0.0
    %3223 = vmatpush1.msra.mxu0 0.0
    %3224 = vmatprep.subr.mxu0 0.0
    %3225 = vmatpush1.msra.mxu0 0.0
    %3226 = vmatprep.subr.mxu0 0.0
    %3227 = vmatpush1.msra.mxu0 0.0
    %3228 = vmatprep.subr.mxu0 0.0
    %3229 = vmatpush1.msra.mxu0 0.0
    %3230 = vmatprep.subr.mxu0 0.0
    %3231 = vmatpush1.msra.mxu0 0.0
    %3232 = vmatprep.subr.mxu0 0.0
    %3233 = vmatpush1.msra.mxu0 0.0
    %3234 = vmatprep.subr.mxu0 0.0
    %3235 = vmatpush1.msra.mxu0 0.0
    %3236 = vmatprep.subr.mxu0 0.0
    %3237 = vmatpush1.msra.mxu0 0.0
    %3238 = vmatprep.subr.mxu0 0.0
    %3239 = vmatpush1.msra.mxu0 0.0
    %3240 = vmatprep.subr.mxu0 0.0
    %3241 = vmatpush1.msra.mxu0 0.0
    %3242 = vmatprep.subr.mxu0 0.0
    %3243 = vmatpush1.msra.mxu0 0.0
    %3244 = vmatprep.subr.mxu0 0.0
    %3245 = vmatpush1.msra.mxu0 0.0
    %3246 = vmatprep.subr.mxu0 0.0
    %3247 = vmatpush1.msra.mxu0 0.0
    %3248 = vmatprep.subr.mxu0 0.0
    %3249 = vmatpush1.msra.mxu0 0.0
    %3250 = vmatprep.mubr.f32.mxu0 0.0
    %3251 = vmatmul.mubr.f32.gmra.mrb[0].mxu0 %v3184
    %v3252 = vpop.f32.mrb[0].mxu0
    %v3253 = vadd.f32 %v799, %v3252
    %v3254 = vpop.f32.mrb[0].mxu0
    %3255 = vdwg.mxu0
    %3257 = vrot.lane.b32.xlu0 %v1213, 32
    %v3258 = vpop.permute.xlu0 %3257
    %3261 = vrot.lane.b32.xlu0 %v1553, 64
    %v3262 = vpop.permute.xlu0 %3261
    %3265 = vrot.lane.b32.xlu0 %v1893, 96
    %v3266 = vpop.permute.xlu0 %3265
    %3269 = vrot.lane.b32.xlu0 %v2573, 32
    %v3270 = vpop.permute.xlu0 %3269
    %3273 = vrot.lane.b32.xlu0 %v2913, 64
    %v3274 = vpop.permute.xlu0 %3273
    %3277 = vrot.lane.b32.xlu0 %v3253, 96
    %v3278 = vpop.permute.xlu0 %3277
    %v3280 = vsel %vm137, %v873, %v3258
    %vm3281 = vcmask 523264
    %v3282 = vsel %vm3281, %v3280, %v3262
    %vm3283 = vcmask 785408
    %v3284 = vsel %vm3283, %v3282, %v3266
    %v3285 = vsel %vm137, %v2233, %v3270
    %v3286 = vsel %vm3281, %v3285, %v3274
    %v3287 = vsel %vm3283, %v3286, %v3278
    %v3290 = vcombine.low %v3284, %v3287
    %v3292 = vunpack.c.l.s4 1983009808
    %v3293 = vunpack.c.0.s8 %v3292
    %v3294 = vlaneseq
    %v3295 = vshrl.u32 %v3294, 7
    %v3296 = vsub.s32 %v3293, %v3295
    %v3297 = vrot.slane %v3290, %v3296
    %3299 = vst [vmem:[%s3] sm:$0xf] %v3297
    // Predicated region
    $region26: #{emb2seq_forward.1} parent=1 // pred_check
      _
    $region27: #{emb2seq_forward.1} parent=1 // pred_check_branch
      %3301 = sbr.rel (0) target = $region29
    $region28: #{emb2seq_forward.1} parent=1 // pred_region
      _
    $region29: #{emb2seq_forward.1} parent=1 // pred_fallthru
      _
    // Predicated region
    $region30: #{emb2seq_forward.1} parent=1 // pred_check
      _
    $region31: #{emb2seq_forward.1} parent=1 // pred_check_branch
      %3303 = sbr.rel (0) target = $region33
    $region32: #{emb2seq_forward.1} parent=1 // pred_region
      _
    $region33: #{emb2seq_forward.1} parent=1 // pred_fallthru
      _
    %3304 = vsyncpa [#allocation3], 1
    %3305 = vsyncpa [#allocation5], 1

</llo_original>
